<compile_context>
chip_gen: v7x
topology: tpu7x:2x2x1
jax: 0.10.0
libtpu: 0.0.40
codegen_flags: <defaults>
</compile_context>

<pallas_src>
import functools

import jax
import jax.numpy as jnp
from jax import lax
from jax.experimental import pallas as pl
from jax.experimental.pallas import tpu as pltpu


def _silu(x):
    return x * jax.nn.sigmoid(x)


# ----------------------------- fused kernel -----------------------------------

def _make_kernel(N, H, P, n_mult):
    """One grid step == one batch element; the whole layer runs in VMEM.

    Activation layout: "row packed" -- P = 128 // H logical rows side by side
    in the 128-lane dimension; packed dense layers use kron(I_P, W) weights.
    """
    PH = P * H          # packed lane width (128 for H <= 128)
    NN = N * N
    Rg = N // P         # packed rows per logical i (or per k)
    unroll = 8 if N % 8 == 0 else (4 if N % 4 == 0 else 1)

    def kernel(xp_ref, xt_ref, wpk_ref, bpk_ref, w0a_ref, b0a_ref,
               w0b_ref, b0b_ref, out_ref, k0_s, k1_s, acc_s, mul_s):

        def pdense(v, idx):
            # One packed Dense: SiLU(v @ W_blockdiag + b_tiled), f32 accumulate.
            y = jnp.dot(v.astype(jnp.bfloat16), wpk_ref[idx],
                        preferred_element_type=jnp.float32)
            return _silu(y + bpk_ref[idx])

        def pmlp2(v, i0):
            return pdense(pdense(v, i0), i0 + 1)

        xp = xp_ref[...]                                   # (R, PH) bf16, packed rows
        self_msg = pmlp2(xp, 0)                            # emb branch 0 (self message)
        k1p = pmlp2(xp, 2)                                 # emb branch 2, packed over j

        # emb branch 1 (kemb_0) from the (i<->k)-transposed input; its second
        # layer weight is lane-tiled so each logical row's H-vector comes out
        # replicated P times across lanes, ready for the packed product below.
        xt = xt_ref[...]                                   # (NN, H) bf16, rows = k*N + i
        h0 = _silu(jnp.dot(xt, w0a_ref[...],
                           preferred_element_type=jnp.float32) + b0a_ref[...])
        k0rep = _silu(jnp.dot(h0.astype(jnp.bfloat16), w0b_ref[...],
                              preferred_element_type=jnp.float32) + b0b_ref[...])

        # Stage both operands into k-indexed scratch (small static relayout,
        # O(N^2 H) copies) so the product loop only needs leading-dim dynamic
        # reads, which lower robustly.
        for k in range(N):
            k0_s[k] = k0rep[k * N:(k + 1) * N, :]          # (N, PH):  a[i,:] = k0[i,k,:]
            k1_s[k] = k1p[k * Rg:(k + 1) * Rg, :]          # (Rg, PH): k1[k, packed j, :]

        # Pairwise product: multed[i, j, h] = sum_k k0[i, k, h] * k1[k, j, h],
        # accumulated in f32 on lane-dense tiles (VPU MAC over k).
        acc_s[...] = jnp.zeros_like(acc_s)

        def prod_body(k, carry):
            a = k0_s[k]                                    # (N, PH)
            b = k1_s[k]                                    # (Rg, PH)
            acc_s[...] += a[:, None, :] * b[None, :, :]
            return carry

        lax.fori_loop(0, N, prod_body, 0, unroll=unroll)
        # TODO(synk): run this contraction on the MXU (channel-major batched
        # matmul) once N is large enough that the VPU MAC becomes the binding
        # slot (~N >= 64-128).

        for i in range(N):                                  # back to packed row order
            mul_s[i * Rg:(i + 1) * Rg, :] = acc_s[i]

        z = mul_s[...]                                      # (R, PH) f32
        for m in range(n_mult):                             # mult_lin residual blocks
            z = z + pmlp2(z, 4 + 2 * m)
        zz = self_msg * z
        out = zz + pmlp2(zz, 4 + 2 * n_mult)                # output_lin residual
        out_ref[...] = out.astype(out_ref.dtype)            # lane-dense (R, 128) store

    return kernel


# ----------------------------- parameters -------------------------------------

def init_params(key, hidden_dim, use_mult_lin=True):
    def dense(k):
        kw, kb = jax.random.split(k)
        w = jax.random.normal(kw, (hidden_dim, hidden_dim), jnp.float32)
        w = w / jnp.sqrt(jnp.float32(hidden_dim))
        b = 0.01 * jax.random.normal(kb, (1, hidden_dim), jnp.float32)
        return w, b

    n_dense = 3 * 2 + (2 * 2 if use_mult_lin else 0) + 2
    keys = list(jax.random.split(key, n_dense))

    def dense_pair():
        w1, b1 = dense(keys.pop(0))
        w2, b2 = dense(keys.pop(0))
        return (w1, b1, w2, b2)

    return {
        "emb": [dense_pair() for _ in range(3)],
        "mult": [dense_pair() for _ in range(2)] if use_mult_lin else [],
        "out": dense_pair(),
    }


# ----------------------------- forward -----------------------------------------

def two_fdis_forward(kemb, params, use_mult_lin=True):
    """kemb: (B, N, N, H) float32 -> (B, N, N, H) float32."""
    B, N, N2, H = kemb.shape
    assert N == N2

    # Row-packing factor: P = 128 // H logical rows per 128-lane vreg row
    # (falls back to P=1, i.e. the plain layout, when the shapes don't divide).
    P = 128 // H if (H < 128 and 128 % H == 0 and N % (128 // H) == 0) else 1
    PH, R, NN = P * H, (N * N) // P, N * N

    f32, bf16 = jnp.float32, jnp.bfloat16

    # bf16 activations in HBM (halves read bytes); lane-dense packed layout.
    kemb_bf = kemb.astype(bf16)
    kemb_p = kemb_bf.reshape(B, R, PH)                       # packed rows, 128 lanes
    kemb_t = jnp.swapaxes(kemb_bf, 1, 2).reshape(B, NN, H)   # (i<->k) transposed view

    eye_p = jnp.eye(P, dtype=f32)

    def pack_w(w):                                           # (H,H) -> blockdiag (PH,PH)
        return jnp.kron(eye_p, w).astype(bf16)

    def pack_b(b):                                           # (1,H) -> (1,PH)
        return jnp.tile(b.reshape(1, H), (1, P)).astype(f32)

    p_emb = params["emb"]
    p_mult = params["mult"] if use_mult_lin else []
    p_out = params["out"]
    n_mult = len(p_mult)

    # Packed dense layers, in kernel consumption order:
    #   [0,1] emb branch 0 (self_message), [2,3] emb branch 2 (kemb_1),
    #   [4 .. 4+2*n_mult) mult_lin residual blocks, last two: output_lin.
    layers = []
    for pair in [p_emb[0], p_emb[2]] + list(p_mult) + [p_out]:
        w1, b1, w2, b2 = pair
        layers += [(pack_w(w1), pack_b(b1)), (pack_w(w2), pack_b(b2))]
    w_pk = jnp.stack([w for w, _ in layers])                 # (NL, PH, PH) bf16
    b_pk = jnp.stack([b for _, b in layers])                 # (NL, 1, PH) f32
    NL = w_pk.shape[0]

    # emb branch 1 (kemb_0, the left matmul operand): plain first layer,
    # lane-tiled second layer (output replicated across the P lane groups).
    w0a_, b0a_, w0b_, b0b_ = p_emb[1]
    w0a = w0a_.astype(bf16)                                  # (H, H)
    b0a = b0a_.reshape(1, H).astype(f32)                     # (1, H)
    w0b = jnp.tile(w0b_, (1, P)).astype(bf16)                # (H, PH)
    b0b = jnp.tile(b0b_.reshape(1, H), (1, P)).astype(f32)   # (1, PH)

    kernel = _make_kernel(N, H, P, n_mult)

    # Raise the scoped-VMEM limit; conservative fallback also fits v7x (64 MiB).
    vmem_limit = 48 * 1024 * 1024
    try:
        cap = int(pltpu.get_tpu_info().vmem_capacity_bytes)
        vmem_limit = min(int(cap * 0.85), 112 * 1024 * 1024)
    except Exception:
        pass

    out = pl.pallas_call(
        kernel,
        out_shape=jax.ShapeDtypeStruct((B, R, PH), kemb.dtype),
        grid=(B,),
        in_specs=[
            pl.BlockSpec((None, R, PH), lambda b: (b, 0, 0)),   # packed kemb
            pl.BlockSpec((None, NN, H), lambda b: (b, 0, 0)),   # transposed kemb
            pl.BlockSpec((NL, PH, PH), lambda b: (0, 0, 0)),    # packed weights (resident)
            pl.BlockSpec((NL, 1, PH), lambda b: (0, 0, 0)),     # packed biases
            pl.BlockSpec((H, H), lambda b: (0, 0)),             # kemb_0 branch W1
            pl.BlockSpec((1, H), lambda b: (0, 0)),             # kemb_0 branch b1
            pl.BlockSpec((H, PH), lambda b: (0, 0)),            # kemb_0 branch W2 (lane-tiled)
            pl.BlockSpec((1, PH), lambda b: (0, 0)),            # kemb_0 branch b2 (lane-tiled)
        ],
        out_specs=pl.BlockSpec((None, R, PH), lambda b: (b, 0, 0)),
        scratch_shapes=[
            pltpu.VMEM((N, N, PH), jnp.float32),       # k0, staged k-major
            pltpu.VMEM((N, N // P, PH), jnp.float32),  # k1, staged k-major (packed over j)
            pltpu.VMEM((N, N // P, PH), jnp.float32),  # product accumulator
            pltpu.VMEM((R, PH), jnp.float32),          # packed multed
        ],
        compiler_params=pltpu.CompilerParams(
            dimension_semantics=("parallel",),
            vmem_limit_bytes=vmem_limit),
    )(kemb_p, kemb_t, w_pk, b_pk, w0a, b0a, w0b, b0b)

    return out.reshape(B, N, N, H)


# ----------------------------- pure-JAX reference -------------------------------

def two_fdis_reference(kemb, params, use_mult_lin=True):
    B, N, _, H = kemb.shape
    f32, bf16 = jnp.float32, jnp.bfloat16

    def dot(a, w):
        return jnp.dot(a.astype(bf16), w.astype(bf16), preferred_element_type=f32)

    def dense2(x, p):
        w1, b1, w2, b2 = p
        h = _silu(dot(x, w1) + b1)
        return _silu(dot(h, w2) + b2)

    x = kemb.reshape(B * N * N, H).astype(f32)
    self_msg = dense2(x, params["emb"][0])
    k0 = dense2(x, params["emb"][1]).reshape(B, N, N, H)
    k1 = dense2(x, params["emb"][2]).reshape(B, N, N, H)
    # out[b,i,j,h] = sum_k k0[b,i,k,h] * k1[b,k,j,h]
    multed = (k0[:, :, :, None, :] * k1[:, None, :, :, :]).sum(axis=2)
    z = multed.reshape(B * N * N, H)
    if use_mult_lin:
        for p in params["mult"]:
            z = z + dense2(z, p)
    zz = self_msg * z
    out = zz + dense2(zz, params["out"])
    return out.reshape(B, N, N, H)


# ----------------------------- main --------------------------------------------

if __name__ == "__main__":
    def run_check(B, N, H, use_mult_lin=True, tol=5e-2):
        key = jax.random.PRNGKey(0)
        kp, kx = jax.random.split(key)
        params = init_params(kp, H, use_mult_lin=use_mult_lin)
        kemb = jax.random.normal(kx, (B, N, N, H), jnp.float32)

        fwd = jax.jit(functools.partial(
            two_fdis_forward, params=params, use_mult_lin=use_mult_lin))
        out = fwd(kemb)
        jax.block_until_ready(out)

        ref = jax.jit(functools.partial(
            two_fdis_reference, params=params, use_mult_lin=use_mult_lin))(kemb)
        jax.block_until_ready(ref)

        assert out.shape == (B, N, N, H)
        assert out.dtype == jnp.float32
        assert bool(jnp.all(jnp.isfinite(out)))
        max_err = float(jnp.max(jnp.abs(out - ref)))
        assert jnp.allclose(out, ref, rtol=tol, atol=tol), (
            f"(B={B}, N={N}, H={H}) max abs err {max_err}")

    run_check(2, 8, 32)    # toy shape implied by the module
    run_check(1, 16, 64)   # larger N / H, exercises the P=2 packing path
    print("KERNEL_OK")
</pallas_src>

<mosaic_0001>
module attributes {stable_mosaic.version = 11 : i64} {
  func.func @kernel(%arg0: i32, %arg1: memref<1x16x128xbf16, #tpu.memory_space<vmem>>, %arg2: memref<1x64x32xbf16, #tpu.memory_space<vmem>>, %arg3: memref<10x128x128xbf16, #tpu.memory_space<vmem>>, %arg4: memref<10x1x128xf32, #tpu.memory_space<vmem>>, %arg5: memref<32x32xbf16, #tpu.memory_space<vmem>>, %arg6: memref<1x32xf32, #tpu.memory_space<vmem>>, %arg7: memref<32x128xbf16, #tpu.memory_space<vmem>>, %arg8: memref<1x128xf32, #tpu.memory_space<vmem>>, %arg9: memref<1x16x128xf32, #tpu.memory_space<vmem>>, %arg10: memref<8x8x128xf32, #tpu.memory_space<vmem>>, %arg11: memref<8x2x128xf32, #tpu.memory_space<vmem>>, %arg12: memref<8x2x128xf32, #tpu.memory_space<vmem>>, %arg13: memref<16x128xf32, #tpu.memory_space<vmem>>) attributes {dimension_semantics = [#tpu.dimension_semantics<parallel>], iteration_bounds = array<i64: 2>, scalar_prefetch = 0 : i64, scratch_operands = 4 : i64, tpu.core_type = #tpu.core_type<tc>, window_params = [{transform_indices = @transform_0, window_bounds = array<i64: 1, 16, 128>}, {transform_indices = @transform_1, window_bounds = array<i64: 1, 64, 32>}, {pipeline_mode = #tpu.pipeline_mode<synchronous>, transform_indices = @transform_2, window_bounds = array<i64: 10, 128, 128>}, {pipeline_mode = #tpu.pipeline_mode<synchronous>, transform_indices = @transform_3, window_bounds = array<i64: 10, 1, 128>}, {pipeline_mode = #tpu.pipeline_mode<synchronous>, transform_indices = @transform_4, window_bounds = array<i64: 32, 32>}, {pipeline_mode = #tpu.pipeline_mode<synchronous>, transform_indices = @transform_5, window_bounds = array<i64: 1, 32>}, {pipeline_mode = #tpu.pipeline_mode<synchronous>, transform_indices = @transform_6, window_bounds = array<i64: 32, 128>}, {pipeline_mode = #tpu.pipeline_mode<synchronous>, transform_indices = @transform_7, window_bounds = array<i64: 1, 128>}, {transform_indices = @transform_8, window_bounds = array<i64: 1, 16, 128>}]} {
    %c0 = arith.constant 0 : index
    %c0_0 = arith.constant 0 : index
    %c0_1 = arith.constant 0 : index
    %0 = vector.load %arg1[%c0, %c0_0, %c0_1] : memref<1x16x128xbf16, #tpu.memory_space<vmem>>, vector<1x16x128xbf16>
    %1 = vector.shape_cast %0 : vector<1x16x128xbf16> to vector<16x128xbf16>
    %c0_2 = arith.constant 0 : index
    %c0_3 = arith.constant 0 : index
    %c0_4 = arith.constant 0 : index
    %2 = vector.load %arg3[%c0_2, %c0_3, %c0_4] : memref<10x128x128xbf16, #tpu.memory_space<vmem>>, vector<1x128x128xbf16>
    %3 = vector.shape_cast %2 : vector<1x128x128xbf16> to vector<128x128xbf16>
    %cst = arith.constant dense<0.000000e+00> : vector<16x128xf32>
    %4 = tpu.matmul %1, %3, %cst {dimension_numbers = #tpu.dot_dimension_numbers<[1], [0], [0], [1], [0, 0, 1, 1], [], []>} : vector<16x128xbf16>, vector<128x128xbf16>, vector<16x128xf32> -> vector<16x128xf32>
    %c0_5 = arith.constant 0 : index
    %c0_6 = arith.constant 0 : index
    %c0_7 = arith.constant 0 : index
    %5 = vector.load %arg4[%c0_5, %c0_6, %c0_7] : memref<10x1x128xf32, #tpu.memory_space<vmem>>, vector<1x1x128xf32>
    %6 = vector.shape_cast %5 : vector<1x1x128xf32> to vector<1x128xf32>
    %7 = vector.broadcast %6 : vector<1x128xf32> to vector<16x128xf32>
    %8 = arith.addf %4, %7 : vector<16x128xf32>
    %9 = arith.negf %8 : vector<16x128xf32>
    %10 = math.exp %9 : vector<16x128xf32>
    %cst_8 = arith.constant 1.000000e+00 : f32
    %11 = vector.broadcast %cst_8 : f32 to vector<16x128xf32>
    %12 = arith.addf %11, %10 : vector<16x128xf32>
    %13 = arith.divf %11, %12 : vector<16x128xf32>
    %14 = arith.mulf %8, %13 : vector<16x128xf32>
    %15 = arith.truncf %14 : vector<16x128xf32> to vector<16x128xbf16>
    %c1 = arith.constant 1 : index
    %c0_9 = arith.constant 0 : index
    %c0_10 = arith.constant 0 : index
    %16 = vector.load %arg3[%c1, %c0_9, %c0_10] : memref<10x128x128xbf16, #tpu.memory_space<vmem>>, vector<1x128x128xbf16>
    %17 = vector.shape_cast %16 : vector<1x128x128xbf16> to vector<128x128xbf16>
    %cst_11 = arith.constant dense<0.000000e+00> : vector<16x128xf32>
    %18 = tpu.matmul %15, %17, %cst_11 {dimension_numbers = #tpu.dot_dimension_numbers<[1], [0], [0], [1], [0, 0, 1, 1], [], []>} : vector<16x128xbf16>, vector<128x128xbf16>, vector<16x128xf32> -> vector<16x128xf32>
    %c1_12 = arith.constant 1 : index
    %c0_13 = arith.constant 0 : index
    %c0_14 = arith.constant 0 : index
    %19 = vector.load %arg4[%c1_12, %c0_13, %c0_14] : memref<10x1x128xf32, #tpu.memory_space<vmem>>, vector<1x1x128xf32>
    %20 = vector.shape_cast %19 : vector<1x1x128xf32> to vector<1x128xf32>
    %21 = vector.broadcast %20 : vector<1x128xf32> to vector<16x128xf32>
    %22 = arith.addf %18, %21 : vector<16x128xf32>
    %23 = arith.negf %22 : vector<16x128xf32>
    %24 = math.exp %23 : vector<16x128xf32>
    %cst_15 = arith.constant 1.000000e+00 : f32
    %25 = vector.broadcast %cst_15 : f32 to vector<16x128xf32>
    %26 = arith.addf %25, %24 : vector<16x128xf32>
    %27 = arith.divf %25, %26 : vector<16x128xf32>
    %28 = arith.mulf %22, %27 : vector<16x128xf32>
    %c2 = arith.constant 2 : index
    %c0_16 = arith.constant 0 : index
    %c0_17 = arith.constant 0 : index
    %29 = vector.load %arg3[%c2, %c0_16, %c0_17] : memref<10x128x128xbf16, #tpu.memory_space<vmem>>, vector<1x128x128xbf16>
    %30 = vector.shape_cast %29 : vector<1x128x128xbf16> to vector<128x128xbf16>
    %cst_18 = arith.constant dense<0.000000e+00> : vector<16x128xf32>
    %31 = tpu.matmul %1, %30, %cst_18 {dimension_numbers = #tpu.dot_dimension_numbers<[1], [0], [0], [1], [0, 0, 1, 1], [], []>} : vector<16x128xbf16>, vector<128x128xbf16>, vector<16x128xf32> -> vector<16x128xf32>
    %c2_19 = arith.constant 2 : index
    %c0_20 = arith.constant 0 : index
    %c0_21 = arith.constant 0 : index
    %32 = vector.load %arg4[%c2_19, %c0_20, %c0_21] : memref<10x1x128xf32, #tpu.memory_space<vmem>>, vector<1x1x128xf32>
    %33 = vector.shape_cast %32 : vector<1x1x128xf32> to vector<1x128xf32>
    %34 = vector.broadcast %33 : vector<1x128xf32> to vector<16x128xf32>
    %35 = arith.addf %31, %34 : vector<16x128xf32>
    %36 = arith.negf %35 : vector<16x128xf32>
    %37 = math.exp %36 : vector<16x128xf32>
    %cst_22 = arith.constant 1.000000e+00 : f32
    %38 = vector.broadcast %cst_22 : f32 to vector<16x128xf32>
    %39 = arith.addf %38, %37 : vector<16x128xf32>
    %40 = arith.divf %38, %39 : vector<16x128xf32>
    %41 = arith.mulf %35, %40 : vector<16x128xf32>
    %42 = arith.truncf %41 : vector<16x128xf32> to vector<16x128xbf16>
    %c3 = arith.constant 3 : index
    %c0_23 = arith.constant 0 : index
    %c0_24 = arith.constant 0 : index
    %43 = vector.load %arg3[%c3, %c0_23, %c0_24] : memref<10x128x128xbf16, #tpu.memory_space<vmem>>, vector<1x128x128xbf16>
    %44 = vector.shape_cast %43 : vector<1x128x128xbf16> to vector<128x128xbf16>
    %cst_25 = arith.constant dense<0.000000e+00> : vector<16x128xf32>
    %45 = tpu.matmul %42, %44, %cst_25 {dimension_numbers = #tpu.dot_dimension_numbers<[1], [0], [0], [1], [0, 0, 1, 1], [], []>} : vector<16x128xbf16>, vector<128x128xbf16>, vector<16x128xf32> -> vector<16x128xf32>
    %c3_26 = arith.constant 3 : index
    %c0_27 = arith.constant 0 : index
    %c0_28 = arith.constant 0 : index
    %46 = vector.load %arg4[%c3_26, %c0_27, %c0_28] : memref<10x1x128xf32, #tpu.memory_space<vmem>>, vector<1x1x128xf32>
    %47 = vector.shape_cast %46 : vector<1x1x128xf32> to vector<1x128xf32>
    %48 = vector.broadcast %47 : vector<1x128xf32> to vector<16x128xf32>
    %49 = arith.addf %45, %48 : vector<16x128xf32>
    %50 = arith.negf %49 : vector<16x128xf32>
    %51 = math.exp %50 : vector<16x128xf32>
    %cst_29 = arith.constant 1.000000e+00 : f32
    %52 = vector.broadcast %cst_29 : f32 to vector<16x128xf32>
    %53 = arith.addf %52, %51 : vector<16x128xf32>
    %54 = arith.divf %52, %53 : vector<16x128xf32>
    %55 = arith.mulf %49, %54 : vector<16x128xf32>
    %c0_30 = arith.constant 0 : index
    %c0_31 = arith.constant 0 : index
    %c0_32 = arith.constant 0 : index
    %56 = vector.load %arg2[%c0_30, %c0_31, %c0_32] : memref<1x64x32xbf16, #tpu.memory_space<vmem>>, vector<1x64x32xbf16>
    %57 = vector.shape_cast %56 : vector<1x64x32xbf16> to vector<64x32xbf16>
    %c0_33 = arith.constant 0 : index
    %c0_34 = arith.constant 0 : index
    %58 = vector.load %arg5[%c0_33, %c0_34] : memref<32x32xbf16, #tpu.memory_space<vmem>>, vector<32x32xbf16>
    %cst_35 = arith.constant dense<0.000000e+00> : vector<64x32xf32>
    %59 = tpu.matmul %57, %58, %cst_35 {dimension_numbers = #tpu.dot_dimension_numbers<[1], [0], [0], [1], [0, 0, 1, 1], [], []>} : vector<64x32xbf16>, vector<32x32xbf16>, vector<64x32xf32> -> vector<64x32xf32>
    %c0_36 = arith.constant 0 : index
    %c0_37 = arith.constant 0 : index
    %60 = vector.load %arg6[%c0_36, %c0_37] : memref<1x32xf32, #tpu.memory_space<vmem>>, vector<1x32xf32>
    %61 = vector.broadcast %60 : vector<1x32xf32> to vector<64x32xf32>
    %62 = arith.addf %59, %61 : vector<64x32xf32>
    %63 = arith.negf %62 : vector<64x32xf32>
    %64 = math.exp %63 : vector<64x32xf32>
    %cst_38 = arith.constant 1.000000e+00 : f32
    %65 = vector.broadcast %cst_38 : f32 to vector<64x32xf32>
    %66 = arith.addf %65, %64 : vector<64x32xf32>
    %67 = arith.divf %65, %66 : vector<64x32xf32>
    %68 = arith.mulf %62, %67 : vector<64x32xf32>
    %69 = arith.truncf %68 : vector<64x32xf32> to vector<64x32xbf16>
    %c0_39 = arith.constant 0 : index
    %c0_40 = arith.constant 0 : index
    %70 = vector.load %arg7[%c0_39, %c0_40] : memref<32x128xbf16, #tpu.memory_space<vmem>>, vector<32x128xbf16>
    %cst_41 = arith.constant dense<0.000000e+00> : vector<64x128xf32>
    %71 = tpu.matmul %69, %70, %cst_41 {dimension_numbers = #tpu.dot_dimension_numbers<[1], [0], [0], [1], [0, 0, 1, 1], [], []>} : vector<64x32xbf16>, vector<32x128xbf16>, vector<64x128xf32> -> vector<64x128xf32>
    %c0_42 = arith.constant 0 : index
    %c0_43 = arith.constant 0 : index
    %72 = vector.load %arg8[%c0_42, %c0_43] : memref<1x128xf32, #tpu.memory_space<vmem>>, vector<1x128xf32>
    %73 = vector.broadcast %72 : vector<1x128xf32> to vector<64x128xf32>
    %74 = arith.addf %71, %73 : vector<64x128xf32>
    %75 = arith.negf %74 : vector<64x128xf32>
    %76 = math.exp %75 : vector<64x128xf32>
    %cst_44 = arith.constant 1.000000e+00 : f32
    %77 = vector.broadcast %cst_44 : f32 to vector<64x128xf32>
    %78 = arith.addf %77, %76 : vector<64x128xf32>
    %79 = arith.divf %77, %78 : vector<64x128xf32>
    %80 = arith.mulf %74, %79 : vector<64x128xf32>
    %81 = vector.extract_strided_slice %80 {offsets = [0, 0], sizes = [8, 128], strides = [1, 1]} : vector<64x128xf32> to vector<8x128xf32>
    %c0_45 = arith.constant 0 : index
    %c0_46 = arith.constant 0 : index
    %c0_47 = arith.constant 0 : index
    %82 = vector.load %arg10[%c0_45, %c0_46, %c0_47] : memref<8x8x128xf32, #tpu.memory_space<vmem>>, vector<1x8x128xf32>
    %83 = vector.shape_cast %82 : vector<1x8x128xf32> to vector<8x128xf32>
    %84 = vector.shape_cast %81 : vector<8x128xf32> to vector<1x8x128xf32>
    tpu.vector_store %arg10[%c0_45, %c0_46, %c0_47], %84 {strides = array<i32>} : memref<8x8x128xf32, #tpu.memory_space<vmem>>, vector<1x8x128xf32>,
    %85 = vector.extract_strided_slice %55 {offsets = [0, 0], sizes = [2, 128], strides = [1, 1]} : vector<16x128xf32> to vector<2x128xf32>
    %c0_48 = arith.constant 0 : index
    %c0_49 = arith.constant 0 : index
    %c0_50 = arith.constant 0 : index
    %86 = vector.load %arg11[%c0_48, %c0_49, %c0_50] : memref<8x2x128xf32, #tpu.memory_space<vmem>>, vector<1x2x128xf32>
    %87 = vector.shape_cast %86 : vector<1x2x128xf32> to vector<2x128xf32>
    %88 = vector.shape_cast %85 : vector<2x128xf32> to vector<1x2x128xf32>
    tpu.vector_store %arg11[%c0_48, %c0_49, %c0_50], %88 {strides = array<i32>} : memref<8x2x128xf32, #tpu.memory_space<vmem>>, vector<1x2x128xf32>,
    %89 = vector.extract_strided_slice %80 {offsets = [8, 0], sizes = [8, 128], strides = [1, 1]} : vector<64x128xf32> to vector<8x128xf32>
    %c1_51 = arith.constant 1 : index
    %c0_52 = arith.constant 0 : index
    %c0_53 = arith.constant 0 : index
    %90 = vector.load %arg10[%c1_51, %c0_52, %c0_53] : memref<8x8x128xf32, #tpu.memory_space<vmem>>, vector<1x8x128xf32>
    %91 = vector.shape_cast %90 : vector<1x8x128xf32> to vector<8x128xf32>
    %92 = vector.shape_cast %89 : vector<8x128xf32> to vector<1x8x128xf32>
    tpu.vector_store %arg10[%c1_51, %c0_52, %c0_53], %92 {strides = array<i32>} : memref<8x8x128xf32, #tpu.memory_space<vmem>>, vector<1x8x128xf32>,
    %93 = vector.extract_strided_slice %55 {offsets = [2, 0], sizes = [2, 128], strides = [1, 1]} : vector<16x128xf32> to vector<2x128xf32>
    %c1_54 = arith.constant 1 : index
    %c0_55 = arith.constant 0 : index
    %c0_56 = arith.constant 0 : index
    %94 = vector.load %arg11[%c1_54, %c0_55, %c0_56] : memref<8x2x128xf32, #tpu.memory_space<vmem>>, vector<1x2x128xf32>
    %95 = vector.shape_cast %94 : vector<1x2x128xf32> to vector<2x128xf32>
    %96 = vector.shape_cast %93 : vector<2x128xf32> to vector<1x2x128xf32>
    tpu.vector_store %arg11[%c1_54, %c0_55, %c0_56], %96 {strides = array<i32>} : memref<8x2x128xf32, #tpu.memory_space<vmem>>, vector<1x2x128xf32>,
    %97 = vector.extract_strided_slice %80 {offsets = [16, 0], sizes = [8, 128], strides = [1, 1]} : vector<64x128xf32> to vector<8x128xf32>
    %c2_57 = arith.constant 2 : index
    %c0_58 = arith.constant 0 : index
    %c0_59 = arith.constant 0 : index
    %98 = vector.load %arg10[%c2_57, %c0_58, %c0_59] : memref<8x8x128xf32, #tpu.memory_space<vmem>>, vector<1x8x128xf32>
    %99 = vector.shape_cast %98 : vector<1x8x128xf32> to vector<8x128xf32>
    %100 = vector.shape_cast %97 : vector<8x128xf32> to vector<1x8x128xf32>
    tpu.vector_store %arg10[%c2_57, %c0_58, %c0_59], %100 {strides = array<i32>} : memref<8x8x128xf32, #tpu.memory_space<vmem>>, vector<1x8x128xf32>,
    %101 = vector.extract_strided_slice %55 {offsets = [4, 0], sizes = [2, 128], strides = [1, 1]} : vector<16x128xf32> to vector<2x128xf32>
    %c2_60 = arith.constant 2 : index
    %c0_61 = arith.constant 0 : index
    %c0_62 = arith.constant 0 : index
    %102 = vector.load %arg11[%c2_60, %c0_61, %c0_62] : memref<8x2x128xf32, #tpu.memory_space<vmem>>, vector<1x2x128xf32>
    %103 = vector.shape_cast %102 : vector<1x2x128xf32> to vector<2x128xf32>
    %104 = vector.shape_cast %101 : vector<2x128xf32> to vector<1x2x128xf32>
    tpu.vector_store %arg11[%c2_60, %c0_61, %c0_62], %104 {strides = array<i32>} : memref<8x2x128xf32, #tpu.memory_space<vmem>>, vector<1x2x128xf32>,
    %105 = vector.extract_strided_slice %80 {offsets = [24, 0], sizes = [8, 128], strides = [1, 1]} : vector<64x128xf32> to vector<8x128xf32>
    %c3_63 = arith.constant 3 : index
    %c0_64 = arith.constant 0 : index
    %c0_65 = arith.constant 0 : index
    %106 = vector.load %arg10[%c3_63, %c0_64, %c0_65] : memref<8x8x128xf32, #tpu.memory_space<vmem>>, vector<1x8x128xf32>
    %107 = vector.shape_cast %106 : vector<1x8x128xf32> to vector<8x128xf32>
    %108 = vector.shape_cast %105 : vector<8x128xf32> to vector<1x8x128xf32>
    tpu.vector_store %arg10[%c3_63, %c0_64, %c0_65], %108 {strides = array<i32>} : memref<8x8x128xf32, #tpu.memory_space<vmem>>, vector<1x8x128xf32>,
    %109 = vector.extract_strided_slice %55 {offsets = [6, 0], sizes = [2, 128], strides = [1, 1]} : vector<16x128xf32> to vector<2x128xf32>
    %c3_66 = arith.constant 3 : index
    %c0_67 = arith.constant 0 : index
    %c0_68 = arith.constant 0 : index
    %110 = vector.load %arg11[%c3_66, %c0_67, %c0_68] : memref<8x2x128xf32, #tpu.memory_space<vmem>>, vector<1x2x128xf32>
    %111 = vector.shape_cast %110 : vector<1x2x128xf32> to vector<2x128xf32>
    %112 = vector.shape_cast %109 : vector<2x128xf32> to vector<1x2x128xf32>
    tpu.vector_store %arg11[%c3_66, %c0_67, %c0_68], %112 {strides = array<i32>} : memref<8x2x128xf32, #tpu.memory_space<vmem>>, vector<1x2x128xf32>,
    %113 = vector.extract_strided_slice %80 {offsets = [32, 0], sizes = [8, 128], strides = [1, 1]} : vector<64x128xf32> to vector<8x128xf32>
    %c4 = arith.constant 4 : index
    %c0_69 = arith.constant 0 : index
    %c0_70 = arith.constant 0 : index
    %114 = vector.load %arg10[%c4, %c0_69, %c0_70] : memref<8x8x128xf32, #tpu.memory_space<vmem>>, vector<1x8x128xf32>
    %115 = vector.shape_cast %114 : vector<1x8x128xf32> to vector<8x128xf32>
    %116 = vector.shape_cast %113 : vector<8x128xf32> to vector<1x8x128xf32>
    tpu.vector_store %arg10[%c4, %c0_69, %c0_70], %116 {strides = array<i32>} : memref<8x8x128xf32, #tpu.memory_space<vmem>>, vector<1x8x128xf32>,
    %117 = vector.extract_strided_slice %55 {offsets = [8, 0], sizes = [2, 128], strides = [1, 1]} : vector<16x128xf32> to vector<2x128xf32>
    %c4_71 = arith.constant 4 : index
    %c0_72 = arith.constant 0 : index
    %c0_73 = arith.constant 0 : index
    %118 = vector.load %arg11[%c4_71, %c0_72, %c0_73] : memref<8x2x128xf32, #tpu.memory_space<vmem>>, vector<1x2x128xf32>
    %119 = vector.shape_cast %118 : vector<1x2x128xf32> to vector<2x128xf32>
    %120 = vector.shape_cast %117 : vector<2x128xf32> to vector<1x2x128xf32>
    tpu.vector_store %arg11[%c4_71, %c0_72, %c0_73], %120 {strides = array<i32>} : memref<8x2x128xf32, #tpu.memory_space<vmem>>, vector<1x2x128xf32>,
    %121 = vector.extract_strided_slice %80 {offsets = [40, 0], sizes = [8, 128], strides = [1, 1]} : vector<64x128xf32> to vector<8x128xf32>
    %c5 = arith.constant 5 : index
    %c0_74 = arith.constant 0 : index
    %c0_75 = arith.constant 0 : index
    %122 = vector.load %arg10[%c5, %c0_74, %c0_75] : memref<8x8x128xf32, #tpu.memory_space<vmem>>, vector<1x8x128xf32>
    %123 = vector.shape_cast %122 : vector<1x8x128xf32> to vector<8x128xf32>
    %124 = vector.shape_cast %121 : vector<8x128xf32> to vector<1x8x128xf32>
    tpu.vector_store %arg10[%c5, %c0_74, %c0_75], %124 {strides = array<i32>} : memref<8x8x128xf32, #tpu.memory_space<vmem>>, vector<1x8x128xf32>,
    %125 = vector.extract_strided_slice %55 {offsets = [10, 0], sizes = [2, 128], strides = [1, 1]} : vector<16x128xf32> to vector<2x128xf32>
    %c5_76 = arith.constant 5 : index
    %c0_77 = arith.constant 0 : index
    %c0_78 = arith.constant 0 : index
    %126 = vector.load %arg11[%c5_76, %c0_77, %c0_78] : memref<8x2x128xf32, #tpu.memory_space<vmem>>, vector<1x2x128xf32>
    %127 = vector.shape_cast %126 : vector<1x2x128xf32> to vector<2x128xf32>
    %128 = vector.shape_cast %125 : vector<2x128xf32> to vector<1x2x128xf32>
    tpu.vector_store %arg11[%c5_76, %c0_77, %c0_78], %128 {strides = array<i32>} : memref<8x2x128xf32, #tpu.memory_space<vmem>>, vector<1x2x128xf32>,
    %129 = vector.extract_strided_slice %80 {offsets = [48, 0], sizes = [8, 128], strides = [1, 1]} : vector<64x128xf32> to vector<8x128xf32>
    %c6 = arith.constant 6 : index
    %c0_79 = arith.constant 0 : index
    %c0_80 = arith.constant 0 : index
    %130 = vector.load %arg10[%c6, %c0_79, %c0_80] : memref<8x8x128xf32, #tpu.memory_space<vmem>>, vector<1x8x128xf32>
    %131 = vector.shape_cast %130 : vector<1x8x128xf32> to vector<8x128xf32>
    %132 = vector.shape_cast %129 : vector<8x128xf32> to vector<1x8x128xf32>
    tpu.vector_store %arg10[%c6, %c0_79, %c0_80], %132 {strides = array<i32>} : memref<8x8x128xf32, #tpu.memory_space<vmem>>, vector<1x8x128xf32>,
    %133 = vector.extract_strided_slice %55 {offsets = [12, 0], sizes = [2, 128], strides = [1, 1]} : vector<16x128xf32> to vector<2x128xf32>
    %c6_81 = arith.constant 6 : index
    %c0_82 = arith.constant 0 : index
    %c0_83 = arith.constant 0 : index
    %134 = vector.load %arg11[%c6_81, %c0_82, %c0_83] : memref<8x2x128xf32, #tpu.memory_space<vmem>>, vector<1x2x128xf32>
    %135 = vector.shape_cast %134 : vector<1x2x128xf32> to vector<2x128xf32>
    %136 = vector.shape_cast %133 : vector<2x128xf32> to vector<1x2x128xf32>
    tpu.vector_store %arg11[%c6_81, %c0_82, %c0_83], %136 {strides = array<i32>} : memref<8x2x128xf32, #tpu.memory_space<vmem>>, vector<1x2x128xf32>,
    %137 = vector.extract_strided_slice %80 {offsets = [56, 0], sizes = [8, 128], strides = [1, 1]} : vector<64x128xf32> to vector<8x128xf32>
    %c7 = arith.constant 7 : index
    %c0_84 = arith.constant 0 : index
    %c0_85 = arith.constant 0 : index
    %138 = vector.load %arg10[%c7, %c0_84, %c0_85] : memref<8x8x128xf32, #tpu.memory_space<vmem>>, vector<1x8x128xf32>
    %139 = vector.shape_cast %138 : vector<1x8x128xf32> to vector<8x128xf32>
    %140 = vector.shape_cast %137 : vector<8x128xf32> to vector<1x8x128xf32>
    tpu.vector_store %arg10[%c7, %c0_84, %c0_85], %140 {strides = array<i32>} : memref<8x8x128xf32, #tpu.memory_space<vmem>>, vector<1x8x128xf32>,
    %141 = vector.extract_strided_slice %55 {offsets = [14, 0], sizes = [2, 128], strides = [1, 1]} : vector<16x128xf32> to vector<2x128xf32>
    %c7_86 = arith.constant 7 : index
    %c0_87 = arith.constant 0 : index
    %c0_88 = arith.constant 0 : index
    %142 = vector.load %arg11[%c7_86, %c0_87, %c0_88] : memref<8x2x128xf32, #tpu.memory_space<vmem>>, vector<1x2x128xf32>
    %143 = vector.shape_cast %142 : vector<1x2x128xf32> to vector<2x128xf32>
    %144 = vector.shape_cast %141 : vector<2x128xf32> to vector<1x2x128xf32>
    tpu.vector_store %arg11[%c7_86, %c0_87, %c0_88], %144 {strides = array<i32>} : memref<8x2x128xf32, #tpu.memory_space<vmem>>, vector<1x2x128xf32>,
    %cst_89 = arith.constant 0.000000e+00 : f32
    %145 = vector.broadcast %cst_89 : f32 to vector<8x2x128xf32>
    %c0_90 = arith.constant 0 : index
    %c0_91 = arith.constant 0 : index
    %c0_92 = arith.constant 0 : index
    %146 = vector.load %arg12[%c0_90, %c0_91, %c0_92] : memref<8x2x128xf32, #tpu.memory_space<vmem>>, vector<8x2x128xf32>
    tpu.vector_store %arg12[%c0_90, %c0_91, %c0_92], %145 {strides = array<i32>} : memref<8x2x128xf32, #tpu.memory_space<vmem>>, vector<8x2x128xf32>,
    %c0_i32 = arith.constant 0 : i32
    %147 = arith.index_cast %c0_i32 : i32 to index
    %c0_93 = arith.constant 0 : index
    %c0_94 = arith.constant 0 : index
    %148 = vector.load %arg10[%147, %c0_93, %c0_94] : memref<8x8x128xf32, #tpu.memory_space<vmem>>, vector<1x8x128xf32>
    %149 = vector.shape_cast %148 : vector<1x8x128xf32> to vector<8x128xf32>
    %150 = arith.index_cast %c0_i32 : i32 to index
    %c0_95 = arith.constant 0 : index
    %c0_96 = arith.constant 0 : index
    %151 = vector.load %arg11[%150, %c0_95, %c0_96] : memref<8x2x128xf32, #tpu.memory_space<vmem>>, vector<1x2x128xf32>
    %152 = vector.shape_cast %151 : vector<1x2x128xf32> to vector<2x128xf32>
    %c0_97 = arith.constant 0 : index
    %c0_98 = arith.constant 0 : index
    %c0_99 = arith.constant 0 : index
    %153 = vector.load %arg12[%c0_97, %c0_98, %c0_99] : memref<8x2x128xf32, #tpu.memory_space<vmem>>, vector<8x2x128xf32>
    %154 = vector.shape_cast %149 : vector<8x128xf32> to vector<8x1x128xf32>
    %155 = vector.shape_cast %152 : vector<2x128xf32> to vector<1x2x128xf32>
    %156 = vector.broadcast %154 : vector<8x1x128xf32> to vector<8x2x128xf32>
    %157 = vector.broadcast %155 : vector<1x2x128xf32> to vector<8x2x128xf32>
    %158 = arith.mulf %156, %157 : vector<8x2x128xf32>
    %159 = arith.addf %153, %158 : vector<8x2x128xf32>
    %c0_100 = arith.constant 0 : index
    %c0_101 = arith.constant 0 : index
    %c0_102 = arith.constant 0 : index
    %160 = vector.load %arg12[%c0_100, %c0_101, %c0_102] : memref<8x2x128xf32, #tpu.memory_space<vmem>>, vector<8x2x128xf32>
    tpu.vector_store %arg12[%c0_100, %c0_101, %c0_102], %159 {strides = array<i32>} : memref<8x2x128xf32, #tpu.memory_space<vmem>>, vector<8x2x128xf32>,
    %c1_i32 = arith.constant 1 : i32
    %161 = arith.index_cast %c1_i32 : i32 to index
    %c0_103 = arith.constant 0 : index
    %c0_104 = arith.constant 0 : index
    %162 = vector.load %arg10[%161, %c0_103, %c0_104] : memref<8x8x128xf32, #tpu.memory_space<vmem>>, vector<1x8x128xf32>
    %163 = vector.shape_cast %162 : vector<1x8x128xf32> to vector<8x128xf32>
    %164 = arith.index_cast %c1_i32 : i32 to index
    %c0_105 = arith.constant 0 : index
    %c0_106 = arith.constant 0 : index
    %165 = vector.load %arg11[%164, %c0_105, %c0_106] : memref<8x2x128xf32, #tpu.memory_space<vmem>>, vector<1x2x128xf32>
    %166 = vector.shape_cast %165 : vector<1x2x128xf32> to vector<2x128xf32>
    %c0_107 = arith.constant 0 : index
    %c0_108 = arith.constant 0 : index
    %c0_109 = arith.constant 0 : index
    %167 = vector.load %arg12[%c0_107, %c0_108, %c0_109] : memref<8x2x128xf32, #tpu.memory_space<vmem>>, vector<8x2x128xf32>
    %168 = vector.shape_cast %163 : vector<8x128xf32> to vector<8x1x128xf32>
    %169 = vector.shape_cast %166 : vector<2x128xf32> to vector<1x2x128xf32>
    %170 = vector.broadcast %168 : vector<8x1x128xf32> to vector<8x2x128xf32>
    %171 = vector.broadcast %169 : vector<1x2x128xf32> to vector<8x2x128xf32>
    %172 = arith.mulf %170, %171 : vector<8x2x128xf32>
    %173 = arith.addf %167, %172 : vector<8x2x128xf32>
    %c0_110 = arith.constant 0 : index
    %c0_111 = arith.constant 0 : index
    %c0_112 = arith.constant 0 : index
    %174 = vector.load %arg12[%c0_110, %c0_111, %c0_112] : memref<8x2x128xf32, #tpu.memory_space<vmem>>, vector<8x2x128xf32>
    tpu.vector_store %arg12[%c0_110, %c0_111, %c0_112], %173 {strides = array<i32>} : memref<8x2x128xf32, #tpu.memory_space<vmem>>, vector<8x2x128xf32>,
    %c2_i32 = arith.constant 2 : i32
    %175 = arith.index_cast %c2_i32 : i32 to index
    %c0_113 = arith.constant 0 : index
    %c0_114 = arith.constant 0 : index
    %176 = vector.load %arg10[%175, %c0_113, %c0_114] : memref<8x8x128xf32, #tpu.memory_space<vmem>>, vector<1x8x128xf32>
    %177 = vector.shape_cast %176 : vector<1x8x128xf32> to vector<8x128xf32>
    %178 = arith.index_cast %c2_i32 : i32 to index
    %c0_115 = arith.constant 0 : index
    %c0_116 = arith.constant 0 : index
    %179 = vector.load %arg11[%178, %c0_115, %c0_116] : memref<8x2x128xf32, #tpu.memory_space<vmem>>, vector<1x2x128xf32>
    %180 = vector.shape_cast %179 : vector<1x2x128xf32> to vector<2x128xf32>
    %c0_117 = arith.constant 0 : index
    %c0_118 = arith.constant 0 : index
    %c0_119 = arith.constant 0 : index
    %181 = vector.load %arg12[%c0_117, %c0_118, %c0_119] : memref<8x2x128xf32, #tpu.memory_space<vmem>>, vector<8x2x128xf32>
    %182 = vector.shape_cast %177 : vector<8x128xf32> to vector<8x1x128xf32>
    %183 = vector.shape_cast %180 : vector<2x128xf32> to vector<1x2x128xf32>
    %184 = vector.broadcast %182 : vector<8x1x128xf32> to vector<8x2x128xf32>
    %185 = vector.broadcast %183 : vector<1x2x128xf32> to vector<8x2x128xf32>
    %186 = arith.mulf %184, %185 : vector<8x2x128xf32>
    %187 = arith.addf %181, %186 : vector<8x2x128xf32>
    %c0_120 = arith.constant 0 : index
    %c0_121 = arith.constant 0 : index
    %c0_122 = arith.constant 0 : index
    %188 = vector.load %arg12[%c0_120, %c0_121, %c0_122] : memref<8x2x128xf32, #tpu.memory_space<vmem>>, vector<8x2x128xf32>
    tpu.vector_store %arg12[%c0_120, %c0_121, %c0_122], %187 {strides = array<i32>} : memref<8x2x128xf32, #tpu.memory_space<vmem>>, vector<8x2x128xf32>,
    %c3_i32 = arith.constant 3 : i32
    %189 = arith.index_cast %c3_i32 : i32 to index
    %c0_123 = arith.constant 0 : index
    %c0_124 = arith.constant 0 : index
    %190 = vector.load %arg10[%189, %c0_123, %c0_124] : memref<8x8x128xf32, #tpu.memory_space<vmem>>, vector<1x8x128xf32>
    %191 = vector.shape_cast %190 : vector<1x8x128xf32> to vector<8x128xf32>
    %192 = arith.index_cast %c3_i32 : i32 to index
    %c0_125 = arith.constant 0 : index
    %c0_126 = arith.constant 0 : index
    %193 = vector.load %arg11[%192, %c0_125, %c0_126] : memref<8x2x128xf32, #tpu.memory_space<vmem>>, vector<1x2x128xf32>
    %194 = vector.shape_cast %193 : vector<1x2x128xf32> to vector<2x128xf32>
    %c0_127 = arith.constant 0 : index
    %c0_128 = arith.constant 0 : index
    %c0_129 = arith.constant 0 : index
    %195 = vector.load %arg12[%c0_127, %c0_128, %c0_129] : memref<8x2x128xf32, #tpu.memory_space<vmem>>, vector<8x2x128xf32>
    %196 = vector.shape_cast %191 : vector<8x128xf32> to vector<8x1x128xf32>
    %197 = vector.shape_cast %194 : vector<2x128xf32> to vector<1x2x128xf32>
    %198 = vector.broadcast %196 : vector<8x1x128xf32> to vector<8x2x128xf32>
    %199 = vector.broadcast %197 : vector<1x2x128xf32> to vector<8x2x128xf32>
    %200 = arith.mulf %198, %199 : vector<8x2x128xf32>
    %201 = arith.addf %195, %200 : vector<8x2x128xf32>
    %c0_130 = arith.constant 0 : index
    %c0_131 = arith.constant 0 : index
    %c0_132 = arith.constant 0 : index
    %202 = vector.load %arg12[%c0_130, %c0_131, %c0_132] : memref<8x2x128xf32, #tpu.memory_space<vmem>>, vector<8x2x128xf32>
    tpu.vector_store %arg12[%c0_130, %c0_131, %c0_132], %201 {strides = array<i32>} : memref<8x2x128xf32, #tpu.memory_space<vmem>>, vector<8x2x128xf32>,
    %c4_i32 = arith.constant 4 : i32
    %203 = arith.index_cast %c4_i32 : i32 to index
    %c0_133 = arith.constant 0 : index
    %c0_134 = arith.constant 0 : index
    %204 = vector.load %arg10[%203, %c0_133, %c0_134] : memref<8x8x128xf32, #tpu.memory_space<vmem>>, vector<1x8x128xf32>
    %205 = vector.shape_cast %204 : vector<1x8x128xf32> to vector<8x128xf32>
    %206 = arith.index_cast %c4_i32 : i32 to index
    %c0_135 = arith.constant 0 : index
    %c0_136 = arith.constant 0 : index
    %207 = vector.load %arg11[%206, %c0_135, %c0_136] : memref<8x2x128xf32, #tpu.memory_space<vmem>>, vector<1x2x128xf32>
    %208 = vector.shape_cast %207 : vector<1x2x128xf32> to vector<2x128xf32>
    %c0_137 = arith.constant 0 : index
    %c0_138 = arith.constant 0 : index
    %c0_139 = arith.constant 0 : index
    %209 = vector.load %arg12[%c0_137, %c0_138, %c0_139] : memref<8x2x128xf32, #tpu.memory_space<vmem>>, vector<8x2x128xf32>
    %210 = vector.shape_cast %205 : vector<8x128xf32> to vector<8x1x128xf32>
    %211 = vector.shape_cast %208 : vector<2x128xf32> to vector<1x2x128xf32>
    %212 = vector.broadcast %210 : vector<8x1x128xf32> to vector<8x2x128xf32>
    %213 = vector.broadcast %211 : vector<1x2x128xf32> to vector<8x2x128xf32>
    %214 = arith.mulf %212, %213 : vector<8x2x128xf32>
    %215 = arith.addf %209, %214 : vector<8x2x128xf32>
    %c0_140 = arith.constant 0 : index
    %c0_141 = arith.constant 0 : index
    %c0_142 = arith.constant 0 : index
    %216 = vector.load %arg12[%c0_140, %c0_141, %c0_142] : memref<8x2x128xf32, #tpu.memory_space<vmem>>, vector<8x2x128xf32>
    tpu.vector_store %arg12[%c0_140, %c0_141, %c0_142], %215 {strides = array<i32>} : memref<8x2x128xf32, #tpu.memory_space<vmem>>, vector<8x2x128xf32>,
    %c5_i32 = arith.constant 5 : i32
    %217 = arith.index_cast %c5_i32 : i32 to index
    %c0_143 = arith.constant 0 : index
    %c0_144 = arith.constant 0 : index
    %218 = vector.load %arg10[%217, %c0_143, %c0_144] : memref<8x8x128xf32, #tpu.memory_space<vmem>>, vector<1x8x128xf32>
    %219 = vector.shape_cast %218 : vector<1x8x128xf32> to vector<8x128xf32>
    %220 = arith.index_cast %c5_i32 : i32 to index
    %c0_145 = arith.constant 0 : index
    %c0_146 = arith.constant 0 : index
    %221 = vector.load %arg11[%220, %c0_145, %c0_146] : memref<8x2x128xf32, #tpu.memory_space<vmem>>, vector<1x2x128xf32>
    %222 = vector.shape_cast %221 : vector<1x2x128xf32> to vector<2x128xf32>
    %c0_147 = arith.constant 0 : index
    %c0_148 = arith.constant 0 : index
    %c0_149 = arith.constant 0 : index
    %223 = vector.load %arg12[%c0_147, %c0_148, %c0_149] : memref<8x2x128xf32, #tpu.memory_space<vmem>>, vector<8x2x128xf32>
    %224 = vector.shape_cast %219 : vector<8x128xf32> to vector<8x1x128xf32>
    %225 = vector.shape_cast %222 : vector<2x128xf32> to vector<1x2x128xf32>
    %226 = vector.broadcast %224 : vector<8x1x128xf32> to vector<8x2x128xf32>
    %227 = vector.broadcast %225 : vector<1x2x128xf32> to vector<8x2x128xf32>
    %228 = arith.mulf %226, %227 : vector<8x2x128xf32>
    %229 = arith.addf %223, %228 : vector<8x2x128xf32>
    %c0_150 = arith.constant 0 : index
    %c0_151 = arith.constant 0 : index
    %c0_152 = arith.constant 0 : index
    %230 = vector.load %arg12[%c0_150, %c0_151, %c0_152] : memref<8x2x128xf32, #tpu.memory_space<vmem>>, vector<8x2x128xf32>
    tpu.vector_store %arg12[%c0_150, %c0_151, %c0_152], %229 {strides = array<i32>} : memref<8x2x128xf32, #tpu.memory_space<vmem>>, vector<8x2x128xf32>,
    %c6_i32 = arith.constant 6 : i32
    %231 = arith.index_cast %c6_i32 : i32 to index
    %c0_153 = arith.constant 0 : index
    %c0_154 = arith.constant 0 : index
    %232 = vector.load %arg10[%231, %c0_153, %c0_154] : memref<8x8x128xf32, #tpu.memory_space<vmem>>, vector<1x8x128xf32>
    %233 = vector.shape_cast %232 : vector<1x8x128xf32> to vector<8x128xf32>
    %234 = arith.index_cast %c6_i32 : i32 to index
    %c0_155 = arith.constant 0 : index
    %c0_156 = arith.constant 0 : index
    %235 = vector.load %arg11[%234, %c0_155, %c0_156] : memref<8x2x128xf32, #tpu.memory_space<vmem>>, vector<1x2x128xf32>
    %236 = vector.shape_cast %235 : vector<1x2x128xf32> to vector<2x128xf32>
    %c0_157 = arith.constant 0 : index
    %c0_158 = arith.constant 0 : index
    %c0_159 = arith.constant 0 : index
    %237 = vector.load %arg12[%c0_157, %c0_158, %c0_159] : memref<8x2x128xf32, #tpu.memory_space<vmem>>, vector<8x2x128xf32>
    %238 = vector.shape_cast %233 : vector<8x128xf32> to vector<8x1x128xf32>
    %239 = vector.shape_cast %236 : vector<2x128xf32> to vector<1x2x128xf32>
    %240 = vector.broadcast %238 : vector<8x1x128xf32> to vector<8x2x128xf32>
    %241 = vector.broadcast %239 : vector<1x2x128xf32> to vector<8x2x128xf32>
    %242 = arith.mulf %240, %241 : vector<8x2x128xf32>
    %243 = arith.addf %237, %242 : vector<8x2x128xf32>
    %c0_160 = arith.constant 0 : index
    %c0_161 = arith.constant 0 : index
    %c0_162 = arith.constant 0 : index
    %244 = vector.load %arg12[%c0_160, %c0_161, %c0_162] : memref<8x2x128xf32, #tpu.memory_space<vmem>>, vector<8x2x128xf32>
    tpu.vector_store %arg12[%c0_160, %c0_161, %c0_162], %243 {strides = array<i32>} : memref<8x2x128xf32, #tpu.memory_space<vmem>>, vector<8x2x128xf32>,
    %c7_i32 = arith.constant 7 : i32
    %245 = arith.index_cast %c7_i32 : i32 to index
    %c0_163 = arith.constant 0 : index
    %c0_164 = arith.constant 0 : index
    %246 = vector.load %arg10[%245, %c0_163, %c0_164] : memref<8x8x128xf32, #tpu.memory_space<vmem>>, vector<1x8x128xf32>
    %247 = vector.shape_cast %246 : vector<1x8x128xf32> to vector<8x128xf32>
    %248 = arith.index_cast %c7_i32 : i32 to index
    %c0_165 = arith.constant 0 : index
    %c0_166 = arith.constant 0 : index
    %249 = vector.load %arg11[%248, %c0_165, %c0_166] : memref<8x2x128xf32, #tpu.memory_space<vmem>>, vector<1x2x128xf32>
    %250 = vector.shape_cast %249 : vector<1x2x128xf32> to vector<2x128xf32>
    %c0_167 = arith.constant 0 : index
    %c0_168 = arith.constant 0 : index
    %c0_169 = arith.constant 0 : index
    %251 = vector.load %arg12[%c0_167, %c0_168, %c0_169] : memref<8x2x128xf32, #tpu.memory_space<vmem>>, vector<8x2x128xf32>
    %252 = vector.shape_cast %247 : vector<8x128xf32> to vector<8x1x128xf32>
    %253 = vector.shape_cast %250 : vector<2x128xf32> to vector<1x2x128xf32>
    %254 = vector.broadcast %252 : vector<8x1x128xf32> to vector<8x2x128xf32>
    %255 = vector.broadcast %253 : vector<1x2x128xf32> to vector<8x2x128xf32>
    %256 = arith.mulf %254, %255 : vector<8x2x128xf32>
    %257 = arith.addf %251, %256 : vector<8x2x128xf32>
    %c0_170 = arith.constant 0 : index
    %c0_171 = arith.constant 0 : index
    %c0_172 = arith.constant 0 : index
    %258 = vector.load %arg12[%c0_170, %c0_171, %c0_172] : memref<8x2x128xf32, #tpu.memory_space<vmem>>, vector<8x2x128xf32>
    tpu.vector_store %arg12[%c0_170, %c0_171, %c0_172], %257 {strides = array<i32>} : memref<8x2x128xf32, #tpu.memory_space<vmem>>, vector<8x2x128xf32>,
    %c8_i32 = arith.constant 8 : i32
    %c0_173 = arith.constant 0 : index
    %c0_174 = arith.constant 0 : index
    %c0_175 = arith.constant 0 : index
    %259 = vector.load %arg12[%c0_173, %c0_174, %c0_175] : memref<8x2x128xf32, #tpu.memory_space<vmem>>, vector<1x2x128xf32>
    %260 = vector.shape_cast %259 : vector<1x2x128xf32> to vector<2x128xf32>
    %c0_176 = arith.constant 0 : index
    %c0_177 = arith.constant 0 : index
    %261 = vector.load %arg13[%c0_176, %c0_177] : memref<16x128xf32, #tpu.memory_space<vmem>>, vector<2x128xf32>
    tpu.vector_store %arg13[%c0_176, %c0_177], %260 {strides = array<i32>} : memref<16x128xf32, #tpu.memory_space<vmem>>, vector<2x128xf32>,
    %c1_178 = arith.constant 1 : index
    %c0_179 = arith.constant 0 : index
    %c0_180 = arith.constant 0 : index
    %262 = vector.load %arg12[%c1_178, %c0_179, %c0_180] : memref<8x2x128xf32, #tpu.memory_space<vmem>>, vector<1x2x128xf32>
    %263 = vector.shape_cast %262 : vector<1x2x128xf32> to vector<2x128xf32>
    %c2_181 = arith.constant 2 : index
    %c0_182 = arith.constant 0 : index
    %264 = vector.load %arg13[%c2_181, %c0_182] : memref<16x128xf32, #tpu.memory_space<vmem>>, vector<2x128xf32>
    tpu.vector_store %arg13[%c2_181, %c0_182], %263 {strides = array<i32>} : memref<16x128xf32, #tpu.memory_space<vmem>>, vector<2x128xf32>,
    %c2_183 = arith.constant 2 : index
    %c0_184 = arith.constant 0 : index
    %c0_185 = arith.constant 0 : index
    %265 = vector.load %arg12[%c2_183, %c0_184, %c0_185] : memref<8x2x128xf32, #tpu.memory_space<vmem>>, vector<1x2x128xf32>
    %266 = vector.shape_cast %265 : vector<1x2x128xf32> to vector<2x128xf32>
    %c4_186 = arith.constant 4 : index
    %c0_187 = arith.constant 0 : index
    %267 = vector.load %arg13[%c4_186, %c0_187] : memref<16x128xf32, #tpu.memory_space<vmem>>, vector<2x128xf32>
    tpu.vector_store %arg13[%c4_186, %c0_187], %266 {strides = array<i32>} : memref<16x128xf32, #tpu.memory_space<vmem>>, vector<2x128xf32>,
    %c3_188 = arith.constant 3 : index
    %c0_189 = arith.constant 0 : index
    %c0_190 = arith.constant 0 : index
    %268 = vector.load %arg12[%c3_188, %c0_189, %c0_190] : memref<8x2x128xf32, #tpu.memory_space<vmem>>, vector<1x2x128xf32>
    %269 = vector.shape_cast %268 : vector<1x2x128xf32> to vector<2x128xf32>
    %c6_191 = arith.constant 6 : index
    %c0_192 = arith.constant 0 : index
    %270 = vector.load %arg13[%c6_191, %c0_192] : memref<16x128xf32, #tpu.memory_space<vmem>>, vector<2x128xf32>
    tpu.vector_store %arg13[%c6_191, %c0_192], %269 {strides = array<i32>} : memref<16x128xf32, #tpu.memory_space<vmem>>, vector<2x128xf32>,
    %c4_193 = arith.constant 4 : index
    %c0_194 = arith.constant 0 : index
    %c0_195 = arith.constant 0 : index
    %271 = vector.load %arg12[%c4_193, %c0_194, %c0_195] : memref<8x2x128xf32, #tpu.memory_space<vmem>>, vector<1x2x128xf32>
    %272 = vector.shape_cast %271 : vector<1x2x128xf32> to vector<2x128xf32>
    %c8 = arith.constant 8 : index
    %c0_196 = arith.constant 0 : index
    %273 = vector.load %arg13[%c8, %c0_196] : memref<16x128xf32, #tpu.memory_space<vmem>>, vector<2x128xf32>
    tpu.vector_store %arg13[%c8, %c0_196], %272 {strides = array<i32>} : memref<16x128xf32, #tpu.memory_space<vmem>>, vector<2x128xf32>,
    %c5_197 = arith.constant 5 : index
    %c0_198 = arith.constant 0 : index
    %c0_199 = arith.constant 0 : index
    %274 = vector.load %arg12[%c5_197, %c0_198, %c0_199] : memref<8x2x128xf32, #tpu.memory_space<vmem>>, vector<1x2x128xf32>
    %275 = vector.shape_cast %274 : vector<1x2x128xf32> to vector<2x128xf32>
    %c10 = arith.constant 10 : index
    %c0_200 = arith.constant 0 : index
    %276 = vector.load %arg13[%c10, %c0_200] : memref<16x128xf32, #tpu.memory_space<vmem>>, vector<2x128xf32>
    tpu.vector_store %arg13[%c10, %c0_200], %275 {strides = array<i32>} : memref<16x128xf32, #tpu.memory_space<vmem>>, vector<2x128xf32>,
    %c6_201 = arith.constant 6 : index
    %c0_202 = arith.constant 0 : index
    %c0_203 = arith.constant 0 : index
    %277 = vector.load %arg12[%c6_201, %c0_202, %c0_203] : memref<8x2x128xf32, #tpu.memory_space<vmem>>, vector<1x2x128xf32>
    %278 = vector.shape_cast %277 : vector<1x2x128xf32> to vector<2x128xf32>
    %c12 = arith.constant 12 : index
    %c0_204 = arith.constant 0 : index
    %279 = vector.load %arg13[%c12, %c0_204] : memref<16x128xf32, #tpu.memory_space<vmem>>, vector<2x128xf32>
    tpu.vector_store %arg13[%c12, %c0_204], %278 {strides = array<i32>} : memref<16x128xf32, #tpu.memory_space<vmem>>, vector<2x128xf32>,
    %c7_205 = arith.constant 7 : index
    %c0_206 = arith.constant 0 : index
    %c0_207 = arith.constant 0 : index
    %280 = vector.load %arg12[%c7_205, %c0_206, %c0_207] : memref<8x2x128xf32, #tpu.memory_space<vmem>>, vector<1x2x128xf32>
    %281 = vector.shape_cast %280 : vector<1x2x128xf32> to vector<2x128xf32>
    %c14 = arith.constant 14 : index
    %c0_208 = arith.constant 0 : index
    %282 = vector.load %arg13[%c14, %c0_208] : memref<16x128xf32, #tpu.memory_space<vmem>>, vector<2x128xf32>
    tpu.vector_store %arg13[%c14, %c0_208], %281 {strides = array<i32>} : memref<16x128xf32, #tpu.memory_space<vmem>>, vector<2x128xf32>,
    %c0_209 = arith.constant 0 : index
    %c0_210 = arith.constant 0 : index
    %283 = vector.load %arg13[%c0_209, %c0_210] : memref<16x128xf32, #tpu.memory_space<vmem>>, vector<16x128xf32>
    %284 = arith.truncf %283 : vector<16x128xf32> to vector<16x128xbf16>
    %c4_211 = arith.constant 4 : index
    %c0_212 = arith.constant 0 : index
    %c0_213 = arith.constant 0 : index
    %285 = vector.load %arg3[%c4_211, %c0_212, %c0_213] : memref<10x128x128xbf16, #tpu.memory_space<vmem>>, vector<1x128x128xbf16>
    %286 = vector.shape_cast %285 : vector<1x128x128xbf16> to vector<128x128xbf16>
    %cst_214 = arith.constant dense<0.000000e+00> : vector<16x128xf32>
    %287 = tpu.matmul %284, %286, %cst_214 {dimension_numbers = #tpu.dot_dimension_numbers<[1], [0], [0], [1], [0, 0, 1, 1], [], []>} : vector<16x128xbf16>, vector<128x128xbf16>, vector<16x128xf32> -> vector<16x128xf32>
    %c4_215 = arith.constant 4 : index
    %c0_216 = arith.constant 0 : index
    %c0_217 = arith.constant 0 : index
    %288 = vector.load %arg4[%c4_215, %c0_216, %c0_217] : memref<10x1x128xf32, #tpu.memory_space<vmem>>, vector<1x1x128xf32>
    %289 = vector.shape_cast %288 : vector<1x1x128xf32> to vector<1x128xf32>
    %290 = vector.broadcast %289 : vector<1x128xf32> to vector<16x128xf32>
    %291 = arith.addf %287, %290 : vector<16x128xf32>
    %292 = arith.negf %291 : vector<16x128xf32>
    %293 = math.exp %292 : vector<16x128xf32>
    %cst_218 = arith.constant 1.000000e+00 : f32
    %294 = vector.broadcast %cst_218 : f32 to vector<16x128xf32>
    %295 = arith.addf %294, %293 : vector<16x128xf32>
    %296 = arith.divf %294, %295 : vector<16x128xf32>
    %297 = arith.mulf %291, %296 : vector<16x128xf32>
    %298 = arith.truncf %297 : vector<16x128xf32> to vector<16x128xbf16>
    %c5_219 = arith.constant 5 : index
    %c0_220 = arith.constant 0 : index
    %c0_221 = arith.constant 0 : index
    %299 = vector.load %arg3[%c5_219, %c0_220, %c0_221] : memref<10x128x128xbf16, #tpu.memory_space<vmem>>, vector<1x128x128xbf16>
    %300 = vector.shape_cast %299 : vector<1x128x128xbf16> to vector<128x128xbf16>
    %cst_222 = arith.constant dense<0.000000e+00> : vector<16x128xf32>
    %301 = tpu.matmul %298, %300, %cst_222 {dimension_numbers = #tpu.dot_dimension_numbers<[1], [0], [0], [1], [0, 0, 1, 1], [], []>} : vector<16x128xbf16>, vector<128x128xbf16>, vector<16x128xf32> -> vector<16x128xf32>
    %c5_223 = arith.constant 5 : index
    %c0_224 = arith.constant 0 : index
    %c0_225 = arith.constant 0 : index
    %302 = vector.load %arg4[%c5_223, %c0_224, %c0_225] : memref<10x1x128xf32, #tpu.memory_space<vmem>>, vector<1x1x128xf32>
    %303 = vector.shape_cast %302 : vector<1x1x128xf32> to vector<1x128xf32>
    %304 = vector.broadcast %303 : vector<1x128xf32> to vector<16x128xf32>
    %305 = arith.addf %301, %304 : vector<16x128xf32>
    %306 = arith.negf %305 : vector<16x128xf32>
    %307 = math.exp %306 : vector<16x128xf32>
    %cst_226 = arith.constant 1.000000e+00 : f32
    %308 = vector.broadcast %cst_226 : f32 to vector<16x128xf32>
    %309 = arith.addf %308, %307 : vector<16x128xf32>
    %310 = arith.divf %308, %309 : vector<16x128xf32>
    %311 = arith.mulf %305, %310 : vector<16x128xf32>
    %312 = arith.addf %283, %311 : vector<16x128xf32>
    %313 = arith.truncf %312 : vector<16x128xf32> to vector<16x128xbf16>
    %c6_227 = arith.constant 6 : index
    %c0_228 = arith.constant 0 : index
    %c0_229 = arith.constant 0 : index
    %314 = vector.load %arg3[%c6_227, %c0_228, %c0_229] : memref<10x128x128xbf16, #tpu.memory_space<vmem>>, vector<1x128x128xbf16>
    %315 = vector.shape_cast %314 : vector<1x128x128xbf16> to vector<128x128xbf16>
    %cst_230 = arith.constant dense<0.000000e+00> : vector<16x128xf32>
    %316 = tpu.matmul %313, %315, %cst_230 {dimension_numbers = #tpu.dot_dimension_numbers<[1], [0], [0], [1], [0, 0, 1, 1], [], []>} : vector<16x128xbf16>, vector<128x128xbf16>, vector<16x128xf32> -> vector<16x128xf32>
    %c6_231 = arith.constant 6 : index
    %c0_232 = arith.constant 0 : index
    %c0_233 = arith.constant 0 : index
    %317 = vector.load %arg4[%c6_231, %c0_232, %c0_233] : memref<10x1x128xf32, #tpu.memory_space<vmem>>, vector<1x1x128xf32>
    %318 = vector.shape_cast %317 : vector<1x1x128xf32> to vector<1x128xf32>
    %319 = vector.broadcast %318 : vector<1x128xf32> to vector<16x128xf32>
    %320 = arith.addf %316, %319 : vector<16x128xf32>
    %321 = arith.negf %320 : vector<16x128xf32>
    %322 = math.exp %321 : vector<16x128xf32>
    %cst_234 = arith.constant 1.000000e+00 : f32
    %323 = vector.broadcast %cst_234 : f32 to vector<16x128xf32>
    %324 = arith.addf %323, %322 : vector<16x128xf32>
    %325 = arith.divf %323, %324 : vector<16x128xf32>
    %326 = arith.mulf %320, %325 : vector<16x128xf32>
    %327 = arith.truncf %326 : vector<16x128xf32> to vector<16x128xbf16>
    %c7_235 = arith.constant 7 : index
    %c0_236 = arith.constant 0 : index
    %c0_237 = arith.constant 0 : index
    %328 = vector.load %arg3[%c7_235, %c0_236, %c0_237] : memref<10x128x128xbf16, #tpu.memory_space<vmem>>, vector<1x128x128xbf16>
    %329 = vector.shape_cast %328 : vector<1x128x128xbf16> to vector<128x128xbf16>
    %cst_238 = arith.constant dense<0.000000e+00> : vector<16x128xf32>
    %330 = tpu.matmul %327, %329, %cst_238 {dimension_numbers = #tpu.dot_dimension_numbers<[1], [0], [0], [1], [0, 0, 1, 1], [], []>} : vector<16x128xbf16>, vector<128x128xbf16>, vector<16x128xf32> -> vector<16x128xf32>
    %c7_239 = arith.constant 7 : index
    %c0_240 = arith.constant 0 : index
    %c0_241 = arith.constant 0 : index
    %331 = vector.load %arg4[%c7_239, %c0_240, %c0_241] : memref<10x1x128xf32, #tpu.memory_space<vmem>>, vector<1x1x128xf32>
    %332 = vector.shape_cast %331 : vector<1x1x128xf32> to vector<1x128xf32>
    %333 = vector.broadcast %332 : vector<1x128xf32> to vector<16x128xf32>
    %334 = arith.addf %330, %333 : vector<16x128xf32>
    %335 = arith.negf %334 : vector<16x128xf32>
    %336 = math.exp %335 : vector<16x128xf32>
    %cst_242 = arith.constant 1.000000e+00 : f32
    %337 = vector.broadcast %cst_242 : f32 to vector<16x128xf32>
    %338 = arith.addf %337, %336 : vector<16x128xf32>
    %339 = arith.divf %337, %338 : vector<16x128xf32>
    %340 = arith.mulf %334, %339 : vector<16x128xf32>
    %341 = arith.addf %312, %340 : vector<16x128xf32>
    %342 = arith.mulf %28, %341 : vector<16x128xf32>
    %343 = arith.truncf %342 : vector<16x128xf32> to vector<16x128xbf16>
    %c8_243 = arith.constant 8 : index
    %c0_244 = arith.constant 0 : index
    %c0_245 = arith.constant 0 : index
    %344 = vector.load %arg3[%c8_243, %c0_244, %c0_245] : memref<10x128x128xbf16, #tpu.memory_space<vmem>>, vector<1x128x128xbf16>
    %345 = vector.shape_cast %344 : vector<1x128x128xbf16> to vector<128x128xbf16>
    %cst_246 = arith.constant dense<0.000000e+00> : vector<16x128xf32>
    %346 = tpu.matmul %343, %345, %cst_246 {dimension_numbers = #tpu.dot_dimension_numbers<[1], [0], [0], [1], [0, 0, 1, 1], [], []>} : vector<16x128xbf16>, vector<128x128xbf16>, vector<16x128xf32> -> vector<16x128xf32>
    %c8_247 = arith.constant 8 : index
    %c0_248 = arith.constant 0 : index
    %c0_249 = arith.constant 0 : index
    %347 = vector.load %arg4[%c8_247, %c0_248, %c0_249] : memref<10x1x128xf32, #tpu.memory_space<vmem>>, vector<1x1x128xf32>
    %348 = vector.shape_cast %347 : vector<1x1x128xf32> to vector<1x128xf32>
    %349 = vector.broadcast %348 : vector<1x128xf32> to vector<16x128xf32>
    %350 = arith.addf %346, %349 : vector<16x128xf32>
    %351 = arith.negf %350 : vector<16x128xf32>
    %352 = math.exp %351 : vector<16x128xf32>
    %cst_250 = arith.constant 1.000000e+00 : f32
    %353 = vector.broadcast %cst_250 : f32 to vector<16x128xf32>
    %354 = arith.addf %353, %352 : vector<16x128xf32>
    %355 = arith.divf %353, %354 : vector<16x128xf32>
    %356 = arith.mulf %350, %355 : vector<16x128xf32>
    %357 = arith.truncf %356 : vector<16x128xf32> to vector<16x128xbf16>
    %c9 = arith.constant 9 : index
    %c0_251 = arith.constant 0 : index
    %c0_252 = arith.constant 0 : index
    %358 = vector.load %arg3[%c9, %c0_251, %c0_252] : memref<10x128x128xbf16, #tpu.memory_space<vmem>>, vector<1x128x128xbf16>
    %359 = vector.shape_cast %358 : vector<1x128x128xbf16> to vector<128x128xbf16>
    %cst_253 = arith.constant dense<0.000000e+00> : vector<16x128xf32>
    %360 = tpu.matmul %357, %359, %cst_253 {dimension_numbers = #tpu.dot_dimension_numbers<[1], [0], [0], [1], [0, 0, 1, 1], [], []>} : vector<16x128xbf16>, vector<128x128xbf16>, vector<16x128xf32> -> vector<16x128xf32>
    %c9_254 = arith.constant 9 : index
    %c0_255 = arith.constant 0 : index
    %c0_256 = arith.constant 0 : index
    %361 = vector.load %arg4[%c9_254, %c0_255, %c0_256] : memref<10x1x128xf32, #tpu.memory_space<vmem>>, vector<1x1x128xf32>
    %362 = vector.shape_cast %361 : vector<1x1x128xf32> to vector<1x128xf32>
    %363 = vector.broadcast %362 : vector<1x128xf32> to vector<16x128xf32>
    %364 = arith.addf %360, %363 : vector<16x128xf32>
    %365 = arith.negf %364 : vector<16x128xf32>
    %366 = math.exp %365 : vector<16x128xf32>
    %cst_257 = arith.constant 1.000000e+00 : f32
    %367 = vector.broadcast %cst_257 : f32 to vector<16x128xf32>
    %368 = arith.addf %367, %366 : vector<16x128xf32>
    %369 = arith.divf %367, %368 : vector<16x128xf32>
    %370 = arith.mulf %364, %369 : vector<16x128xf32>
    %371 = arith.addf %342, %370 : vector<16x128xf32>
    %c0_258 = arith.constant 0 : index
    %c0_259 = arith.constant 0 : index
    %c0_260 = arith.constant 0 : index
    %372 = vector.load %arg9[%c0_258, %c0_259, %c0_260] : memref<1x16x128xf32, #tpu.memory_space<vmem>>, vector<1x16x128xf32>
    %373 = vector.shape_cast %372 : vector<1x16x128xf32> to vector<16x128xf32>
    %374 = vector.shape_cast %371 : vector<16x128xf32> to vector<1x16x128xf32>
    tpu.vector_store %arg9[%c0_258, %c0_259, %c0_260], %374 {strides = array<i32>} : memref<1x16x128xf32, #tpu.memory_space<vmem>>, vector<1x16x128xf32>,
    return
  }
  func.func @transform_0(%arg0: i32) -> (i32, i32, i32) {
    %c0_i32 = arith.constant 0 : i32
    %c0_i32_0 = arith.constant 0 : i32
    %c0_i32_1 = arith.constant 0 : i32
    return %arg0, %c0_i32, %c0_i32_0 : i32, i32, i32
  }
  func.func @transform_1(%arg0: i32) -> (i32, i32, i32) {
    %c0_i32 = arith.constant 0 : i32
    %c0_i32_0 = arith.constant 0 : i32
    %c0_i32_1 = arith.constant 0 : i32
    return %arg0, %c0_i32, %c0_i32_0 : i32, i32, i32
  }
  func.func @transform_2(%arg0: i32) -> (i32, i32, i32) {
    %c0_i32 = arith.constant 0 : i32
    %c0_i32_0 = arith.constant 0 : i32
    %c0_i32_1 = arith.constant 0 : i32
    %c0_i32_2 = arith.constant 0 : i32
    return %c0_i32, %c0_i32_0, %c0_i32_1 : i32, i32, i32
  }
  func.func @transform_3(%arg0: i32) -> (i32, i32, i32) {
    %c0_i32 = arith.constant 0 : i32
    %c0_i32_0 = arith.constant 0 : i32
    %c0_i32_1 = arith.constant 0 : i32
    %c0_i32_2 = arith.constant 0 : i32
    return %c0_i32, %c0_i32_0, %c0_i32_1 : i32, i32, i32
  }
  func.func @transform_4(%arg0: i32) -> (i32, i32) {
    %c0_i32 = arith.constant 0 : i32
    %c0_i32_0 = arith.constant 0 : i32
    %c0_i32_1 = arith.constant 0 : i32
    return %c0_i32, %c0_i32_0 : i32, i32
  }
  func.func @transform_5(%arg0: i32) -> (i32, i32) {
    %c0_i32 = arith.constant 0 : i32
    %c0_i32_0 = arith.constant 0 : i32
    %c0_i32_1 = arith.constant 0 : i32
    return %c0_i32, %c0_i32_0 : i32, i32
  }
  func.func @transform_6(%arg0: i32) -> (i32, i32) {
    %c0_i32 = arith.constant 0 : i32
    %c0_i32_0 = arith.constant 0 : i32
    %c0_i32_1 = arith.constant 0 : i32
    return %c0_i32, %c0_i32_0 : i32, i32
  }
  func.func @transform_7(%arg0: i32) -> (i32, i32) {
    %c0_i32 = arith.constant 0 : i32
    %c0_i32_0 = arith.constant 0 : i32
    %c0_i32_1 = arith.constant 0 : i32
    return %c0_i32, %c0_i32_0 : i32, i32
  }
  func.func @transform_8(%arg0: i32) -> (i32, i32, i32) {
    %c0_i32 = arith.constant 0 : i32
    %c0_i32_0 = arith.constant 0 : i32
    %c0_i32_1 = arith.constant 0 : i32
    return %arg0, %c0_i32, %c0_i32_0 : i32, i32, i32
  }
}

</mosaic_0001>

<llo_original>
// kernel: two_fdis_forward.1
$region0: #{two_fdis_forward.1}
  #allocation0 [shape = 'u32[]', space=smem, size = 0x4, offset = 0x4, fixed_abs, tag = 'smem constant byte address 0x4 - core index']
  #allocation1 [shape = 'u32[144,128]{1,0:T(1,128)}', space=vmem, size = 0x12000, scoped, tag = 'internal scratch']
  #allocation2 [shape = 'f32[8,8,128]{2,1,0:T(8,128)}', space=vmem, size = 0x8000, scoped, tag = 'scratch operand']
  #allocation3 [shape = 'f32[8,2,128]{2,1,0:T(2,128)}', space=vmem, size = 0x2000, scoped, tag = 'scratch operand']
  #allocation4 [shape = 'f32[8,2,128]{2,1,0:T(2,128)}', space=vmem, size = 0x2000, scoped, tag = 'scratch operand']
  #allocation5 [shape = 'f32[16,128]{1,0:T(8,128)}', space=vmem, size = 0x2000, scoped, tag = 'scratch operand']
  %s0 = inlined_call_operand.vmem [shape: bf16[2,16,128], index: 0, kind: input, shape index: {}]
  %s1 = inlined_call_operand.vmem [shape: bf16[2,64,32], index: 1, kind: input, shape index: {}]
  %s2 = inlined_call_operand.vmem [shape: bf16[10,128,128], index: 2, kind: input, shape index: {}]
  %s3 = inlined_call_operand.vmem [shape: f32[10,1,128], index: 3, kind: input, shape index: {}]
  %s4 = inlined_call_operand.vmem [shape: bf16[32,32], index: 4, kind: input, shape index: {}]
  %s5 = inlined_call_operand.vmem [shape: f32[1,32], index: 5, kind: input, shape index: {}]
  %s6 = inlined_call_operand.vmem [shape: bf16[32,128], index: 6, kind: input, shape index: {}]
  %s7 = inlined_call_operand.vmem [shape: f32[1,128], index: 7, kind: input, shape index: {}]
  %s8 = inlined_call_operand.vmem [shape: f32[2,16,128], index: 8, kind: output, shape index: {}]
  %s9 = sld [smem:[#allocation0]]
  $region65: #{two_fdis_forward.1} parent=0
    _
  %s11 = ssub.s32 1, %s9
  %s12 = scalar_select 0, %s11, %s9
  loop: start=0, step=1, limit=4
  $region2: #{two_fdis_forward.1} parent=0 // loop_pre_header
    _
  $region3: #{two_fdis_forward.1} parent=0 // loop_header
    %s14 = sphi 0, %s18
    %p15 = scmp.ge.s32.totalorder %s14, 4
    %s24 = sphi 0, %s26
    %s27 = sphi 0, %s24
    %s28 = sphi 0, %s27
    %s44 = sphi 0, %s28
    %s50 = sphi 0, %s52
    %s53 = sphi 0, %s50
    %s54 = sphi 0, %s53
    %s70 = sphi 0, %s54
    %s74 = sphi 0, %s74
    %s76 = sphi 0, %s74
    %s77 = sphi 0, %s76
    %s91 = sphi 0, %s77
    %s95 = sphi 0, %s95
    %s97 = sphi 0, %s95
    %s98 = sphi 0, %s97
    %s112 = sphi 0, %s98
    %s116 = sphi 0, %s116
    %s118 = sphi 0, %s116
    %s119 = sphi 0, %s118
    %s133 = sphi 0, %s119
    %s137 = sphi 0, %s137
    %s139 = sphi 0, %s137
    %s140 = sphi 0, %s139
    %s154 = sphi 0, %s140
    %s158 = sphi 0, %s158
    %s160 = sphi 0, %s158
    %s161 = sphi 0, %s160
    %s175 = sphi 0, %s161
    %s179 = sphi 0, %s179
    %s181 = sphi 0, %s179
    %s182 = sphi 0, %s181
    %s196 = sphi 0, %s182
    %s202 = sphi 0, %s204
    %s205 = sphi 0, %s202
    %s206 = sphi 0, %s205
    %s222 = sphi 0, %s206
  $region4: #{two_fdis_forward.1} parent=0 // loop_header_branch
    %17 = sbr.rel (%p15) target = $region8
  $region5: #{two_fdis_forward.1} parent=0 // loop_body
    %s19 = ssub.s32 %s14, 1
    %s20 = ssub.s32 %s14, 2
    %s21 = sadd.s32 %s14, 1
    %s22 = ssub.s32 %s14, %s21
    %p23 = scmp.eq.s32.totalorder %s22, 0
    %s25 = sadd.s32 %s24, 1
    %s26 = scalar_select %p23, %s24, %s25
    %p29 = pneg %p23
    %p30 = scmp.eq.s32.totalorder %s14, 1
    %p31 = por %p29, %p30
    %p32 = scmp.ne.s32.totalorder %s24, %s27
    %p33 = scmp.eq.s32.totalorder %s14, 0
    %p34 = por %p32, %p33
    %p35 = scmp.ne.s32.totalorder %s24, %s27
    %p36 = scmp.eq.s32.totalorder %s19, 1
    %p37 = por %p35, %p36
    %p38 = scmp.ne.s32.totalorder %s27, %s28
    %p39 = scmp.eq.s32.totalorder %s19, 0
    %p40 = por %p38, %p39
    %p41 = scmp.ne.s32.totalorder %s27, %s28
    %p42 = scmp.eq.s32.totalorder %s20, 1
    %p43 = por %p41, %p42
    %p45 = scmp.ne.s32.totalorder %s28, %s44
    %p46 = scmp.eq.s32.totalorder %s20, 0
    %p47 = por %p45, %p46
    %s48 = ssub.s32 %s14, %s21
    %p49 = scmp.eq.s32.totalorder %s48, 0
    %s51 = sadd.s32 %s50, 1
    %s52 = scalar_select %p49, %s50, %s51
    %p55 = pneg %p49
    %p56 = scmp.eq.s32.totalorder %s14, 1
    %p57 = por %p55, %p56
    %p58 = scmp.ne.s32.totalorder %s50, %s53
    %p59 = scmp.eq.s32.totalorder %s14, 0
    %p60 = por %p58, %p59
    %p61 = scmp.ne.s32.totalorder %s50, %s53
    %p62 = scmp.eq.s32.totalorder %s19, 1
    %p63 = por %p61, %p62
    %p64 = scmp.ne.s32.totalorder %s53, %s54
    %p65 = scmp.eq.s32.totalorder %s19, 0
    %p66 = por %p64, %p65
    %p67 = scmp.ne.s32.totalorder %s53, %s54
    %p68 = scmp.eq.s32.totalorder %s20, 1
    %p69 = por %p67, %p68
    %p71 = scmp.ne.s32.totalorder %s54, %s70
    %p72 = scmp.eq.s32.totalorder %s20, 0
    %p73 = por %p71, %p72
    %s75 = sadd.s32 %s74, 1
    %p78 = scmp.eq.s32.totalorder %s14, 1
    %p79 = scmp.ne.s32.totalorder %s74, %s76
    %p80 = scmp.eq.s32.totalorder %s14, 0
    %p81 = por %p79, %p80
    %p82 = scmp.ne.s32.totalorder %s74, %s76
    %p83 = scmp.eq.s32.totalorder %s19, 1
    %p84 = por %p82, %p83
    %p85 = scmp.ne.s32.totalorder %s76, %s77
    %p86 = scmp.eq.s32.totalorder %s19, 0
    %p87 = por %p85, %p86
    %p88 = scmp.ne.s32.totalorder %s76, %s77
    %p89 = scmp.eq.s32.totalorder %s20, 1
    %p90 = por %p88, %p89
    %p92 = scmp.ne.s32.totalorder %s77, %s91
    %p93 = scmp.eq.s32.totalorder %s20, 0
    %p94 = por %p92, %p93
    %s96 = sadd.s32 %s95, 1
    %p99 = scmp.eq.s32.totalorder %s14, 1
    %p100 = scmp.ne.s32.totalorder %s95, %s97
    %p101 = scmp.eq.s32.totalorder %s14, 0
    %p102 = por %p100, %p101
    %p103 = scmp.ne.s32.totalorder %s95, %s97
    %p104 = scmp.eq.s32.totalorder %s19, 1
    %p105 = por %p103, %p104
    %p106 = scmp.ne.s32.totalorder %s97, %s98
    %p107 = scmp.eq.s32.totalorder %s19, 0
    %p108 = por %p106, %p107
    %p109 = scmp.ne.s32.totalorder %s97, %s98
    %p110 = scmp.eq.s32.totalorder %s20, 1
    %p111 = por %p109, %p110
    %p113 = scmp.ne.s32.totalorder %s98, %s112
    %p114 = scmp.eq.s32.totalorder %s20, 0
    %p115 = por %p113, %p114
    %s117 = sadd.s32 %s116, 1
    %p120 = scmp.eq.s32.totalorder %s14, 1
    %p121 = scmp.ne.s32.totalorder %s116, %s118
    %p122 = scmp.eq.s32.totalorder %s14, 0
    %p123 = por %p121, %p122
    %p124 = scmp.ne.s32.totalorder %s116, %s118
    %p125 = scmp.eq.s32.totalorder %s19, 1
    %p126 = por %p124, %p125
    %p127 = scmp.ne.s32.totalorder %s118, %s119
    %p128 = scmp.eq.s32.totalorder %s19, 0
    %p129 = por %p127, %p128
    %p130 = scmp.ne.s32.totalorder %s118, %s119
    %p131 = scmp.eq.s32.totalorder %s20, 1
    %p132 = por %p130, %p131
    %p134 = scmp.ne.s32.totalorder %s119, %s133
    %p135 = scmp.eq.s32.totalorder %s20, 0
    %p136 = por %p134, %p135
    %s138 = sadd.s32 %s137, 1
    %p141 = scmp.eq.s32.totalorder %s14, 1
    %p142 = scmp.ne.s32.totalorder %s137, %s139
    %p143 = scmp.eq.s32.totalorder %s14, 0
    %p144 = por %p142, %p143
    %p145 = scmp.ne.s32.totalorder %s137, %s139
    %p146 = scmp.eq.s32.totalorder %s19, 1
    %p147 = por %p145, %p146
    %p148 = scmp.ne.s32.totalorder %s139, %s140
    %p149 = scmp.eq.s32.totalorder %s19, 0
    %p150 = por %p148, %p149
    %p151 = scmp.ne.s32.totalorder %s139, %s140
    %p152 = scmp.eq.s32.totalorder %s20, 1
    %p153 = por %p151, %p152
    %p155 = scmp.ne.s32.totalorder %s140, %s154
    %p156 = scmp.eq.s32.totalorder %s20, 0
    %p157 = por %p155, %p156
    %s159 = sadd.s32 %s158, 1
    %p162 = scmp.eq.s32.totalorder %s14, 1
    %p163 = scmp.ne.s32.totalorder %s158, %s160
    %p164 = scmp.eq.s32.totalorder %s14, 0
    %p165 = por %p163, %p164
    %p166 = scmp.ne.s32.totalorder %s158, %s160
    %p167 = scmp.eq.s32.totalorder %s19, 1
    %p168 = por %p166, %p167
    %p169 = scmp.ne.s32.totalorder %s160, %s161
    %p170 = scmp.eq.s32.totalorder %s19, 0
    %p171 = por %p169, %p170
    %p172 = scmp.ne.s32.totalorder %s160, %s161
    %p173 = scmp.eq.s32.totalorder %s20, 1
    %p174 = por %p172, %p173
    %p176 = scmp.ne.s32.totalorder %s161, %s175
    %p177 = scmp.eq.s32.totalorder %s20, 0
    %p178 = por %p176, %p177
    %s180 = sadd.s32 %s179, 1
    %p183 = scmp.eq.s32.totalorder %s14, 1
    %p184 = scmp.ne.s32.totalorder %s179, %s181
    %p185 = scmp.eq.s32.totalorder %s14, 0
    %p186 = por %p184, %p185
    %p187 = scmp.ne.s32.totalorder %s179, %s181
    %p188 = scmp.eq.s32.totalorder %s19, 1
    %p189 = por %p187, %p188
    %p190 = scmp.ne.s32.totalorder %s181, %s182
    %p191 = scmp.eq.s32.totalorder %s19, 0
    %p192 = por %p190, %p191
    %p193 = scmp.ne.s32.totalorder %s181, %s182
    %p194 = scmp.eq.s32.totalorder %s20, 1
    %p195 = por %p193, %p194
    %p197 = scmp.ne.s32.totalorder %s182, %s196
    %p198 = scmp.eq.s32.totalorder %s20, 0
    %p199 = por %p197, %p198
    %s200 = ssub.s32 %s14, %s21
    %p201 = scmp.eq.s32.totalorder %s200, 0
    %s203 = sadd.s32 %s202, 1
    %s204 = scalar_select %p201, %s202, %s203
    %p207 = pneg %p201
    %p208 = scmp.eq.s32.totalorder %s14, 1
    %p209 = por %p207, %p208
    %p210 = scmp.ne.s32.totalorder %s202, %s205
    %p211 = scmp.eq.s32.totalorder %s14, 0
    %p212 = por %p210, %p211
    %p213 = scmp.ne.s32.totalorder %s202, %s205
    %p214 = scmp.eq.s32.totalorder %s19, 1
    %p215 = por %p213, %p214
    %p216 = scmp.ne.s32.totalorder %s205, %s206
    %p217 = scmp.eq.s32.totalorder %s19, 0
    %p218 = por %p216, %p217
    %p219 = scmp.ne.s32.totalorder %s205, %s206
    %p220 = scmp.eq.s32.totalorder %s20, 1
    %p221 = por %p219, %p220
    %p223 = scmp.ne.s32.totalorder %s206, %s222
    %p224 = scmp.eq.s32.totalorder %s20, 0
    %p225 = por %p223, %p224
    %p226 = scmp.le.s32.totalorder 1, %s14
    %p227 = scmp.lt.s32.totalorder %s14, 3
    %p228 = pnand %p226, %p227
    %p229 = pneg %p228
    // Predicated region
    $region9: #{two_fdis_forward.1} parent=5 // pred_check
      _
    $region10: #{two_fdis_forward.1} parent=5 // pred_check_branch
      %231 = sbr.rel (%p228) target = $region12
    $region11: #{two_fdis_forward.1} parent=5 // pred_region
      %s232 = ssub.s32 %s14, 1
      // Predicated region
      $region13: #{two_fdis_forward.1} parent=11 // pred_check
        %p233 = pneg %p87
      $region14: #{two_fdis_forward.1} parent=11 // pred_check_branch
        %235 = sbr.rel (%p233) target = $region16
      $region15: #{two_fdis_forward.1} parent=11 // pred_region
        _
      $region16: #{two_fdis_forward.1} parent=11 // pred_fallthru
        _
      // Predicated region
      $region17: #{two_fdis_forward.1} parent=11 // pred_check
        %p236 = pneg %p108
      $region18: #{two_fdis_forward.1} parent=11 // pred_check_branch
        %238 = sbr.rel (%p236) target = $region20
      $region19: #{two_fdis_forward.1} parent=11 // pred_region
        _
      $region20: #{two_fdis_forward.1} parent=11 // pred_fallthru
        _
      // Predicated region
      $region21: #{two_fdis_forward.1} parent=11 // pred_check
        %p239 = pneg %p129
      $region22: #{two_fdis_forward.1} parent=11 // pred_check_branch
        %241 = sbr.rel (%p239) target = $region24
      $region23: #{two_fdis_forward.1} parent=11 // pred_region
        _
      $region24: #{two_fdis_forward.1} parent=11 // pred_fallthru
        _
      // Predicated region
      $region25: #{two_fdis_forward.1} parent=11 // pred_check
        %p242 = pneg %p150
      $region26: #{two_fdis_forward.1} parent=11 // pred_check_branch
        %244 = sbr.rel (%p242) target = $region28
      $region27: #{two_fdis_forward.1} parent=11 // pred_region
        _
      $region28: #{two_fdis_forward.1} parent=11 // pred_fallthru
        _
      // Predicated region
      $region29: #{two_fdis_forward.1} parent=11 // pred_check
        %p245 = pneg %p171
      $region30: #{two_fdis_forward.1} parent=11 // pred_check_branch
        %247 = sbr.rel (%p245) target = $region32
      $region31: #{two_fdis_forward.1} parent=11 // pred_region
        _
      $region32: #{two_fdis_forward.1} parent=11 // pred_fallthru
        _
      // Predicated region
      $region33: #{two_fdis_forward.1} parent=11 // pred_check
        %p248 = pneg %p192
      $region34: #{two_fdis_forward.1} parent=11 // pred_check_branch
        %250 = sbr.rel (%p248) target = $region36
      $region35: #{two_fdis_forward.1} parent=11 // pred_region
        _
      $region36: #{two_fdis_forward.1} parent=11 // pred_fallthru
        _
    $region12: #{two_fdis_forward.1} parent=5 // pred_fallthru
      _
    %p251 = scmp.lt.s32.totalorder %s14, 2
    // Predicated region
    $region37: #{two_fdis_forward.1} parent=5 // pred_check
      %p252 = pneg %p251
    $region38: #{two_fdis_forward.1} parent=5 // pred_check_branch
      %254 = sbr.rel (%p252) target = $region40
    $region39: #{two_fdis_forward.1} parent=5 // pred_region
      // Predicated region
      $region41: #{two_fdis_forward.1} parent=39 // pred_check
        %p255 = pneg %p34
      $region42: #{two_fdis_forward.1} parent=39 // pred_check_branch
        %257 = sbr.rel (%p255) target = $region44
      $region43: #{two_fdis_forward.1} parent=39 // pred_region
        %p258 = scmp.lt.s32.totalorder %s14, 1
        %s259 = scalar_select %p258, %s14, 1
        %s260 = smul.addr %s259, 2
        %s261 = smul.addr %s260, 4
        %s262 = scalar_lea.vmem %s0, %s261
      $region44: #{two_fdis_forward.1} parent=39 // pred_fallthru
        _
      // Predicated region
      $region45: #{two_fdis_forward.1} parent=39 // pred_check
        %p263 = pneg %p60
      $region46: #{two_fdis_forward.1} parent=39 // pred_check_branch
        %265 = sbr.rel (%p263) target = $region48
      $region47: #{two_fdis_forward.1} parent=39 // pred_region
        %p266 = scmp.lt.s32.totalorder %s14, 1
        %s267 = scalar_select %p266, %s14, 1
        %s268 = smul.addr %s267, 8
        %s269 = smul.addr %s268, 4
        %s270 = scalar_lea.vmem %s1, %s269
      $region48: #{two_fdis_forward.1} parent=39 // pred_fallthru
        _
    $region40: #{two_fdis_forward.1} parent=5 // pred_fallthru
      _
    %p271 = scmp.le.s32.totalorder 1, %s14
    %p272 = scmp.lt.s32.totalorder %s14, 3
    %p273 = pnand %p271, %p272
    %p274 = pneg %p273
    // Predicated region
    $region49: #{two_fdis_forward.1} parent=5 // pred_check
      _
    $region50: #{two_fdis_forward.1} parent=5 // pred_check_branch
      %276 = sbr.rel (%p273) target = $region52
    $region51: #{two_fdis_forward.1} parent=5 // pred_region
      %s277 = ssub.s32 %s14, 1
      %p278 = scmp.lt.s32.totalorder %s19, 1
      %s279 = scalar_select %p278, %s19, 1
      %s280 = smul.addr %s279, 2
      %s281 = smul.addr %s280, 4
      %s282 = scalar_lea.vmem %s0, %s281
      %p283 = pneg %p40
      %p284 = pneg %p37
      %p285 = scmp.lt.s32.totalorder %s19, 1
      %s286 = scalar_select %p285, %s19, 1
      %s287 = smul.addr %s286, 8
      %s288 = smul.addr %s287, 4
      %s289 = scalar_lea.vmem %s1, %s288
      %p290 = pneg %p66
      %p291 = pneg %p63
      %p292 = pneg %p87
      %p293 = pneg %p84
      %p294 = pneg %p108
      %p295 = pneg %p105
      %p296 = pneg %p129
      %p297 = pneg %p126
      %p298 = pneg %p150
      %p299 = pneg %p147
      %p300 = pneg %p171
      %p301 = pneg %p168
      %p302 = pneg %p192
      %p303 = pneg %p189
      %p304 = pneg %p218
      %p305 = pneg %p215
      %p306 = scmp.lt.s32.totalorder %s19, 1
      %s307 = scalar_select %p306, %s19, 1
      %s308 = smul.addr %s307, 2
      %s309 = smul.addr %s308, 8
      %s310 = scalar_lea.vmem %s8, %s309
      %p311 = scmp.lt.s32.totalorder %s19, 1
      %s312 = scalar_select %p311, %s19, 1
      %s313 = smul.addr %s312, 2
      %s314 = smul.addr %s313, 4
      %s315 = scalar_lea.vmem %s0, %s314
      %p316 = scmp.lt.s32.totalorder %s19, 1
      %s317 = scalar_select %p316, %s19, 1
      %s318 = smul.addr %s317, 8
      %s319 = smul.addr %s318, 4
      %s320 = scalar_lea.vmem %s1, %s319
      %p321 = scmp.lt.s32.totalorder %s19, 1
      %s322 = scalar_select %p321, %s19, 1
      %s323 = smul.addr %s322, 2
      %s324 = smul.addr %s323, 8
      %s325 = scalar_lea.vmem %s8, %s324
      %v327 = vld [vmem:[%s315] sm:$0xf]
      %v328 = vld [vmem:[%s315 + $0x4] sm:$0xf]
      %v329 = vld [vmem:[%s2] sm:$0xf]
      %v330 = vld [vmem:[%s2 + $0x4] sm:$0xf]
      %v331 = vld [vmem:[%s2 + $0x8] sm:$0xf]
      %v332 = vld [vmem:[%s2 + $0xc] sm:$0xf]
      %v333 = vld [vmem:[%s2 + $0x10] sm:$0xf]
      %v334 = vld [vmem:[%s2 + $0x14] sm:$0xf]
      %v335 = vld [vmem:[%s2 + $0x18] sm:$0xf]
      %v336 = vld [vmem:[%s2 + $0x1c] sm:$0xf]
      %v337 = vld [vmem:[%s2 + $0x20] sm:$0xf]
      %v338 = vld [vmem:[%s2 + $0x24] sm:$0xf]
      %v339 = vld [vmem:[%s2 + $0x28] sm:$0xf]
      %v340 = vld [vmem:[%s2 + $0x2c] sm:$0xf]
      %v341 = vld [vmem:[%s2 + $0x30] sm:$0xf]
      %v342 = vld [vmem:[%s2 + $0x34] sm:$0xf]
      %v343 = vld [vmem:[%s2 + $0x38] sm:$0xf]
      %v344 = vld [vmem:[%s2 + $0x3c] sm:$0xf]
      %v345 = vld [vmem:[%s3] sm:$0x1]
      %v347 = vlaneseq
      %v348 = vshrl.u32 %v347, 7
      %v349 = vsub.s32 0, %v348
      %v350 = vrot.slane %v345, %v349
      %v354 = vunpack.c.l.b16 %v327
      %v355 = vunpack.c.l.b16 %v328
      %v356 = vpack.c.b16 %v355, %v354
      %v374 = vunpack.c.l.b16 %v329
      %v375 = vunpack.c.l.b16 %v330
      %v376 = vunpack.c.l.b16 %v331
      %v377 = vunpack.c.l.b16 %v332
      %v378 = vunpack.c.l.b16 %v333
      %v379 = vunpack.c.l.b16 %v334
      %v380 = vunpack.c.l.b16 %v335
      %v381 = vunpack.c.l.b16 %v336
      %v382 = vunpack.c.l.b16 %v337
      %v383 = vunpack.c.l.b16 %v338
      %v384 = vunpack.c.l.b16 %v339
      %v385 = vunpack.c.l.b16 %v340
      %v386 = vunpack.c.l.b16 %v341
      %v387 = vunpack.c.l.b16 %v342
      %v388 = vunpack.c.l.b16 %v343
      %v389 = vunpack.c.l.b16 %v344
      %v390 = vpack.c.b16 %v375, %v374
      %v391 = vpack.c.b16 %v377, %v376
      %v392 = vpack.c.b16 %v379, %v378
      %v393 = vpack.c.b16 %v381, %v380
      %v394 = vpack.c.b16 %v383, %v382
      %v395 = vpack.c.b16 %v385, %v384
      %v396 = vpack.c.b16 %v387, %v386
      %v397 = vpack.c.b16 %v389, %v388
      %406 = vmatprep.subr.bf16.mxu0 0
      %407 = vmatpush1.bf16.msra.mxu0 %v390
      %408 = vmatprep.subr.bf16.mxu0 0
      %409 = vmatpush1.bf16.msra.mxu0 %v391
      %410 = vmatprep.subr.bf16.mxu0 0
      %411 = vmatpush1.bf16.msra.mxu0 %v392
      %412 = vmatprep.subr.bf16.mxu0 0
      %413 = vmatpush1.bf16.msra.mxu0 %v393
      %414 = vmatprep.subr.bf16.mxu0 0
      %415 = vmatpush1.bf16.msra.mxu0 %v394
      %416 = vmatprep.subr.bf16.mxu0 0
      %417 = vmatpush1.bf16.msra.mxu0 %v395
      %418 = vmatprep.subr.bf16.mxu0 0
      %419 = vmatpush1.bf16.msra.mxu0 %v396
      %420 = vmatprep.subr.bf16.mxu0 0
      %421 = vmatpush1.bf16.msra.mxu0 %v397
      %422 = vmatprep.subr.bf16.mxu0 0
      %423 = vmatpush1.bf16.msra.mxu0 0
      %424 = vmatprep.subr.bf16.mxu0 0
      %425 = vmatpush1.bf16.msra.mxu0 0
      %426 = vmatprep.subr.bf16.mxu0 0
      %427 = vmatpush1.bf16.msra.mxu0 0
      %428 = vmatprep.subr.bf16.mxu0 0
      %429 = vmatpush1.bf16.msra.mxu0 0
      %430 = vmatprep.subr.bf16.mxu0 0
      %431 = vmatpush1.bf16.msra.mxu0 0
      %432 = vmatprep.subr.bf16.mxu0 0
      %433 = vmatpush1.bf16.msra.mxu0 0
      %434 = vmatprep.subr.bf16.mxu0 0
      %435 = vmatpush1.bf16.msra.mxu0 0
      %436 = vmatprep.subr.bf16.mxu0 0
      %437 = vmatpush1.bf16.msra.mxu0 0
      %438 = vmatprep.mubr.bf16.mxu0 0
      %439 = vmatmul.mubr.bf16.gmra.mrb[0].mxu0 %v356
      %v440 = vpop.f32.mrb[0].mxu0
      %v441 = vadd.f32 %v350, %v440
      %v442 = vpop.f32.mrb[0].mxu0
      %v443 = vpop.f32.mrb[0].mxu0
      %v444 = vadd.f32 %v350, %v443
      %v445 = vpop.f32.mrb[0].mxu0
      %446 = vdwg.mxu0
      %v447 = vxor.u32 %v441, 2147483648
      %v448 = vxor.u32 %v444, 2147483648
      %v449 = vmul.f32 %v447, 1.442695
      %v450 = vpow.pop %v449
      %v451 = vmul.f32 %v448, 1.442695
      %v452 = vpow.pop %v451
      %v453 = vadd.f32 %v450, 1.0
      %v454 = vadd.f32 %v452, 1.0
      %v455 = vrcp.pop %v453
      %v456 = vmul.f32 1.0, %v455
      %v457 = vrcp.pop %v454
      %v458 = vmul.f32 1.0, %v457
      %v459 = vmul.f32 %v441, %v456
      %v460 = vmul.f32 %v444, %v458
      %v461 = vpack.c.bf16 %v460, %v459
      %s462 = scalar_lea.vmem %s2, 64
      %v463 = vld [vmem:[%s462] sm:$0xf]
      %v464 = vld [vmem:[%s462 + $0x4] sm:$0xf]
      %v465 = vld [vmem:[%s462 + $0x8] sm:$0xf]
      %v466 = vld [vmem:[%s462 + $0xc] sm:$0xf]
      %v467 = vld [vmem:[%s462 + $0x10] sm:$0xf]
      %v468 = vld [vmem:[%s462 + $0x14] sm:$0xf]
      %v469 = vld [vmem:[%s462 + $0x18] sm:$0xf]
      %v470 = vld [vmem:[%s462 + $0x1c] sm:$0xf]
      %v471 = vld [vmem:[%s462 + $0x20] sm:$0xf]
      %v472 = vld [vmem:[%s462 + $0x24] sm:$0xf]
      %v473 = vld [vmem:[%s462 + $0x28] sm:$0xf]
      %v474 = vld [vmem:[%s462 + $0x2c] sm:$0xf]
      %v475 = vld [vmem:[%s462 + $0x30] sm:$0xf]
      %v476 = vld [vmem:[%s462 + $0x34] sm:$0xf]
      %v477 = vld [vmem:[%s462 + $0x38] sm:$0xf]
      %v478 = vld [vmem:[%s462 + $0x3c] sm:$0xf]
      %s479 = scalar_lea.vmem %s3, 1
      %v480 = vld [vmem:[%s479] sm:$0x1]
      %v482 = vlaneseq
      %v483 = vshrl.u32 %v482, 7
      %v484 = vsub.s32 0, %v483
      %v485 = vrot.slane %v480, %v484
      %v503 = vunpack.c.l.b16 %v463
      %v504 = vunpack.c.l.b16 %v464
      %v505 = vunpack.c.l.b16 %v465
      %v506 = vunpack.c.l.b16 %v466
      %v507 = vunpack.c.l.b16 %v467
      %v508 = vunpack.c.l.b16 %v468
      %v509 = vunpack.c.l.b16 %v469
      %v510 = vunpack.c.l.b16 %v470
      %v511 = vunpack.c.l.b16 %v471
      %v512 = vunpack.c.l.b16 %v472
      %v513 = vunpack.c.l.b16 %v473
      %v514 = vunpack.c.l.b16 %v474
      %v515 = vunpack.c.l.b16 %v475
      %v516 = vunpack.c.l.b16 %v476
      %v517 = vunpack.c.l.b16 %v477
      %v518 = vunpack.c.l.b16 %v478
      %v519 = vpack.c.b16 %v504, %v503
      %v520 = vpack.c.b16 %v506, %v505
      %v521 = vpack.c.b16 %v508, %v507
      %v522 = vpack.c.b16 %v510, %v509
      %v523 = vpack.c.b16 %v512, %v511
      %v524 = vpack.c.b16 %v514, %v513
      %v525 = vpack.c.b16 %v516, %v515
      %v526 = vpack.c.b16 %v518, %v517
      %535 = vmatprep.subr.bf16.mxu0 0
      %536 = vmatpush1.bf16.msra.mxu0 %v519
      %537 = vmatprep.subr.bf16.mxu0 0
      %538 = vmatpush1.bf16.msra.mxu0 %v520
      %539 = vmatprep.subr.bf16.mxu0 0
      %540 = vmatpush1.bf16.msra.mxu0 %v521
      %541 = vmatprep.subr.bf16.mxu0 0
      %542 = vmatpush1.bf16.msra.mxu0 %v522
      %543 = vmatprep.subr.bf16.mxu0 0
      %544 = vmatpush1.bf16.msra.mxu0 %v523
      %545 = vmatprep.subr.bf16.mxu0 0
      %546 = vmatpush1.bf16.msra.mxu0 %v524
      %547 = vmatprep.subr.bf16.mxu0 0
      %548 = vmatpush1.bf16.msra.mxu0 %v525
      %549 = vmatprep.subr.bf16.mxu0 0
      %550 = vmatpush1.bf16.msra.mxu0 %v526
      %551 = vmatprep.subr.bf16.mxu0 0
      %552 = vmatpush1.bf16.msra.mxu0 0
      %553 = vmatprep.subr.bf16.mxu0 0
      %554 = vmatpush1.bf16.msra.mxu0 0
      %555 = vmatprep.subr.bf16.mxu0 0
      %556 = vmatpush1.bf16.msra.mxu0 0
      %557 = vmatprep.subr.bf16.mxu0 0
      %558 = vmatpush1.bf16.msra.mxu0 0
      %559 = vmatprep.subr.bf16.mxu0 0
      %560 = vmatpush1.bf16.msra.mxu0 0
      %561 = vmatprep.subr.bf16.mxu0 0
      %562 = vmatpush1.bf16.msra.mxu0 0
      %563 = vmatprep.subr.bf16.mxu0 0
      %564 = vmatpush1.bf16.msra.mxu0 0
      %565 = vmatprep.subr.bf16.mxu0 0
      %566 = vmatpush1.bf16.msra.mxu0 0
      %567 = vmatprep.mubr.bf16.mxu0 0
      %568 = vmatmul.mubr.bf16.gmra.mrb[0].mxu0 %v461
      %v569 = vpop.f32.mrb[0].mxu0
      %v570 = vadd.f32 %v485, %v569
      %v571 = vpop.f32.mrb[0].mxu0
      %v572 = vpop.f32.mrb[0].mxu0
      %v573 = vadd.f32 %v485, %v572
      %v574 = vpop.f32.mrb[0].mxu0
      %575 = vdwg.mxu0
      %v576 = vxor.u32 %v570, 2147483648
      %v577 = vxor.u32 %v573, 2147483648
      %v578 = vmul.f32 %v576, 1.442695
      %v579 = vpow.pop %v578
      %v580 = vmul.f32 %v577, 1.442695
      %v581 = vpow.pop %v580
      %v582 = vadd.f32 %v579, 1.0
      %v583 = vadd.f32 %v581, 1.0
      %v584 = vrcp.pop %v582
      %v585 = vmul.f32 1.0, %v584
      %v586 = vrcp.pop %v583
      %v587 = vmul.f32 1.0, %v586
      %v588 = vmul.f32 %v570, %v585
      %v589 = vmul.f32 %v573, %v587
      %s590 = scalar_lea.vmem %s2, 128
      %v591 = vld [vmem:[%s590] sm:$0xf]
      %v592 = vld [vmem:[%s590 + $0x4] sm:$0xf]
      %v593 = vld [vmem:[%s590 + $0x8] sm:$0xf]
      %v594 = vld [vmem:[%s590 + $0xc] sm:$0xf]
      %v595 = vld [vmem:[%s590 + $0x10] sm:$0xf]
      %v596 = vld [vmem:[%s590 + $0x14] sm:$0xf]
      %v597 = vld [vmem:[%s590 + $0x18] sm:$0xf]
      %v598 = vld [vmem:[%s590 + $0x1c] sm:$0xf]
      %v599 = vld [vmem:[%s590 + $0x20] sm:$0xf]
      %v600 = vld [vmem:[%s590 + $0x24] sm:$0xf]
      %v601 = vld [vmem:[%s590 + $0x28] sm:$0xf]
      %v602 = vld [vmem:[%s590 + $0x2c] sm:$0xf]
      %v603 = vld [vmem:[%s590 + $0x30] sm:$0xf]
      %v604 = vld [vmem:[%s590 + $0x34] sm:$0xf]
      %v605 = vld [vmem:[%s590 + $0x38] sm:$0xf]
      %v606 = vld [vmem:[%s590 + $0x3c] sm:$0xf]
      %s607 = scalar_lea.vmem %s3, 2
      %v608 = vld [vmem:[%s607] sm:$0x1]
      %v610 = vlaneseq
      %v611 = vshrl.u32 %v610, 7
      %v612 = vsub.s32 0, %v611
      %v613 = vrot.slane %v608, %v612
      %v631 = vunpack.c.l.b16 %v591
      %v632 = vunpack.c.l.b16 %v592
      %v633 = vunpack.c.l.b16 %v593
      %v634 = vunpack.c.l.b16 %v594
      %v635 = vunpack.c.l.b16 %v595
      %v636 = vunpack.c.l.b16 %v596
      %v637 = vunpack.c.l.b16 %v597
      %v638 = vunpack.c.l.b16 %v598
      %v639 = vunpack.c.l.b16 %v599
      %v640 = vunpack.c.l.b16 %v600
      %v641 = vunpack.c.l.b16 %v601
      %v642 = vunpack.c.l.b16 %v602
      %v643 = vunpack.c.l.b16 %v603
      %v644 = vunpack.c.l.b16 %v604
      %v645 = vunpack.c.l.b16 %v605
      %v646 = vunpack.c.l.b16 %v606
      %v647 = vpack.c.b16 %v632, %v631
      %v648 = vpack.c.b16 %v634, %v633
      %v649 = vpack.c.b16 %v636, %v635
      %v650 = vpack.c.b16 %v638, %v637
      %v651 = vpack.c.b16 %v640, %v639
      %v652 = vpack.c.b16 %v642, %v641
      %v653 = vpack.c.b16 %v644, %v643
      %v654 = vpack.c.b16 %v646, %v645
      %663 = vmatprep.subr.bf16.mxu0 0
      %664 = vmatpush1.bf16.msra.mxu0 %v647
      %665 = vmatprep.subr.bf16.mxu0 0
      %666 = vmatpush1.bf16.msra.mxu0 %v648
      %667 = vmatprep.subr.bf16.mxu0 0
      %668 = vmatpush1.bf16.msra.mxu0 %v649
      %669 = vmatprep.subr.bf16.mxu0 0
      %670 = vmatpush1.bf16.msra.mxu0 %v650
      %671 = vmatprep.subr.bf16.mxu0 0
      %672 = vmatpush1.bf16.msra.mxu0 %v651
      %673 = vmatprep.subr.bf16.mxu0 0
      %674 = vmatpush1.bf16.msra.mxu0 %v652
      %675 = vmatprep.subr.bf16.mxu0 0
      %676 = vmatpush1.bf16.msra.mxu0 %v653
      %677 = vmatprep.subr.bf16.mxu0 0
      %678 = vmatpush1.bf16.msra.mxu0 %v654
      %679 = vmatprep.subr.bf16.mxu0 0
      %680 = vmatpush1.bf16.msra.mxu0 0
      %681 = vmatprep.subr.bf16.mxu0 0
      %682 = vmatpush1.bf16.msra.mxu0 0
      %683 = vmatprep.subr.bf16.mxu0 0
      %684 = vmatpush1.bf16.msra.mxu0 0
      %685 = vmatprep.subr.bf16.mxu0 0
      %686 = vmatpush1.bf16.msra.mxu0 0
      %687 = vmatprep.subr.bf16.mxu0 0
      %688 = vmatpush1.bf16.msra.mxu0 0
      %689 = vmatprep.subr.bf16.mxu0 0
      %690 = vmatpush1.bf16.msra.mxu0 0
      %691 = vmatprep.subr.bf16.mxu0 0
      %692 = vmatpush1.bf16.msra.mxu0 0
      %693 = vmatprep.subr.bf16.mxu0 0
      %694 = vmatpush1.bf16.msra.mxu0 0
      %695 = vmatprep.mubr.bf16.mxu0 0
      %696 = vmatmul.mubr.bf16.gmra.mrb[0].mxu0 %v356
      %v697 = vpop.f32.mrb[0].mxu0
      %v698 = vadd.f32 %v613, %v697
      %v699 = vpop.f32.mrb[0].mxu0
      %v700 = vpop.f32.mrb[0].mxu0
      %v701 = vadd.f32 %v613, %v700
      %v702 = vpop.f32.mrb[0].mxu0
      %703 = vdwg.mxu0
      %v704 = vxor.u32 %v698, 2147483648
      %v705 = vxor.u32 %v701, 2147483648
      %v706 = vmul.f32 %v704, 1.442695
      %v707 = vpow.pop %v706
      %v708 = vmul.f32 %v705, 1.442695
      %v709 = vpow.pop %v708
      %v710 = vadd.f32 %v707, 1.0
      %v711 = vadd.f32 %v709, 1.0
      %v712 = vrcp.pop %v710
      %v713 = vmul.f32 1.0, %v712
      %v714 = vrcp.pop %v711
      %v715 = vmul.f32 1.0, %v714
      %v716 = vmul.f32 %v698, %v713
      %v717 = vmul.f32 %v701, %v715
      %v718 = vpack.c.bf16 %v717, %v716
      %s719 = scalar_lea.vmem %s2, 192
      %v720 = vld [vmem:[%s719] sm:$0xf]
      %v721 = vld [vmem:[%s719 + $0x4] sm:$0xf]
      %v722 = vld [vmem:[%s719 + $0x8] sm:$0xf]
      %v723 = vld [vmem:[%s719 + $0xc] sm:$0xf]
      %v724 = vld [vmem:[%s719 + $0x10] sm:$0xf]
      %v725 = vld [vmem:[%s719 + $0x14] sm:$0xf]
      %v726 = vld [vmem:[%s719 + $0x18] sm:$0xf]
      %v727 = vld [vmem:[%s719 + $0x1c] sm:$0xf]
      %v728 = vld [vmem:[%s719 + $0x20] sm:$0xf]
      %v729 = vld [vmem:[%s719 + $0x24] sm:$0xf]
      %v730 = vld [vmem:[%s719 + $0x28] sm:$0xf]
      %v731 = vld [vmem:[%s719 + $0x2c] sm:$0xf]
      %v732 = vld [vmem:[%s719 + $0x30] sm:$0xf]
      %v733 = vld [vmem:[%s719 + $0x34] sm:$0xf]
      %v734 = vld [vmem:[%s719 + $0x38] sm:$0xf]
      %v735 = vld [vmem:[%s719 + $0x3c] sm:$0xf]
      %s736 = scalar_lea.vmem %s3, 3
      %v737 = vld [vmem:[%s736] sm:$0x1]
      %v739 = vlaneseq
      %v740 = vshrl.u32 %v739, 7
      %v741 = vsub.s32 0, %v740
      %v742 = vrot.slane %v737, %v741
      %v760 = vunpack.c.l.b16 %v720
      %v761 = vunpack.c.l.b16 %v721
      %v762 = vunpack.c.l.b16 %v722
      %v763 = vunpack.c.l.b16 %v723
      %v764 = vunpack.c.l.b16 %v724
      %v765 = vunpack.c.l.b16 %v725
      %v766 = vunpack.c.l.b16 %v726
      %v767 = vunpack.c.l.b16 %v727
      %v768 = vunpack.c.l.b16 %v728
      %v769 = vunpack.c.l.b16 %v729
      %v770 = vunpack.c.l.b16 %v730
      %v771 = vunpack.c.l.b16 %v731
      %v772 = vunpack.c.l.b16 %v732
      %v773 = vunpack.c.l.b16 %v733
      %v774 = vunpack.c.l.b16 %v734
      %v775 = vunpack.c.l.b16 %v735
      %v776 = vpack.c.b16 %v761, %v760
      %v777 = vpack.c.b16 %v763, %v762
      %v778 = vpack.c.b16 %v765, %v764
      %v779 = vpack.c.b16 %v767, %v766
      %v780 = vpack.c.b16 %v769, %v768
      %v781 = vpack.c.b16 %v771, %v770
      %v782 = vpack.c.b16 %v773, %v772
      %v783 = vpack.c.b16 %v775, %v774
      %792 = vmatprep.subr.bf16.mxu0 0
      %793 = vmatpush1.bf16.msra.mxu0 %v776
      %794 = vmatprep.subr.bf16.mxu0 0
      %795 = vmatpush1.bf16.msra.mxu0 %v777
      %796 = vmatprep.subr.bf16.mxu0 0
      %797 = vmatpush1.bf16.msra.mxu0 %v778
      %798 = vmatprep.subr.bf16.mxu0 0
      %799 = vmatpush1.bf16.msra.mxu0 %v779
      %800 = vmatprep.subr.bf16.mxu0 0
      %801 = vmatpush1.bf16.msra.mxu0 %v780
      %802 = vmatprep.subr.bf16.mxu0 0
      %803 = vmatpush1.bf16.msra.mxu0 %v781
      %804 = vmatprep.subr.bf16.mxu0 0
      %805 = vmatpush1.bf16.msra.mxu0 %v782
      %806 = vmatprep.subr.bf16.mxu0 0
      %807 = vmatpush1.bf16.msra.mxu0 %v783
      %808 = vmatprep.subr.bf16.mxu0 0
      %809 = vmatpush1.bf16.msra.mxu0 0
      %810 = vmatprep.subr.bf16.mxu0 0
      %811 = vmatpush1.bf16.msra.mxu0 0
      %812 = vmatprep.subr.bf16.mxu0 0
      %813 = vmatpush1.bf16.msra.mxu0 0
      %814 = vmatprep.subr.bf16.mxu0 0
      %815 = vmatpush1.bf16.msra.mxu0 0
      %816 = vmatprep.subr.bf16.mxu0 0
      %817 = vmatpush1.bf16.msra.mxu0 0
      %818 = vmatprep.subr.bf16.mxu0 0
      %819 = vmatpush1.bf16.msra.mxu0 0
      %820 = vmatprep.subr.bf16.mxu0 0
      %821 = vmatpush1.bf16.msra.mxu0 0
      %822 = vmatprep.subr.bf16.mxu0 0
      %823 = vmatpush1.bf16.msra.mxu0 0
      %824 = vmatprep.mubr.bf16.mxu0 0
      %825 = vmatmul.mubr.bf16.gmra.mrb[0].mxu0 %v718
      %v826 = vpop.f32.mrb[0].mxu0
      %v827 = vadd.f32 %v742, %v826
      %v828 = vpop.f32.mrb[0].mxu0
      %v829 = vpop.f32.mrb[0].mxu0
      %v830 = vadd.f32 %v742, %v829
      %v831 = vpop.f32.mrb[0].mxu0
      %832 = vdwg.mxu0
      %v833 = vxor.u32 %v827, 2147483648
      %v834 = vxor.u32 %v830, 2147483648
      %v835 = vmul.f32 %v833, 1.442695
      %v836 = vpow.pop %v835
      %v837 = vmul.f32 %v834, 1.442695
      %v838 = vpow.pop %v837
      %v839 = vadd.f32 %v836, 1.0
      %v840 = vadd.f32 %v838, 1.0
      %v841 = vrcp.pop %v839
      %v842 = vmul.f32 1.0, %v841
      %v843 = vrcp.pop %v840
      %v844 = vmul.f32 1.0, %v843
      %v845 = vmul.f32 %v827, %v842
      %v846 = vmul.f32 %v830, %v844
      %v847 = vld [vmem:[%s320] sm:$0xf]
      %v848 = vld [vmem:[%s320 + $0x4] sm:$0xf]
      %v849 = vld [vmem:[%s320 + $0x8] sm:$0xf]
      %v850 = vld [vmem:[%s320 + $0xc] sm:$0xf]
      %v851 = vld [vmem:[%s320 + $0x10] sm:$0xf]
      %v852 = vld [vmem:[%s320 + $0x14] sm:$0xf]
      %v853 = vld [vmem:[%s320 + $0x18] sm:$0xf]
      %v854 = vld [vmem:[%s320 + $0x1c] sm:$0xf]
      %v855 = vld [vmem:[%s4] sm:$0xf]
      %v856 = vld [vmem:[%s4 + $0x4] sm:$0xf]
      %v857 = vld [vmem:[%s4 + $0x8] sm:$0xf]
      %v858 = vld [vmem:[%s4 + $0xc] sm:$0xf]
      %v859 = vld [vmem:[%s5] sm:$0x1]
      %v861 = vlaneseq
      %v862 = vshrl.u32 %v861, 7
      %v863 = vsub.s32 0, %v862
      %v864 = vrot.slane %v859, %v863
      %v874 = vunpack.c.l.b16 %v847
      %v875 = vunpack.c.l.b16 %v848
      %v876 = vunpack.c.l.b16 %v849
      %v877 = vunpack.c.l.b16 %v850
      %v878 = vunpack.c.l.b16 %v851
      %v879 = vunpack.c.l.b16 %v852
      %v880 = vunpack.c.l.b16 %v853
      %v881 = vunpack.c.l.b16 %v854
      %v882 = vpack.c.b16 %v875, %v874
      %v883 = vpack.c.b16 %v877, %v876
      %v884 = vpack.c.b16 %v879, %v878
      %v885 = vpack.c.b16 %v881, %v880
      %v890 = vunpack.c.l.b16 %v855
      %v891 = vunpack.c.l.b16 %v856
      %v892 = vunpack.c.l.b16 %v857
      %v893 = vunpack.c.l.b16 %v858
      %v894 = vpack.c.b16 %v891, %v890
      %v895 = vpack.c.b16 %v893, %v892
      %vm898 = vcmask 261120
      %v900 = vsel %vm898, %v882, 0
      %v903 = vsel %vm898, %v883, 0
      %v906 = vsel %vm898, %v884, 0
      %v909 = vsel %vm898, %v885, 0
      %911 = vmatprep.subr.bf16.mxu0 0
      %912 = vmatpush1.bf16.msra.mxu0 %v894
      %913 = vmatprep.subr.bf16.mxu0 0
      %914 = vmatpush1.bf16.msra.mxu0 %v895
      %915 = vmatprep.subr.bf16.mxu0 0
      %916 = vmatpush1.bf16.msra.mxu0 0
      %917 = vmatprep.subr.bf16.mxu0 0
      %918 = vmatpush1.bf16.msra.mxu0 0
      %919 = vmatprep.subr.bf16.mxu0 0
      %920 = vmatpush1.bf16.msra.mxu0 0
      %921 = vmatprep.subr.bf16.mxu0 0
      %922 = vmatpush1.bf16.msra.mxu0 0
      %923 = vmatprep.subr.bf16.mxu0 0
      %924 = vmatpush1.bf16.msra.mxu0 0
      %925 = vmatprep.subr.bf16.mxu0 0
      %926 = vmatpush1.bf16.msra.mxu0 0
      %927 = vmatprep.subr.bf16.mxu0 0
      %928 = vmatpush1.bf16.msra.mxu0 0
      %929 = vmatprep.subr.bf16.mxu0 0
      %930 = vmatpush1.bf16.msra.mxu0 0
      %931 = vmatprep.subr.bf16.mxu0 0
      %932 = vmatpush1.bf16.msra.mxu0 0
      %933 = vmatprep.subr.bf16.mxu0 0
      %934 = vmatpush1.bf16.msra.mxu0 0
      %935 = vmatprep.subr.bf16.mxu0 0
      %936 = vmatpush1.bf16.msra.mxu0 0
      %937 = vmatprep.subr.bf16.mxu0 0
      %938 = vmatpush1.bf16.msra.mxu0 0
      %939 = vmatprep.subr.bf16.mxu0 0
      %940 = vmatpush1.bf16.msra.mxu0 0
      %941 = vmatprep.subr.bf16.mxu0 0
      %942 = vmatpush1.bf16.msra.mxu0 0
      %943 = vmatprep.mubr.bf16.mxu0 0
      %944 = vmatmul.mubr.bf16.gmra.mrb[0].mxu0 %v900
      %v945 = vpop.f32.mrb[0].mxu0
      %v946 = vadd.f32 %v864, %v945
      %v947 = vpop.f32.mrb[0].mxu0
      %v948 = vpop.f32.mrb[0].mxu0
      %v949 = vadd.f32 %v864, %v948
      %v950 = vpop.f32.mrb[0].mxu0
      %951 = vmatprep.mubr.bf16.mxu0 0
      %952 = vmatmul.mubr.bf16.gmra.mrb[0].mxu0 %v903
      %v953 = vpop.f32.mrb[0].mxu0
      %v954 = vadd.f32 %v864, %v953
      %v955 = vpop.f32.mrb[0].mxu0
      %v956 = vpop.f32.mrb[0].mxu0
      %v957 = vadd.f32 %v864, %v956
      %v958 = vpop.f32.mrb[0].mxu0
      %959 = vmatprep.mubr.bf16.mxu0 0
      %960 = vmatmul.mubr.bf16.gmra.mrb[0].mxu0 %v906
      %v961 = vpop.f32.mrb[0].mxu0
      %v962 = vadd.f32 %v864, %v961
      %v963 = vpop.f32.mrb[0].mxu0
      %v964 = vpop.f32.mrb[0].mxu0
      %v965 = vadd.f32 %v864, %v964
      %v966 = vpop.f32.mrb[0].mxu0
      %967 = vmatprep.mubr.bf16.mxu0 0
      %968 = vmatmul.mubr.bf16.gmra.mrb[0].mxu0 %v909
      %v969 = vpop.f32.mrb[0].mxu0
      %v970 = vadd.f32 %v864, %v969
      %v971 = vpop.f32.mrb[0].mxu0
      %v972 = vpop.f32.mrb[0].mxu0
      %v973 = vadd.f32 %v864, %v972
      %v974 = vpop.f32.mrb[0].mxu0
      %975 = vdwg.mxu0
      %v976 = vxor.u32 %v946, 2147483648
      %v977 = vxor.u32 %v949, 2147483648
      %v978 = vxor.u32 %v954, 2147483648
      %v979 = vxor.u32 %v957, 2147483648
      %v980 = vxor.u32 %v962, 2147483648
      %v981 = vxor.u32 %v965, 2147483648
      %v982 = vxor.u32 %v970, 2147483648
      %v983 = vxor.u32 %v973, 2147483648
      %v984 = vmul.f32 %v976, 1.442695
      %v985 = vpow.pop %v984
      %v986 = vmul.f32 %v977, 1.442695
      %v987 = vpow.pop %v986
      %v988 = vmul.f32 %v978, 1.442695
      %v989 = vpow.pop %v988
      %v990 = vmul.f32 %v979, 1.442695
      %v991 = vpow.pop %v990
      %v992 = vmul.f32 %v980, 1.442695
      %v993 = vpow.pop %v992
      %v994 = vmul.f32 %v981, 1.442695
      %v995 = vpow.pop %v994
      %v996 = vmul.f32 %v982, 1.442695
      %v997 = vpow.pop %v996
      %v998 = vmul.f32 %v983, 1.442695
      %v999 = vpow.pop %v998
      %v1000 = vadd.f32 %v985, 1.0
      %v1001 = vadd.f32 %v987, 1.0
      %v1002 = vadd.f32 %v989, 1.0
      %v1003 = vadd.f32 %v991, 1.0
      %v1004 = vadd.f32 %v993, 1.0
      %v1005 = vadd.f32 %v995, 1.0
      %v1006 = vadd.f32 %v997, 1.0
      %v1007 = vadd.f32 %v999, 1.0
      %v1008 = vrcp.pop %v1000
      %v1009 = vmul.f32 1.0, %v1008
      %v1010 = vrcp.pop %v1001
      %v1011 = vmul.f32 1.0, %v1010
      %v1012 = vrcp.pop %v1002
      %v1013 = vmul.f32 1.0, %v1012
      %v1014 = vrcp.pop %v1003
      %v1015 = vmul.f32 1.0, %v1014
      %v1016 = vrcp.pop %v1004
      %v1017 = vmul.f32 1.0, %v1016
      %v1018 = vrcp.pop %v1005
      %v1019 = vmul.f32 1.0, %v1018
      %v1020 = vrcp.pop %v1006
      %v1021 = vmul.f32 1.0, %v1020
      %v1022 = vrcp.pop %v1007
      %v1023 = vmul.f32 1.0, %v1022
      %v1024 = vmul.f32 %v946, %v1009
      %v1025 = vmul.f32 %v949, %v1011
      %v1026 = vmul.f32 %v954, %v1013
      %v1027 = vmul.f32 %v957, %v1015
      %v1028 = vmul.f32 %v962, %v1017
      %v1029 = vmul.f32 %v965, %v1019
      %v1030 = vmul.f32 %v970, %v1021
      %v1031 = vmul.f32 %v973, %v1023
      %v1032 = vpack.c.bf16 %v1025, %v1024
      %v1033 = vpack.c.bf16 %v1027, %v1026
      %v1034 = vpack.c.bf16 %v1029, %v1028
      %v1035 = vpack.c.bf16 %v1031, %v1030
      %v1036 = vld [vmem:[%s6] sm:$0xf]
      %v1037 = vld [vmem:[%s6 + $0x4] sm:$0xf]
      %v1038 = vld [vmem:[%s6 + $0x8] sm:$0xf]
      %v1039 = vld [vmem:[%s6 + $0xc] sm:$0xf]
      %v1040 = vld [vmem:[%s7] sm:$0x1]
      %v1042 = vlaneseq
      %v1043 = vshrl.u32 %v1042, 7
      %v1044 = vsub.s32 0, %v1043
      %v1045 = vrot.slane %v1040, %v1044
      %v1051 = vunpack.c.l.b16 %v1036
      %v1052 = vunpack.c.l.b16 %v1037
      %v1053 = vunpack.c.l.b16 %v1038
      %v1054 = vunpack.c.l.b16 %v1039
      %v1055 = vpack.c.b16 %v1052, %v1051
      %v1056 = vpack.c.b16 %v1054, %v1053
      %v1060 = vsel %vm898, %v1032, 0
      %v1063 = vsel %vm898, %v1033, 0
      %v1066 = vsel %vm898, %v1034, 0
      %v1069 = vsel %vm898, %v1035, 0
      %1071 = vmatprep.subr.bf16.mxu0 0
      %1072 = vmatpush1.bf16.msra.mxu0 %v1055
      %1073 = vmatprep.subr.bf16.mxu0 0
      %1074 = vmatpush1.bf16.msra.mxu0 %v1056
      %1075 = vmatprep.subr.bf16.mxu0 0
      %1076 = vmatpush1.bf16.msra.mxu0 0
      %1077 = vmatprep.subr.bf16.mxu0 0
      %1078 = vmatpush1.bf16.msra.mxu0 0
      %1079 = vmatprep.subr.bf16.mxu0 0
      %1080 = vmatpush1.bf16.msra.mxu0 0
      %1081 = vmatprep.subr.bf16.mxu0 0
      %1082 = vmatpush1.bf16.msra.mxu0 0
      %1083 = vmatprep.subr.bf16.mxu0 0
      %1084 = vmatpush1.bf16.msra.mxu0 0
      %1085 = vmatprep.subr.bf16.mxu0 0
      %1086 = vmatpush1.bf16.msra.mxu0 0
      %1087 = vmatprep.subr.bf16.mxu0 0
      %1088 = vmatpush1.bf16.msra.mxu0 0
      %1089 = vmatprep.subr.bf16.mxu0 0
      %1090 = vmatpush1.bf16.msra.mxu0 0
      %1091 = vmatprep.subr.bf16.mxu0 0
      %1092 = vmatpush1.bf16.msra.mxu0 0
      %1093 = vmatprep.subr.bf16.mxu0 0
      %1094 = vmatpush1.bf16.msra.mxu0 0
      %1095 = vmatprep.subr.bf16.mxu0 0
      %1096 = vmatpush1.bf16.msra.mxu0 0
      %1097 = vmatprep.subr.bf16.mxu0 0
      %1098 = vmatpush1.bf16.msra.mxu0 0
      %1099 = vmatprep.subr.bf16.mxu0 0
      %1100 = vmatpush1.bf16.msra.mxu0 0
      %1101 = vmatprep.subr.bf16.mxu0 0
      %1102 = vmatpush1.bf16.msra.mxu0 0
      %1103 = vmatprep.mubr.bf16.mxu0 0
      %1104 = vmatmul.mubr.bf16.gmra.mrb[0].mxu0 %v1060
      %v1105 = vpop.f32.mrb[0].mxu0
      %v1106 = vadd.f32 %v1045, %v1105
      %v1107 = vpop.f32.mrb[0].mxu0
      %v1108 = vpop.f32.mrb[0].mxu0
      %v1109 = vadd.f32 %v1045, %v1108
      %v1110 = vpop.f32.mrb[0].mxu0
      %1111 = vmatprep.mubr.bf16.mxu0 0
      %1112 = vmatmul.mubr.bf16.gmra.mrb[0].mxu0 %v1063
      %v1113 = vpop.f32.mrb[0].mxu0
      %v1114 = vadd.f32 %v1045, %v1113
      %v1115 = vpop.f32.mrb[0].mxu0
      %v1116 = vpop.f32.mrb[0].mxu0
      %v1117 = vadd.f32 %v1045, %v1116
      %v1118 = vpop.f32.mrb[0].mxu0
      %1119 = vmatprep.mubr.bf16.mxu0 0
      %1120 = vmatmul.mubr.bf16.gmra.mrb[0].mxu0 %v1066
      %v1121 = vpop.f32.mrb[0].mxu0
      %v1122 = vadd.f32 %v1045, %v1121
      %v1123 = vpop.f32.mrb[0].mxu0
      %v1124 = vpop.f32.mrb[0].mxu0
      %v1125 = vadd.f32 %v1045, %v1124
      %v1126 = vpop.f32.mrb[0].mxu0
      %1127 = vmatprep.mubr.bf16.mxu0 0
      %1128 = vmatmul.mubr.bf16.gmra.mrb[0].mxu0 %v1069
      %v1129 = vpop.f32.mrb[0].mxu0
      %v1130 = vadd.f32 %v1045, %v1129
      %v1131 = vpop.f32.mrb[0].mxu0
      %v1132 = vpop.f32.mrb[0].mxu0
      %v1133 = vadd.f32 %v1045, %v1132
      %v1134 = vpop.f32.mrb[0].mxu0
      %1135 = vdwg.mxu0
      %v1136 = vxor.u32 %v1106, 2147483648
      %v1137 = vxor.u32 %v1109, 2147483648
      %v1138 = vxor.u32 %v1114, 2147483648
      %v1139 = vxor.u32 %v1117, 2147483648
      %v1140 = vxor.u32 %v1122, 2147483648
      %v1141 = vxor.u32 %v1125, 2147483648
      %v1142 = vxor.u32 %v1130, 2147483648
      %v1143 = vxor.u32 %v1133, 2147483648
      %v1144 = vmul.f32 %v1136, 1.442695
      %v1145 = vpow.pop %v1144
      %v1146 = vmul.f32 %v1137, 1.442695
      %v1147 = vpow.pop %v1146
      %v1148 = vmul.f32 %v1138, 1.442695
      %v1149 = vpow.pop %v1148
      %v1150 = vmul.f32 %v1139, 1.442695
      %v1151 = vpow.pop %v1150
      %v1152 = vmul.f32 %v1140, 1.442695
      %v1153 = vpow.pop %v1152
      %v1154 = vmul.f32 %v1141, 1.442695
      %v1155 = vpow.pop %v1154
      %v1156 = vmul.f32 %v1142, 1.442695
      %v1157 = vpow.pop %v1156
      %v1158 = vmul.f32 %v1143, 1.442695
      %v1159 = vpow.pop %v1158
      %v1160 = vadd.f32 %v1145, 1.0
      %v1161 = vadd.f32 %v1147, 1.0
      %v1162 = vadd.f32 %v1149, 1.0
      %v1163 = vadd.f32 %v1151, 1.0
      %v1164 = vadd.f32 %v1153, 1.0
      %v1165 = vadd.f32 %v1155, 1.0
      %v1166 = vadd.f32 %v1157, 1.0
      %v1167 = vadd.f32 %v1159, 1.0
      %v1168 = vrcp.pop %v1160
      %v1169 = vmul.f32 1.0, %v1168
      %v1170 = vrcp.pop %v1161
      %v1171 = vmul.f32 1.0, %v1170
      %v1172 = vrcp.pop %v1162
      %v1173 = vmul.f32 1.0, %v1172
      %v1174 = vrcp.pop %v1163
      %v1175 = vmul.f32 1.0, %v1174
      %v1176 = vrcp.pop %v1164
      %v1177 = vmul.f32 1.0, %v1176
      %v1178 = vrcp.pop %v1165
      %v1179 = vmul.f32 1.0, %v1178
      %v1180 = vrcp.pop %v1166
      %v1181 = vmul.f32 1.0, %v1180
      %v1182 = vrcp.pop %v1167
      %v1183 = vmul.f32 1.0, %v1182
      %v1184 = vmul.f32 %v1106, %v1169
      %v1185 = vmul.f32 %v1109, %v1171
      %v1186 = vmul.f32 %v1114, %v1173
      %v1187 = vmul.f32 %v1117, %v1175
      %v1188 = vmul.f32 %v1122, %v1177
      %v1189 = vmul.f32 %v1125, %v1179
      %v1190 = vmul.f32 %v1130, %v1181
      %v1191 = vmul.f32 %v1133, %v1183
      %1192 = vst [vmem:[#allocation2] sm:$0xff] %v1184
      %1193 = vst [vmem:[#allocation3] sm:$0x3] %v845
      %s1194 = scalar_lea.vmem [#allocation2], 8
      %1195 = vst [vmem:[%s1194] sm:$0xff] %v1185
      %s1196 = scalar_lea.vmem [#allocation3], 2
      %1197 = vst [vmem:[%s1196 - $0x2] sm:$0xc] %v845
      %s1198 = scalar_lea.vmem [#allocation2], 16
      %1199 = vst [vmem:[%s1198] sm:$0xff] %v1186
      %s1200 = scalar_lea.vmem [#allocation3], 4
      %1201 = vst [vmem:[%s1200 - $0x4] sm:$0x30] %v845
      %s1202 = scalar_lea.vmem [#allocation2], 24
      %1203 = vst [vmem:[%s1202] sm:$0xff] %v1187
      %s1204 = scalar_lea.vmem [#allocation3], 6
      %1205 = vst [vmem:[%s1204 - $0x6] sm:$0xc0] %v845
      %s1206 = scalar_lea.vmem [#allocation2], 32
      %1207 = vst [vmem:[%s1206] sm:$0xff] %v1188
      %s1208 = scalar_lea.vmem [#allocation3], 8
      %1209 = vst [vmem:[%s1208] sm:$0x3] %v846
      %s1210 = scalar_lea.vmem [#allocation2], 40
      %1211 = vst [vmem:[%s1210] sm:$0xff] %v1189
      %s1212 = scalar_lea.vmem [#allocation3], 10
      %1213 = vst [vmem:[%s1212 - $0x2] sm:$0xc] %v846
      %s1214 = scalar_lea.vmem [#allocation2], 48
      %1215 = vst [vmem:[%s1214] sm:$0xff] %v1190
      %s1216 = scalar_lea.vmem [#allocation3], 12
      %1217 = vst [vmem:[%s1216 - $0x4] sm:$0x30] %v846
      %s1218 = scalar_lea.vmem [#allocation2], 56
      %1219 = vst [vmem:[%s1218] sm:$0xff] %v1191
      %s1220 = scalar_lea.vmem [#allocation3], 14
      %1221 = vst [vmem:[%s1220 - $0x6] sm:$0xc0] %v846
      %1222 = vst [vmem:[#allocation4] sm:$0x3] 0.0
      %1223 = vst [vmem:[#allocation4 + $0x2] sm:$0x3] 0.0
      %1224 = vst [vmem:[#allocation4 + $0x4] sm:$0x3] 0.0
      %1225 = vst [vmem:[#allocation4 + $0x6] sm:$0x3] 0.0
      %1226 = vst [vmem:[#allocation4 + $0x8] sm:$0x3] 0.0
      %1227 = vst [vmem:[#allocation4 + $0xa] sm:$0x3] 0.0
      %1228 = vst [vmem:[#allocation4 + $0xc] sm:$0x3] 0.0
      %1229 = vst [vmem:[#allocation4 + $0xe] sm:$0x3] 0.0
      %v1230 = vld [vmem:[#allocation2] sm:$0xff]
      %v1231 = vld [vmem:[#allocation3] sm:$0x3]
      %v1232 = vld [vmem:[#allocation4] sm:$0x3]
      %v1233 = vld [vmem:[#allocation4 + $0x2] sm:$0x3]
      %v1234 = vld [vmem:[#allocation4 + $0x4] sm:$0x3]
      %v1235 = vld [vmem:[#allocation4 + $0x6] sm:$0x3]
      %v1236 = vld [vmem:[#allocation4 + $0x8] sm:$0x3]
      %v1237 = vld [vmem:[#allocation4 + $0xa] sm:$0x3]
      %v1238 = vld [vmem:[#allocation4 + $0xc] sm:$0x3]
      %v1239 = vld [vmem:[#allocation4 + $0xe] sm:$0x3]
      %v1241 = vcombine.high %v1230, %v1230
      %v1243 = vunpack.c.l.s4 1966171168
      %v1244 = vunpack.c.0.s8 %v1243
      %v1245 = vlaneseq
      %v1246 = vshrl.u32 %v1245, 7
      %v1247 = vsub.s32 %v1244, %v1246
      %v1248 = vrot.slane %v1230, %v1247
      %v1250 = vunpack.c.l.s4 1966171168
      %v1251 = vunpack.c.0.s8 %v1250
      %v1252 = vlaneseq
      %v1253 = vshrl.u32 %v1252, 7
      %v1254 = vsub.s32 %v1251, %v1253
      %v1255 = vrot.slane %v1241, %v1254
      %v1256 = vcombine.high %v1248, %v1248
      %v1257 = vcombine.high %v1255, %v1255
      %v1259 = vunpack.c.l.s4 1966171168
      %v1260 = vunpack.c.0.s8 %v1259
      %v1261 = vlaneseq
      %v1262 = vshrl.u32 %v1261, 7
      %v1263 = vsub.s32 %v1260, %v1262
      %v1264 = vrot.slane %v1248, %v1263
      %v1266 = vunpack.c.l.s4 1966171168
      %v1267 = vunpack.c.0.s8 %v1266
      %v1268 = vlaneseq
      %v1269 = vshrl.u32 %v1268, 7
      %v1270 = vsub.s32 %v1267, %v1269
      %v1271 = vrot.slane %v1255, %v1270
      %v1273 = vunpack.c.l.s4 1966171168
      %v1274 = vunpack.c.0.s8 %v1273
      %v1275 = vlaneseq
      %v1276 = vshrl.u32 %v1275, 7
      %v1277 = vsub.s32 %v1274, %v1276
      %v1278 = vrot.slane %v1256, %v1277
      %v1280 = vunpack.c.l.s4 1966171168
      %v1281 = vunpack.c.0.s8 %v1280
      %v1282 = vlaneseq
      %v1283 = vshrl.u32 %v1282, 7
      %v1284 = vsub.s32 %v1281, %v1283
      %v1285 = vrot.slane %v1257, %v1284
      %v1286 = vcombine.high %v1264, %v1264
      %v1287 = vcombine.high %v1271, %v1271
      %v1288 = vcombine.high %v1278, %v1278
      %v1289 = vcombine.high %v1285, %v1285
      %v1290 = vlaneseq
      %v1291 = vshrl.u32 %v1290, 7
      %v1292 = vsub.s32 0, %v1291
      %v1293 = vrot.slane %v1264, %v1292
      %v1294 = vlaneseq
      %v1295 = vshrl.u32 %v1294, 7
      %v1296 = vsub.s32 0, %v1295
      %v1297 = vrot.slane %v1278, %v1296
      %v1298 = vlaneseq
      %v1299 = vshrl.u32 %v1298, 7
      %v1300 = vsub.s32 0, %v1299
      %v1301 = vrot.slane %v1286, %v1300
      %v1302 = vlaneseq
      %v1303 = vshrl.u32 %v1302, 7
      %v1304 = vsub.s32 0, %v1303
      %v1305 = vrot.slane %v1288, %v1304
      %v1306 = vlaneseq
      %v1307 = vshrl.u32 %v1306, 7
      %v1308 = vsub.s32 0, %v1307
      %v1309 = vrot.slane %v1271, %v1308
      %v1310 = vlaneseq
      %v1311 = vshrl.u32 %v1310, 7
      %v1312 = vsub.s32 0, %v1311
      %v1313 = vrot.slane %v1285, %v1312
      %v1314 = vlaneseq
      %v1315 = vshrl.u32 %v1314, 7
      %v1316 = vsub.s32 0, %v1315
      %v1317 = vrot.slane %v1287, %v1316
      %v1318 = vlaneseq
      %v1319 = vshrl.u32 %v1318, 7
      %v1320 = vsub.s32 0, %v1319
      %v1321 = vrot.slane %v1289, %v1320
      %v1330 = vmul.f32 %v1293, %v1231
      %v1331 = vmul.f32 %v1297, %v1231
      %v1332 = vmul.f32 %v1301, %v1231
      %v1333 = vmul.f32 %v1305, %v1231
      %v1334 = vmul.f32 %v1309, %v1231
      %v1335 = vmul.f32 %v1313, %v1231
      %v1336 = vmul.f32 %v1317, %v1231
      %v1337 = vmul.f32 %v1321, %v1231
      %v1338 = vadd.f32 %v1232, %v1330
      %v1339 = vadd.f32 %v1233, %v1331
      %v1340 = vadd.f32 %v1234, %v1332
      %v1341 = vadd.f32 %v1235, %v1333
      %v1342 = vadd.f32 %v1236, %v1334
      %v1343 = vadd.f32 %v1237, %v1335
      %v1344 = vadd.f32 %v1238, %v1336
      %v1345 = vadd.f32 %v1239, %v1337
      %1346 = vst [vmem:[#allocation4] sm:$0x3] %v1338
      %1347 = vst [vmem:[#allocation4 + $0x2] sm:$0x3] %v1339
      %1348 = vst [vmem:[#allocation4 + $0x4] sm:$0x3] %v1340
      %1349 = vst [vmem:[#allocation4 + $0x6] sm:$0x3] %v1341
      %1350 = vst [vmem:[#allocation4 + $0x8] sm:$0x3] %v1342
      %1351 = vst [vmem:[#allocation4 + $0xa] sm:$0x3] %v1343
      %1352 = vst [vmem:[#allocation4 + $0xc] sm:$0x3] %v1344
      %1353 = vst [vmem:[#allocation4 + $0xe] sm:$0x3] %v1345
      %v1354 = vld [vmem:[%s1194] sm:$0xff]
      %v1355 = vld [vmem:[%s1196] sm:$0x3]
      %v1356 = vld [vmem:[#allocation4] sm:$0x3]
      %v1357 = vld [vmem:[#allocation4 + $0x2] sm:$0x3]
      %v1358 = vld [vmem:[#allocation4 + $0x4] sm:$0x3]
      %v1359 = vld [vmem:[#allocation4 + $0x6] sm:$0x3]
      %v1360 = vld [vmem:[#allocation4 + $0x8] sm:$0x3]
      %v1361 = vld [vmem:[#allocation4 + $0xa] sm:$0x3]
      %v1362 = vld [vmem:[#allocation4 + $0xc] sm:$0x3]
      %v1363 = vld [vmem:[#allocation4 + $0xe] sm:$0x3]
      %v1365 = vcombine.high %v1354, %v1354
      %v1367 = vunpack.c.l.s4 1966171168
      %v1368 = vunpack.c.0.s8 %v1367
      %v1369 = vlaneseq
      %v1370 = vshrl.u32 %v1369, 7
      %v1371 = vsub.s32 %v1368, %v1370
      %v1372 = vrot.slane %v1354, %v1371
      %v1374 = vunpack.c.l.s4 1966171168
      %v1375 = vunpack.c.0.s8 %v1374
      %v1376 = vlaneseq
      %v1377 = vshrl.u32 %v1376, 7
      %v1378 = vsub.s32 %v1375, %v1377
      %v1379 = vrot.slane %v1365, %v1378
      %v1380 = vcombine.high %v1372, %v1372
      %v1381 = vcombine.high %v1379, %v1379
      %v1383 = vunpack.c.l.s4 1966171168
      %v1384 = vunpack.c.0.s8 %v1383
      %v1385 = vlaneseq
      %v1386 = vshrl.u32 %v1385, 7
      %v1387 = vsub.s32 %v1384, %v1386
      %v1388 = vrot.slane %v1372, %v1387
      %v1390 = vunpack.c.l.s4 1966171168
      %v1391 = vunpack.c.0.s8 %v1390
      %v1392 = vlaneseq
      %v1393 = vshrl.u32 %v1392, 7
      %v1394 = vsub.s32 %v1391, %v1393
      %v1395 = vrot.slane %v1379, %v1394
      %v1397 = vunpack.c.l.s4 1966171168
      %v1398 = vunpack.c.0.s8 %v1397
      %v1399 = vlaneseq
      %v1400 = vshrl.u32 %v1399, 7
      %v1401 = vsub.s32 %v1398, %v1400
      %v1402 = vrot.slane %v1380, %v1401
      %v1404 = vunpack.c.l.s4 1966171168
      %v1405 = vunpack.c.0.s8 %v1404
      %v1406 = vlaneseq
      %v1407 = vshrl.u32 %v1406, 7
      %v1408 = vsub.s32 %v1405, %v1407
      %v1409 = vrot.slane %v1381, %v1408
      %v1410 = vcombine.high %v1388, %v1388
      %v1411 = vcombine.high %v1395, %v1395
      %v1412 = vcombine.high %v1402, %v1402
      %v1413 = vcombine.high %v1409, %v1409
      %v1414 = vlaneseq
      %v1415 = vshrl.u32 %v1414, 7
      %v1416 = vsub.s32 0, %v1415
      %v1417 = vrot.slane %v1388, %v1416
      %v1418 = vlaneseq
      %v1419 = vshrl.u32 %v1418, 7
      %v1420 = vsub.s32 0, %v1419
      %v1421 = vrot.slane %v1402, %v1420
      %v1422 = vlaneseq
      %v1423 = vshrl.u32 %v1422, 7
      %v1424 = vsub.s32 0, %v1423
      %v1425 = vrot.slane %v1410, %v1424
      %v1426 = vlaneseq
      %v1427 = vshrl.u32 %v1426, 7
      %v1428 = vsub.s32 0, %v1427
      %v1429 = vrot.slane %v1412, %v1428
      %v1430 = vlaneseq
      %v1431 = vshrl.u32 %v1430, 7
      %v1432 = vsub.s32 0, %v1431
      %v1433 = vrot.slane %v1395, %v1432
      %v1434 = vlaneseq
      %v1435 = vshrl.u32 %v1434, 7
      %v1436 = vsub.s32 0, %v1435
      %v1437 = vrot.slane %v1409, %v1436
      %v1438 = vlaneseq
      %v1439 = vshrl.u32 %v1438, 7
      %v1440 = vsub.s32 0, %v1439
      %v1441 = vrot.slane %v1411, %v1440
      %v1442 = vlaneseq
      %v1443 = vshrl.u32 %v1442, 7
      %v1444 = vsub.s32 0, %v1443
      %v1445 = vrot.slane %v1413, %v1444
      %v1454 = vmul.f32 %v1417, %v1355
      %v1455 = vmul.f32 %v1421, %v1355
      %v1456 = vmul.f32 %v1425, %v1355
      %v1457 = vmul.f32 %v1429, %v1355
      %v1458 = vmul.f32 %v1433, %v1355
      %v1459 = vmul.f32 %v1437, %v1355
      %v1460 = vmul.f32 %v1441, %v1355
      %v1461 = vmul.f32 %v1445, %v1355
      %v1462 = vadd.f32 %v1356, %v1454
      %v1463 = vadd.f32 %v1357, %v1455
      %v1464 = vadd.f32 %v1358, %v1456
      %v1465 = vadd.f32 %v1359, %v1457
      %v1466 = vadd.f32 %v1360, %v1458
      %v1467 = vadd.f32 %v1361, %v1459
      %v1468 = vadd.f32 %v1362, %v1460
      %v1469 = vadd.f32 %v1363, %v1461
      %1470 = vst [vmem:[#allocation4] sm:$0x3] %v1462
      %1471 = vst [vmem:[#allocation4 + $0x2] sm:$0x3] %v1463
      %1472 = vst [vmem:[#allocation4 + $0x4] sm:$0x3] %v1464
      %1473 = vst [vmem:[#allocation4 + $0x6] sm:$0x3] %v1465
      %1474 = vst [vmem:[#allocation4 + $0x8] sm:$0x3] %v1466
      %1475 = vst [vmem:[#allocation4 + $0xa] sm:$0x3] %v1467
      %1476 = vst [vmem:[#allocation4 + $0xc] sm:$0x3] %v1468
      %1477 = vst [vmem:[#allocation4 + $0xe] sm:$0x3] %v1469
      %v1478 = vld [vmem:[%s1198] sm:$0xff]
      %v1479 = vld [vmem:[%s1200] sm:$0x3]
      %v1480 = vld [vmem:[#allocation4] sm:$0x3]
      %v1481 = vld [vmem:[#allocation4 + $0x2] sm:$0x3]
      %v1482 = vld [vmem:[#allocation4 + $0x4] sm:$0x3]
      %v1483 = vld [vmem:[#allocation4 + $0x6] sm:$0x3]
      %v1484 = vld [vmem:[#allocation4 + $0x8] sm:$0x3]
      %v1485 = vld [vmem:[#allocation4 + $0xa] sm:$0x3]
      %v1486 = vld [vmem:[#allocation4 + $0xc] sm:$0x3]
      %v1487 = vld [vmem:[#allocation4 + $0xe] sm:$0x3]
      %v1489 = vcombine.high %v1478, %v1478
      %v1491 = vunpack.c.l.s4 1966171168
      %v1492 = vunpack.c.0.s8 %v1491
      %v1493 = vlaneseq
      %v1494 = vshrl.u32 %v1493, 7
      %v1495 = vsub.s32 %v1492, %v1494
      %v1496 = vrot.slane %v1478, %v1495
      %v1498 = vunpack.c.l.s4 1966171168
      %v1499 = vunpack.c.0.s8 %v1498
      %v1500 = vlaneseq
      %v1501 = vshrl.u32 %v1500, 7
      %v1502 = vsub.s32 %v1499, %v1501
      %v1503 = vrot.slane %v1489, %v1502
      %v1504 = vcombine.high %v1496, %v1496
      %v1505 = vcombine.high %v1503, %v1503
      %v1507 = vunpack.c.l.s4 1966171168
      %v1508 = vunpack.c.0.s8 %v1507
      %v1509 = vlaneseq
      %v1510 = vshrl.u32 %v1509, 7
      %v1511 = vsub.s32 %v1508, %v1510
      %v1512 = vrot.slane %v1496, %v1511
      %v1514 = vunpack.c.l.s4 1966171168
      %v1515 = vunpack.c.0.s8 %v1514
      %v1516 = vlaneseq
      %v1517 = vshrl.u32 %v1516, 7
      %v1518 = vsub.s32 %v1515, %v1517
      %v1519 = vrot.slane %v1503, %v1518
      %v1521 = vunpack.c.l.s4 1966171168
      %v1522 = vunpack.c.0.s8 %v1521
      %v1523 = vlaneseq
      %v1524 = vshrl.u32 %v1523, 7
      %v1525 = vsub.s32 %v1522, %v1524
      %v1526 = vrot.slane %v1504, %v1525
      %v1528 = vunpack.c.l.s4 1966171168
      %v1529 = vunpack.c.0.s8 %v1528
      %v1530 = vlaneseq
      %v1531 = vshrl.u32 %v1530, 7
      %v1532 = vsub.s32 %v1529, %v1531
      %v1533 = vrot.slane %v1505, %v1532
      %v1534 = vcombine.high %v1512, %v1512
      %v1535 = vcombine.high %v1519, %v1519
      %v1536 = vcombine.high %v1526, %v1526
      %v1537 = vcombine.high %v1533, %v1533
      %v1538 = vlaneseq
      %v1539 = vshrl.u32 %v1538, 7
      %v1540 = vsub.s32 0, %v1539
      %v1541 = vrot.slane %v1512, %v1540
      %v1542 = vlaneseq
      %v1543 = vshrl.u32 %v1542, 7
      %v1544 = vsub.s32 0, %v1543
      %v1545 = vrot.slane %v1526, %v1544
      %v1546 = vlaneseq
      %v1547 = vshrl.u32 %v1546, 7
      %v1548 = vsub.s32 0, %v1547
      %v1549 = vrot.slane %v1534, %v1548
      %v1550 = vlaneseq
      %v1551 = vshrl.u32 %v1550, 7
      %v1552 = vsub.s32 0, %v1551
      %v1553 = vrot.slane %v1536, %v1552
      %v1554 = vlaneseq
      %v1555 = vshrl.u32 %v1554, 7
      %v1556 = vsub.s32 0, %v1555
      %v1557 = vrot.slane %v1519, %v1556
      %v1558 = vlaneseq
      %v1559 = vshrl.u32 %v1558, 7
      %v1560 = vsub.s32 0, %v1559
      %v1561 = vrot.slane %v1533, %v1560
      %v1562 = vlaneseq
      %v1563 = vshrl.u32 %v1562, 7
      %v1564 = vsub.s32 0, %v1563
      %v1565 = vrot.slane %v1535, %v1564
      %v1566 = vlaneseq
      %v1567 = vshrl.u32 %v1566, 7
      %v1568 = vsub.s32 0, %v1567
      %v1569 = vrot.slane %v1537, %v1568
      %v1578 = vmul.f32 %v1541, %v1479
      %v1579 = vmul.f32 %v1545, %v1479
      %v1580 = vmul.f32 %v1549, %v1479
      %v1581 = vmul.f32 %v1553, %v1479
      %v1582 = vmul.f32 %v1557, %v1479
      %v1583 = vmul.f32 %v1561, %v1479
      %v1584 = vmul.f32 %v1565, %v1479
      %v1585 = vmul.f32 %v1569, %v1479
      %v1586 = vadd.f32 %v1480, %v1578
      %v1587 = vadd.f32 %v1481, %v1579
      %v1588 = vadd.f32 %v1482, %v1580
      %v1589 = vadd.f32 %v1483, %v1581
      %v1590 = vadd.f32 %v1484, %v1582
      %v1591 = vadd.f32 %v1485, %v1583
      %v1592 = vadd.f32 %v1486, %v1584
      %v1593 = vadd.f32 %v1487, %v1585
      %1594 = vst [vmem:[#allocation4] sm:$0x3] %v1586
      %1595 = vst [vmem:[#allocation4 + $0x2] sm:$0x3] %v1587
      %1596 = vst [vmem:[#allocation4 + $0x4] sm:$0x3] %v1588
      %1597 = vst [vmem:[#allocation4 + $0x6] sm:$0x3] %v1589
      %1598 = vst [vmem:[#allocation4 + $0x8] sm:$0x3] %v1590
      %1599 = vst [vmem:[#allocation4 + $0xa] sm:$0x3] %v1591
      %1600 = vst [vmem:[#allocation4 + $0xc] sm:$0x3] %v1592
      %1601 = vst [vmem:[#allocation4 + $0xe] sm:$0x3] %v1593
      %v1602 = vld [vmem:[%s1202] sm:$0xff]
      %v1603 = vld [vmem:[%s1204] sm:$0x3]
      %v1604 = vld [vmem:[#allocation4] sm:$0x3]
      %v1605 = vld [vmem:[#allocation4 + $0x2] sm:$0x3]
      %v1606 = vld [vmem:[#allocation4 + $0x4] sm:$0x3]
      %v1607 = vld [vmem:[#allocation4 + $0x6] sm:$0x3]
      %v1608 = vld [vmem:[#allocation4 + $0x8] sm:$0x3]
      %v1609 = vld [vmem:[#allocation4 + $0xa] sm:$0x3]
      %v1610 = vld [vmem:[#allocation4 + $0xc] sm:$0x3]
      %v1611 = vld [vmem:[#allocation4 + $0xe] sm:$0x3]
      %v1613 = vcombine.high %v1602, %v1602
      %v1615 = vunpack.c.l.s4 1966171168
      %v1616 = vunpack.c.0.s8 %v1615
      %v1617 = vlaneseq
      %v1618 = vshrl.u32 %v1617, 7
      %v1619 = vsub.s32 %v1616, %v1618
      %v1620 = vrot.slane %v1602, %v1619
      %v1622 = vunpack.c.l.s4 1966171168
      %v1623 = vunpack.c.0.s8 %v1622
      %v1624 = vlaneseq
      %v1625 = vshrl.u32 %v1624, 7
      %v1626 = vsub.s32 %v1623, %v1625
      %v1627 = vrot.slane %v1613, %v1626
      %v1628 = vcombine.high %v1620, %v1620
      %v1629 = vcombine.high %v1627, %v1627
      %v1631 = vunpack.c.l.s4 1966171168
      %v1632 = vunpack.c.0.s8 %v1631
      %v1633 = vlaneseq
      %v1634 = vshrl.u32 %v1633, 7
      %v1635 = vsub.s32 %v1632, %v1634
      %v1636 = vrot.slane %v1620, %v1635
      %v1638 = vunpack.c.l.s4 1966171168
      %v1639 = vunpack.c.0.s8 %v1638
      %v1640 = vlaneseq
      %v1641 = vshrl.u32 %v1640, 7
      %v1642 = vsub.s32 %v1639, %v1641
      %v1643 = vrot.slane %v1627, %v1642
      %v1645 = vunpack.c.l.s4 1966171168
      %v1646 = vunpack.c.0.s8 %v1645
      %v1647 = vlaneseq
      %v1648 = vshrl.u32 %v1647, 7
      %v1649 = vsub.s32 %v1646, %v1648
      %v1650 = vrot.slane %v1628, %v1649
      %v1652 = vunpack.c.l.s4 1966171168
      %v1653 = vunpack.c.0.s8 %v1652
      %v1654 = vlaneseq
      %v1655 = vshrl.u32 %v1654, 7
      %v1656 = vsub.s32 %v1653, %v1655
      %v1657 = vrot.slane %v1629, %v1656
      %v1658 = vcombine.high %v1636, %v1636
      %v1659 = vcombine.high %v1643, %v1643
      %v1660 = vcombine.high %v1650, %v1650
      %v1661 = vcombine.high %v1657, %v1657
      %v1662 = vlaneseq
      %v1663 = vshrl.u32 %v1662, 7
      %v1664 = vsub.s32 0, %v1663
      %v1665 = vrot.slane %v1636, %v1664
      %v1666 = vlaneseq
      %v1667 = vshrl.u32 %v1666, 7
      %v1668 = vsub.s32 0, %v1667
      %v1669 = vrot.slane %v1650, %v1668
      %v1670 = vlaneseq
      %v1671 = vshrl.u32 %v1670, 7
      %v1672 = vsub.s32 0, %v1671
      %v1673 = vrot.slane %v1658, %v1672
      %v1674 = vlaneseq
      %v1675 = vshrl.u32 %v1674, 7
      %v1676 = vsub.s32 0, %v1675
      %v1677 = vrot.slane %v1660, %v1676
      %v1678 = vlaneseq
      %v1679 = vshrl.u32 %v1678, 7
      %v1680 = vsub.s32 0, %v1679
      %v1681 = vrot.slane %v1643, %v1680
      %v1682 = vlaneseq
      %v1683 = vshrl.u32 %v1682, 7
      %v1684 = vsub.s32 0, %v1683
      %v1685 = vrot.slane %v1657, %v1684
      %v1686 = vlaneseq
      %v1687 = vshrl.u32 %v1686, 7
      %v1688 = vsub.s32 0, %v1687
      %v1689 = vrot.slane %v1659, %v1688
      %v1690 = vlaneseq
      %v1691 = vshrl.u32 %v1690, 7
      %v1692 = vsub.s32 0, %v1691
      %v1693 = vrot.slane %v1661, %v1692
      %v1702 = vmul.f32 %v1665, %v1603
      %v1703 = vmul.f32 %v1669, %v1603
      %v1704 = vmul.f32 %v1673, %v1603
      %v1705 = vmul.f32 %v1677, %v1603
      %v1706 = vmul.f32 %v1681, %v1603
      %v1707 = vmul.f32 %v1685, %v1603
      %v1708 = vmul.f32 %v1689, %v1603
      %v1709 = vmul.f32 %v1693, %v1603
      %v1710 = vadd.f32 %v1604, %v1702
      %v1711 = vadd.f32 %v1605, %v1703
      %v1712 = vadd.f32 %v1606, %v1704
      %v1713 = vadd.f32 %v1607, %v1705
      %v1714 = vadd.f32 %v1608, %v1706
      %v1715 = vadd.f32 %v1609, %v1707
      %v1716 = vadd.f32 %v1610, %v1708
      %v1717 = vadd.f32 %v1611, %v1709
      %1718 = vst [vmem:[#allocation4] sm:$0x3] %v1710
      %1719 = vst [vmem:[#allocation4 + $0x2] sm:$0x3] %v1711
      %1720 = vst [vmem:[#allocation4 + $0x4] sm:$0x3] %v1712
      %1721 = vst [vmem:[#allocation4 + $0x6] sm:$0x3] %v1713
      %1722 = vst [vmem:[#allocation4 + $0x8] sm:$0x3] %v1714
      %1723 = vst [vmem:[#allocation4 + $0xa] sm:$0x3] %v1715
      %1724 = vst [vmem:[#allocation4 + $0xc] sm:$0x3] %v1716
      %1725 = vst [vmem:[#allocation4 + $0xe] sm:$0x3] %v1717
      %v1726 = vld [vmem:[%s1206] sm:$0xff]
      %v1727 = vld [vmem:[%s1208] sm:$0x3]
      %v1728 = vld [vmem:[#allocation4] sm:$0x3]
      %v1729 = vld [vmem:[#allocation4 + $0x2] sm:$0x3]
      %v1730 = vld [vmem:[#allocation4 + $0x4] sm:$0x3]
      %v1731 = vld [vmem:[#allocation4 + $0x6] sm:$0x3]
      %v1732 = vld [vmem:[#allocation4 + $0x8] sm:$0x3]
      %v1733 = vld [vmem:[#allocation4 + $0xa] sm:$0x3]
      %v1734 = vld [vmem:[#allocation4 + $0xc] sm:$0x3]
      %v1735 = vld [vmem:[#allocation4 + $0xe] sm:$0x3]
      %v1737 = vcombine.high %v1726, %v1726
      %v1739 = vunpack.c.l.s4 1966171168
      %v1740 = vunpack.c.0.s8 %v1739
      %v1741 = vlaneseq
      %v1742 = vshrl.u32 %v1741, 7
      %v1743 = vsub.s32 %v1740, %v1742
      %v1744 = vrot.slane %v1726, %v1743
      %v1746 = vunpack.c.l.s4 1966171168
      %v1747 = vunpack.c.0.s8 %v1746
      %v1748 = vlaneseq
      %v1749 = vshrl.u32 %v1748, 7
      %v1750 = vsub.s32 %v1747, %v1749
      %v1751 = vrot.slane %v1737, %v1750
      %v1752 = vcombine.high %v1744, %v1744
      %v1753 = vcombine.high %v1751, %v1751
      %v1755 = vunpack.c.l.s4 1966171168
      %v1756 = vunpack.c.0.s8 %v1755
      %v1757 = vlaneseq
      %v1758 = vshrl.u32 %v1757, 7
      %v1759 = vsub.s32 %v1756, %v1758
      %v1760 = vrot.slane %v1744, %v1759
      %v1762 = vunpack.c.l.s4 1966171168
      %v1763 = vunpack.c.0.s8 %v1762
      %v1764 = vlaneseq
      %v1765 = vshrl.u32 %v1764, 7
      %v1766 = vsub.s32 %v1763, %v1765
      %v1767 = vrot.slane %v1751, %v1766
      %v1769 = vunpack.c.l.s4 1966171168
      %v1770 = vunpack.c.0.s8 %v1769
      %v1771 = vlaneseq
      %v1772 = vshrl.u32 %v1771, 7
      %v1773 = vsub.s32 %v1770, %v1772
      %v1774 = vrot.slane %v1752, %v1773
      %v1776 = vunpack.c.l.s4 1966171168
      %v1777 = vunpack.c.0.s8 %v1776
      %v1778 = vlaneseq
      %v1779 = vshrl.u32 %v1778, 7
      %v1780 = vsub.s32 %v1777, %v1779
      %v1781 = vrot.slane %v1753, %v1780
      %v1782 = vcombine.high %v1760, %v1760
      %v1783 = vcombine.high %v1767, %v1767
      %v1784 = vcombine.high %v1774, %v1774
      %v1785 = vcombine.high %v1781, %v1781
      %v1786 = vlaneseq
      %v1787 = vshrl.u32 %v1786, 7
      %v1788 = vsub.s32 0, %v1787
      %v1789 = vrot.slane %v1760, %v1788
      %v1790 = vlaneseq
      %v1791 = vshrl.u32 %v1790, 7
      %v1792 = vsub.s32 0, %v1791
      %v1793 = vrot.slane %v1774, %v1792
      %v1794 = vlaneseq
      %v1795 = vshrl.u32 %v1794, 7
      %v1796 = vsub.s32 0, %v1795
      %v1797 = vrot.slane %v1782, %v1796
      %v1798 = vlaneseq
      %v1799 = vshrl.u32 %v1798, 7
      %v1800 = vsub.s32 0, %v1799
      %v1801 = vrot.slane %v1784, %v1800
      %v1802 = vlaneseq
      %v1803 = vshrl.u32 %v1802, 7
      %v1804 = vsub.s32 0, %v1803
      %v1805 = vrot.slane %v1767, %v1804
      %v1806 = vlaneseq
      %v1807 = vshrl.u32 %v1806, 7
      %v1808 = vsub.s32 0, %v1807
      %v1809 = vrot.slane %v1781, %v1808
      %v1810 = vlaneseq
      %v1811 = vshrl.u32 %v1810, 7
      %v1812 = vsub.s32 0, %v1811
      %v1813 = vrot.slane %v1783, %v1812
      %v1814 = vlaneseq
      %v1815 = vshrl.u32 %v1814, 7
      %v1816 = vsub.s32 0, %v1815
      %v1817 = vrot.slane %v1785, %v1816
      %v1826 = vmul.f32 %v1789, %v1727
      %v1827 = vmul.f32 %v1793, %v1727
      %v1828 = vmul.f32 %v1797, %v1727
      %v1829 = vmul.f32 %v1801, %v1727
      %v1830 = vmul.f32 %v1805, %v1727
      %v1831 = vmul.f32 %v1809, %v1727
      %v1832 = vmul.f32 %v1813, %v1727
      %v1833 = vmul.f32 %v1817, %v1727
      %v1834 = vadd.f32 %v1728, %v1826
      %v1835 = vadd.f32 %v1729, %v1827
      %v1836 = vadd.f32 %v1730, %v1828
      %v1837 = vadd.f32 %v1731, %v1829
      %v1838 = vadd.f32 %v1732, %v1830
      %v1839 = vadd.f32 %v1733, %v1831
      %v1840 = vadd.f32 %v1734, %v1832
      %v1841 = vadd.f32 %v1735, %v1833
      %1842 = vst [vmem:[#allocation4] sm:$0x3] %v1834
      %1843 = vst [vmem:[#allocation4 + $0x2] sm:$0x3] %v1835
      %1844 = vst [vmem:[#allocation4 + $0x4] sm:$0x3] %v1836
      %1845 = vst [vmem:[#allocation4 + $0x6] sm:$0x3] %v1837
      %1846 = vst [vmem:[#allocation4 + $0x8] sm:$0x3] %v1838
      %1847 = vst [vmem:[#allocation4 + $0xa] sm:$0x3] %v1839
      %1848 = vst [vmem:[#allocation4 + $0xc] sm:$0x3] %v1840
      %1849 = vst [vmem:[#allocation4 + $0xe] sm:$0x3] %v1841
      %v1850 = vld [vmem:[%s1210] sm:$0xff]
      %v1851 = vld [vmem:[%s1212] sm:$0x3]
      %v1852 = vld [vmem:[#allocation4] sm:$0x3]
      %v1853 = vld [vmem:[#allocation4 + $0x2] sm:$0x3]
      %v1854 = vld [vmem:[#allocation4 + $0x4] sm:$0x3]
      %v1855 = vld [vmem:[#allocation4 + $0x6] sm:$0x3]
      %v1856 = vld [vmem:[#allocation4 + $0x8] sm:$0x3]
      %v1857 = vld [vmem:[#allocation4 + $0xa] sm:$0x3]
      %v1858 = vld [vmem:[#allocation4 + $0xc] sm:$0x3]
      %v1859 = vld [vmem:[#allocation4 + $0xe] sm:$0x3]
      %v1861 = vcombine.high %v1850, %v1850
      %v1863 = vunpack.c.l.s4 1966171168
      %v1864 = vunpack.c.0.s8 %v1863
      %v1865 = vlaneseq
      %v1866 = vshrl.u32 %v1865, 7
      %v1867 = vsub.s32 %v1864, %v1866
      %v1868 = vrot.slane %v1850, %v1867
      %v1870 = vunpack.c.l.s4 1966171168
      %v1871 = vunpack.c.0.s8 %v1870
      %v1872 = vlaneseq
      %v1873 = vshrl.u32 %v1872, 7
      %v1874 = vsub.s32 %v1871, %v1873
      %v1875 = vrot.slane %v1861, %v1874
      %v1876 = vcombine.high %v1868, %v1868
      %v1877 = vcombine.high %v1875, %v1875
      %v1879 = vunpack.c.l.s4 1966171168
      %v1880 = vunpack.c.0.s8 %v1879
      %v1881 = vlaneseq
      %v1882 = vshrl.u32 %v1881, 7
      %v1883 = vsub.s32 %v1880, %v1882
      %v1884 = vrot.slane %v1868, %v1883
      %v1886 = vunpack.c.l.s4 1966171168
      %v1887 = vunpack.c.0.s8 %v1886
      %v1888 = vlaneseq
      %v1889 = vshrl.u32 %v1888, 7
      %v1890 = vsub.s32 %v1887, %v1889
      %v1891 = vrot.slane %v1875, %v1890
      %v1893 = vunpack.c.l.s4 1966171168
      %v1894 = vunpack.c.0.s8 %v1893
      %v1895 = vlaneseq
      %v1896 = vshrl.u32 %v1895, 7
      %v1897 = vsub.s32 %v1894, %v1896
      %v1898 = vrot.slane %v1876, %v1897
      %v1900 = vunpack.c.l.s4 1966171168
      %v1901 = vunpack.c.0.s8 %v1900
      %v1902 = vlaneseq
      %v1903 = vshrl.u32 %v1902, 7
      %v1904 = vsub.s32 %v1901, %v1903
      %v1905 = vrot.slane %v1877, %v1904
      %v1906 = vcombine.high %v1884, %v1884
      %v1907 = vcombine.high %v1891, %v1891
      %v1908 = vcombine.high %v1898, %v1898
      %v1909 = vcombine.high %v1905, %v1905
      %v1910 = vlaneseq
      %v1911 = vshrl.u32 %v1910, 7
      %v1912 = vsub.s32 0, %v1911
      %v1913 = vrot.slane %v1884, %v1912
      %v1914 = vlaneseq
      %v1915 = vshrl.u32 %v1914, 7
      %v1916 = vsub.s32 0, %v1915
      %v1917 = vrot.slane %v1898, %v1916
      %v1918 = vlaneseq
      %v1919 = vshrl.u32 %v1918, 7
      %v1920 = vsub.s32 0, %v1919
      %v1921 = vrot.slane %v1906, %v1920
      %v1922 = vlaneseq
      %v1923 = vshrl.u32 %v1922, 7
      %v1924 = vsub.s32 0, %v1923
      %v1925 = vrot.slane %v1908, %v1924
      %v1926 = vlaneseq
      %v1927 = vshrl.u32 %v1926, 7
      %v1928 = vsub.s32 0, %v1927
      %v1929 = vrot.slane %v1891, %v1928
      %v1930 = vlaneseq
      %v1931 = vshrl.u32 %v1930, 7
      %v1932 = vsub.s32 0, %v1931
      %v1933 = vrot.slane %v1905, %v1932
      %v1934 = vlaneseq
      %v1935 = vshrl.u32 %v1934, 7
      %v1936 = vsub.s32 0, %v1935
      %v1937 = vrot.slane %v1907, %v1936
      %v1938 = vlaneseq
      %v1939 = vshrl.u32 %v1938, 7
      %v1940 = vsub.s32 0, %v1939
      %v1941 = vrot.slane %v1909, %v1940
      %v1950 = vmul.f32 %v1913, %v1851
      %v1951 = vmul.f32 %v1917, %v1851
      %v1952 = vmul.f32 %v1921, %v1851
      %v1953 = vmul.f32 %v1925, %v1851
      %v1954 = vmul.f32 %v1929, %v1851
      %v1955 = vmul.f32 %v1933, %v1851
      %v1956 = vmul.f32 %v1937, %v1851
      %v1957 = vmul.f32 %v1941, %v1851
      %v1958 = vadd.f32 %v1852, %v1950
      %v1959 = vadd.f32 %v1853, %v1951
      %v1960 = vadd.f32 %v1854, %v1952
      %v1961 = vadd.f32 %v1855, %v1953
      %v1962 = vadd.f32 %v1856, %v1954
      %v1963 = vadd.f32 %v1857, %v1955
      %v1964 = vadd.f32 %v1858, %v1956
      %v1965 = vadd.f32 %v1859, %v1957
      %1966 = vst [vmem:[#allocation4] sm:$0x3] %v1958
      %1967 = vst [vmem:[#allocation4 + $0x2] sm:$0x3] %v1959
      %1968 = vst [vmem:[#allocation4 + $0x4] sm:$0x3] %v1960
      %1969 = vst [vmem:[#allocation4 + $0x6] sm:$0x3] %v1961
      %1970 = vst [vmem:[#allocation4 + $0x8] sm:$0x3] %v1962
      %1971 = vst [vmem:[#allocation4 + $0xa] sm:$0x3] %v1963
      %1972 = vst [vmem:[#allocation4 + $0xc] sm:$0x3] %v1964
      %1973 = vst [vmem:[#allocation4 + $0xe] sm:$0x3] %v1965
      %v1974 = vld [vmem:[%s1214] sm:$0xff]
      %v1975 = vld [vmem:[%s1216] sm:$0x3]
      %v1976 = vld [vmem:[#allocation4] sm:$0x3]
      %v1977 = vld [vmem:[#allocation4 + $0x2] sm:$0x3]
      %v1978 = vld [vmem:[#allocation4 + $0x4] sm:$0x3]
      %v1979 = vld [vmem:[#allocation4 + $0x6] sm:$0x3]
      %v1980 = vld [vmem:[#allocation4 + $0x8] sm:$0x3]
      %v1981 = vld [vmem:[#allocation4 + $0xa] sm:$0x3]
      %v1982 = vld [vmem:[#allocation4 + $0xc] sm:$0x3]
      %v1983 = vld [vmem:[#allocation4 + $0xe] sm:$0x3]
      %v1985 = vcombine.high %v1974, %v1974
      %v1987 = vunpack.c.l.s4 1966171168
      %v1988 = vunpack.c.0.s8 %v1987
      %v1989 = vlaneseq
      %v1990 = vshrl.u32 %v1989, 7
      %v1991 = vsub.s32 %v1988, %v1990
      %v1992 = vrot.slane %v1974, %v1991
      %v1994 = vunpack.c.l.s4 1966171168
      %v1995 = vunpack.c.0.s8 %v1994
      %v1996 = vlaneseq
      %v1997 = vshrl.u32 %v1996, 7
      %v1998 = vsub.s32 %v1995, %v1997
      %v1999 = vrot.slane %v1985, %v1998
      %v2000 = vcombine.high %v1992, %v1992
      %v2001 = vcombine.high %v1999, %v1999
      %v2003 = vunpack.c.l.s4 1966171168
      %v2004 = vunpack.c.0.s8 %v2003
      %v2005 = vlaneseq
      %v2006 = vshrl.u32 %v2005, 7
      %v2007 = vsub.s32 %v2004, %v2006
      %v2008 = vrot.slane %v1992, %v2007
      %v2010 = vunpack.c.l.s4 1966171168
      %v2011 = vunpack.c.0.s8 %v2010
      %v2012 = vlaneseq
      %v2013 = vshrl.u32 %v2012, 7
      %v2014 = vsub.s32 %v2011, %v2013
      %v2015 = vrot.slane %v1999, %v2014
      %v2017 = vunpack.c.l.s4 1966171168
      %v2018 = vunpack.c.0.s8 %v2017
      %v2019 = vlaneseq
      %v2020 = vshrl.u32 %v2019, 7
      %v2021 = vsub.s32 %v2018, %v2020
      %v2022 = vrot.slane %v2000, %v2021
      %v2024 = vunpack.c.l.s4 1966171168
      %v2025 = vunpack.c.0.s8 %v2024
      %v2026 = vlaneseq
      %v2027 = vshrl.u32 %v2026, 7
      %v2028 = vsub.s32 %v2025, %v2027
      %v2029 = vrot.slane %v2001, %v2028
      %v2030 = vcombine.high %v2008, %v2008
      %v2031 = vcombine.high %v2015, %v2015
      %v2032 = vcombine.high %v2022, %v2022
      %v2033 = vcombine.high %v2029, %v2029
      %v2034 = vlaneseq
      %v2035 = vshrl.u32 %v2034, 7
      %v2036 = vsub.s32 0, %v2035
      %v2037 = vrot.slane %v2008, %v2036
      %v2038 = vlaneseq
      %v2039 = vshrl.u32 %v2038, 7
      %v2040 = vsub.s32 0, %v2039
      %v2041 = vrot.slane %v2022, %v2040
      %v2042 = vlaneseq
      %v2043 = vshrl.u32 %v2042, 7
      %v2044 = vsub.s32 0, %v2043
      %v2045 = vrot.slane %v2030, %v2044
      %v2046 = vlaneseq
      %v2047 = vshrl.u32 %v2046, 7
      %v2048 = vsub.s32 0, %v2047
      %v2049 = vrot.slane %v2032, %v2048
      %v2050 = vlaneseq
      %v2051 = vshrl.u32 %v2050, 7
      %v2052 = vsub.s32 0, %v2051
      %v2053 = vrot.slane %v2015, %v2052
      %v2054 = vlaneseq
      %v2055 = vshrl.u32 %v2054, 7
      %v2056 = vsub.s32 0, %v2055
      %v2057 = vrot.slane %v2029, %v2056
      %v2058 = vlaneseq
      %v2059 = vshrl.u32 %v2058, 7
      %v2060 = vsub.s32 0, %v2059
      %v2061 = vrot.slane %v2031, %v2060
      %v2062 = vlaneseq
      %v2063 = vshrl.u32 %v2062, 7
      %v2064 = vsub.s32 0, %v2063
      %v2065 = vrot.slane %v2033, %v2064
      %v2074 = vmul.f32 %v2037, %v1975
      %v2075 = vmul.f32 %v2041, %v1975
      %v2076 = vmul.f32 %v2045, %v1975
      %v2077 = vmul.f32 %v2049, %v1975
      %v2078 = vmul.f32 %v2053, %v1975
      %v2079 = vmul.f32 %v2057, %v1975
      %v2080 = vmul.f32 %v2061, %v1975
      %v2081 = vmul.f32 %v2065, %v1975
      %v2082 = vadd.f32 %v1976, %v2074
      %v2083 = vadd.f32 %v1977, %v2075
      %v2084 = vadd.f32 %v1978, %v2076
      %v2085 = vadd.f32 %v1979, %v2077
      %v2086 = vadd.f32 %v1980, %v2078
      %v2087 = vadd.f32 %v1981, %v2079
      %v2088 = vadd.f32 %v1982, %v2080
      %v2089 = vadd.f32 %v1983, %v2081
      %2090 = vst [vmem:[#allocation4] sm:$0x3] %v2082
      %2091 = vst [vmem:[#allocation4 + $0x2] sm:$0x3] %v2083
      %2092 = vst [vmem:[#allocation4 + $0x4] sm:$0x3] %v2084
      %2093 = vst [vmem:[#allocation4 + $0x6] sm:$0x3] %v2085
      %2094 = vst [vmem:[#allocation4 + $0x8] sm:$0x3] %v2086
      %2095 = vst [vmem:[#allocation4 + $0xa] sm:$0x3] %v2087
      %2096 = vst [vmem:[#allocation4 + $0xc] sm:$0x3] %v2088
      %2097 = vst [vmem:[#allocation4 + $0xe] sm:$0x3] %v2089
      %v2098 = vld [vmem:[%s1218] sm:$0xff]
      %v2099 = vld [vmem:[%s1220] sm:$0x3]
      %v2100 = vld [vmem:[#allocation4] sm:$0x3]
      %v2101 = vld [vmem:[#allocation4 + $0x2] sm:$0x3]
      %v2102 = vld [vmem:[#allocation4 + $0x4] sm:$0x3]
      %v2103 = vld [vmem:[#allocation4 + $0x6] sm:$0x3]
      %v2104 = vld [vmem:[#allocation4 + $0x8] sm:$0x3]
      %v2105 = vld [vmem:[#allocation4 + $0xa] sm:$0x3]
      %v2106 = vld [vmem:[#allocation4 + $0xc] sm:$0x3]
      %v2107 = vld [vmem:[#allocation4 + $0xe] sm:$0x3]
      %v2109 = vcombine.high %v2098, %v2098
      %v2111 = vunpack.c.l.s4 1966171168
      %v2112 = vunpack.c.0.s8 %v2111
      %v2113 = vlaneseq
      %v2114 = vshrl.u32 %v2113, 7
      %v2115 = vsub.s32 %v2112, %v2114
      %v2116 = vrot.slane %v2098, %v2115
      %v2118 = vunpack.c.l.s4 1966171168
      %v2119 = vunpack.c.0.s8 %v2118
      %v2120 = vlaneseq
      %v2121 = vshrl.u32 %v2120, 7
      %v2122 = vsub.s32 %v2119, %v2121
      %v2123 = vrot.slane %v2109, %v2122
      %v2124 = vcombine.high %v2116, %v2116
      %v2125 = vcombine.high %v2123, %v2123
      %v2127 = vunpack.c.l.s4 1966171168
      %v2128 = vunpack.c.0.s8 %v2127
      %v2129 = vlaneseq
      %v2130 = vshrl.u32 %v2129, 7
      %v2131 = vsub.s32 %v2128, %v2130
      %v2132 = vrot.slane %v2116, %v2131
      %v2134 = vunpack.c.l.s4 1966171168
      %v2135 = vunpack.c.0.s8 %v2134
      %v2136 = vlaneseq
      %v2137 = vshrl.u32 %v2136, 7
      %v2138 = vsub.s32 %v2135, %v2137
      %v2139 = vrot.slane %v2123, %v2138
      %v2141 = vunpack.c.l.s4 1966171168
      %v2142 = vunpack.c.0.s8 %v2141
      %v2143 = vlaneseq
      %v2144 = vshrl.u32 %v2143, 7
      %v2145 = vsub.s32 %v2142, %v2144
      %v2146 = vrot.slane %v2124, %v2145
      %v2148 = vunpack.c.l.s4 1966171168
      %v2149 = vunpack.c.0.s8 %v2148
      %v2150 = vlaneseq
      %v2151 = vshrl.u32 %v2150, 7
      %v2152 = vsub.s32 %v2149, %v2151
      %v2153 = vrot.slane %v2125, %v2152
      %v2154 = vcombine.high %v2132, %v2132
      %v2155 = vcombine.high %v2139, %v2139
      %v2156 = vcombine.high %v2146, %v2146
      %v2157 = vcombine.high %v2153, %v2153
      %v2158 = vlaneseq
      %v2159 = vshrl.u32 %v2158, 7
      %v2160 = vsub.s32 0, %v2159
      %v2161 = vrot.slane %v2132, %v2160
      %v2162 = vlaneseq
      %v2163 = vshrl.u32 %v2162, 7
      %v2164 = vsub.s32 0, %v2163
      %v2165 = vrot.slane %v2146, %v2164
      %v2166 = vlaneseq
      %v2167 = vshrl.u32 %v2166, 7
      %v2168 = vsub.s32 0, %v2167
      %v2169 = vrot.slane %v2154, %v2168
      %v2170 = vlaneseq
      %v2171 = vshrl.u32 %v2170, 7
      %v2172 = vsub.s32 0, %v2171
      %v2173 = vrot.slane %v2156, %v2172
      %v2174 = vlaneseq
      %v2175 = vshrl.u32 %v2174, 7
      %v2176 = vsub.s32 0, %v2175
      %v2177 = vrot.slane %v2139, %v2176
      %v2178 = vlaneseq
      %v2179 = vshrl.u32 %v2178, 7
      %v2180 = vsub.s32 0, %v2179
      %v2181 = vrot.slane %v2153, %v2180
      %v2182 = vlaneseq
      %v2183 = vshrl.u32 %v2182, 7
      %v2184 = vsub.s32 0, %v2183
      %v2185 = vrot.slane %v2155, %v2184
      %v2186 = vlaneseq
      %v2187 = vshrl.u32 %v2186, 7
      %v2188 = vsub.s32 0, %v2187
      %v2189 = vrot.slane %v2157, %v2188
      %v2198 = vmul.f32 %v2161, %v2099
      %v2199 = vmul.f32 %v2165, %v2099
      %v2200 = vmul.f32 %v2169, %v2099
      %v2201 = vmul.f32 %v2173, %v2099
      %v2202 = vmul.f32 %v2177, %v2099
      %v2203 = vmul.f32 %v2181, %v2099
      %v2204 = vmul.f32 %v2185, %v2099
      %v2205 = vmul.f32 %v2189, %v2099
      %v2206 = vadd.f32 %v2100, %v2198
      %v2207 = vadd.f32 %v2101, %v2199
      %v2208 = vadd.f32 %v2102, %v2200
      %v2209 = vadd.f32 %v2103, %v2201
      %v2210 = vadd.f32 %v2104, %v2202
      %v2211 = vadd.f32 %v2105, %v2203
      %v2212 = vadd.f32 %v2106, %v2204
      %v2213 = vadd.f32 %v2107, %v2205
      %2214 = vst [vmem:[#allocation4] sm:$0x3] %v2206
      %2215 = vst [vmem:[#allocation4 + $0x2] sm:$0x3] %v2207
      %2216 = vst [vmem:[#allocation4 + $0x4] sm:$0x3] %v2208
      %2217 = vst [vmem:[#allocation4 + $0x6] sm:$0x3] %v2209
      %2218 = vst [vmem:[#allocation4 + $0x8] sm:$0x3] %v2210
      %2219 = vst [vmem:[#allocation4 + $0xa] sm:$0x3] %v2211
      %2220 = vst [vmem:[#allocation4 + $0xc] sm:$0x3] %v2212
      %2221 = vst [vmem:[#allocation4 + $0xe] sm:$0x3] %v2213
      %v2222 = vld [vmem:[#allocation4] sm:$0x3]
      %2223 = vst [vmem:[#allocation5] sm:$0x3] %v2222
      %s2224 = scalar_lea.vmem [#allocation4], 2
      %v2225 = vld [vmem:[%s2224] sm:$0x3]
      %2226 = vst [vmem:[#allocation5 + $0x2] sm:$0x3] %v2225
      %s2227 = scalar_lea.vmem [#allocation4], 4
      %v2228 = vld [vmem:[%s2227] sm:$0x3]
      %2229 = vst [vmem:[#allocation5 + $0x4] sm:$0x3] %v2228
      %s2230 = scalar_lea.vmem [#allocation4], 6
      %v2231 = vld [vmem:[%s2230] sm:$0x3]
      %2232 = vst [vmem:[#allocation5 + $0x6] sm:$0x3] %v2231
      %s2233 = scalar_lea.vmem [#allocation4], 8
      %v2234 = vld [vmem:[%s2233] sm:$0x3]
      %2235 = vst [vmem:[#allocation5 + $0x8] sm:$0x3] %v2234
      %s2236 = scalar_lea.vmem [#allocation4], 10
      %v2237 = vld [vmem:[%s2236] sm:$0x3]
      %2238 = vst [vmem:[#allocation5 + $0xa] sm:$0x3] %v2237
      %s2239 = scalar_lea.vmem [#allocation4], 12
      %v2240 = vld [vmem:[%s2239] sm:$0x3]
      %2241 = vst [vmem:[#allocation5 + $0xc] sm:$0x3] %v2240
      %s2242 = scalar_lea.vmem [#allocation4], 14
      %v2243 = vld [vmem:[%s2242] sm:$0x3]
      %2244 = vst [vmem:[#allocation5 + $0xe] sm:$0x3] %v2243
      %v2245 = vld [vmem:[#allocation5] sm:$0xff]
      %v2246 = vld [vmem:[#allocation5 + $0x8] sm:$0xff]
      %v2247 = vpack.c.bf16 %v2246, %v2245
      %s2248 = scalar_lea.vmem %s2, 256
      %v2249 = vld [vmem:[%s2248] sm:$0xf]
      %v2250 = vld [vmem:[%s2248 + $0x4] sm:$0xf]
      %v2251 = vld [vmem:[%s2248 + $0x8] sm:$0xf]
      %v2252 = vld [vmem:[%s2248 + $0xc] sm:$0xf]
      %v2253 = vld [vmem:[%s2248 + $0x10] sm:$0xf]
      %v2254 = vld [vmem:[%s2248 + $0x14] sm:$0xf]
      %v2255 = vld [vmem:[%s2248 + $0x18] sm:$0xf]
      %v2256 = vld [vmem:[%s2248 + $0x1c] sm:$0xf]
      %v2257 = vld [vmem:[%s2248 + $0x20] sm:$0xf]
      %v2258 = vld [vmem:[%s2248 + $0x24] sm:$0xf]
      %v2259 = vld [vmem:[%s2248 + $0x28] sm:$0xf]
      %v2260 = vld [vmem:[%s2248 + $0x2c] sm:$0xf]
      %v2261 = vld [vmem:[%s2248 + $0x30] sm:$0xf]
      %v2262 = vld [vmem:[%s2248 + $0x34] sm:$0xf]
      %v2263 = vld [vmem:[%s2248 + $0x38] sm:$0xf]
      %v2264 = vld [vmem:[%s2248 + $0x3c] sm:$0xf]
      %s2265 = scalar_lea.vmem %s3, 4
      %v2266 = vld [vmem:[%s2265] sm:$0x1]
      %v2268 = vlaneseq
      %v2269 = vshrl.u32 %v2268, 7
      %v2270 = vsub.s32 0, %v2269
      %v2271 = vrot.slane %v2266, %v2270
      %v2289 = vunpack.c.l.b16 %v2249
      %v2290 = vunpack.c.l.b16 %v2250
      %v2291 = vunpack.c.l.b16 %v2251
      %v2292 = vunpack.c.l.b16 %v2252
      %v2293 = vunpack.c.l.b16 %v2253
      %v2294 = vunpack.c.l.b16 %v2254
      %v2295 = vunpack.c.l.b16 %v2255
      %v2296 = vunpack.c.l.b16 %v2256
      %v2297 = vunpack.c.l.b16 %v2257
      %v2298 = vunpack.c.l.b16 %v2258
      %v2299 = vunpack.c.l.b16 %v2259
      %v2300 = vunpack.c.l.b16 %v2260
      %v2301 = vunpack.c.l.b16 %v2261
      %v2302 = vunpack.c.l.b16 %v2262
      %v2303 = vunpack.c.l.b16 %v2263
      %v2304 = vunpack.c.l.b16 %v2264
      %v2305 = vpack.c.b16 %v2290, %v2289
      %v2306 = vpack.c.b16 %v2292, %v2291
      %v2307 = vpack.c.b16 %v2294, %v2293
      %v2308 = vpack.c.b16 %v2296, %v2295
      %v2309 = vpack.c.b16 %v2298, %v2297
      %v2310 = vpack.c.b16 %v2300, %v2299
      %v2311 = vpack.c.b16 %v2302, %v2301
      %v2312 = vpack.c.b16 %v2304, %v2303
      %2321 = vmatprep.subr.bf16.mxu0 0
      %2322 = vmatpush1.bf16.msra.mxu0 %v2305
      %2323 = vmatprep.subr.bf16.mxu0 0
      %2324 = vmatpush1.bf16.msra.mxu0 %v2306
      %2325 = vmatprep.subr.bf16.mxu0 0
      %2326 = vmatpush1.bf16.msra.mxu0 %v2307
      %2327 = vmatprep.subr.bf16.mxu0 0
      %2328 = vmatpush1.bf16.msra.mxu0 %v2308
      %2329 = vmatprep.subr.bf16.mxu0 0
      %2330 = vmatpush1.bf16.msra.mxu0 %v2309
      %2331 = vmatprep.subr.bf16.mxu0 0
      %2332 = vmatpush1.bf16.msra.mxu0 %v2310
      %2333 = vmatprep.subr.bf16.mxu0 0
      %2334 = vmatpush1.bf16.msra.mxu0 %v2311
      %2335 = vmatprep.subr.bf16.mxu0 0
      %2336 = vmatpush1.bf16.msra.mxu0 %v2312
      %2337 = vmatprep.subr.bf16.mxu0 0
      %2338 = vmatpush1.bf16.msra.mxu0 0
      %2339 = vmatprep.subr.bf16.mxu0 0
      %2340 = vmatpush1.bf16.msra.mxu0 0
      %2341 = vmatprep.subr.bf16.mxu0 0
      %2342 = vmatpush1.bf16.msra.mxu0 0
      %2343 = vmatprep.subr.bf16.mxu0 0
      %2344 = vmatpush1.bf16.msra.mxu0 0
      %2345 = vmatprep.subr.bf16.mxu0 0
      %2346 = vmatpush1.bf16.msra.mxu0 0
      %2347 = vmatprep.subr.bf16.mxu0 0
      %2348 = vmatpush1.bf16.msra.mxu0 0
      %2349 = vmatprep.subr.bf16.mxu0 0
      %2350 = vmatpush1.bf16.msra.mxu0 0
      %2351 = vmatprep.subr.bf16.mxu0 0
      %2352 = vmatpush1.bf16.msra.mxu0 0
      %2353 = vmatprep.mubr.bf16.mxu0 0
      %2354 = vmatmul.mubr.bf16.gmra.mrb[0].mxu0 %v2247
      %v2355 = vpop.f32.mrb[0].mxu0
      %v2356 = vadd.f32 %v2271, %v2355
      %v2357 = vpop.f32.mrb[0].mxu0
      %v2358 = vpop.f32.mrb[0].mxu0
      %v2359 = vadd.f32 %v2271, %v2358
      %v2360 = vpop.f32.mrb[0].mxu0
      %2361 = vdwg.mxu0
      %v2362 = vxor.u32 %v2356, 2147483648
      %v2363 = vxor.u32 %v2359, 2147483648
      %v2364 = vmul.f32 %v2362, 1.442695
      %v2365 = vpow.pop %v2364
      %v2366 = vmul.f32 %v2363, 1.442695
      %v2367 = vpow.pop %v2366
      %v2368 = vadd.f32 %v2365, 1.0
      %v2369 = vadd.f32 %v2367, 1.0
      %v2370 = vrcp.pop %v2368
      %v2371 = vmul.f32 1.0, %v2370
      %v2372 = vrcp.pop %v2369
      %v2373 = vmul.f32 1.0, %v2372
      %v2374 = vmul.f32 %v2356, %v2371
      %v2375 = vmul.f32 %v2359, %v2373
      %v2376 = vpack.c.bf16 %v2375, %v2374
      %s2377 = scalar_lea.vmem %s2, 320
      %v2378 = vld [vmem:[%s2377] sm:$0xf]
      %v2379 = vld [vmem:[%s2377 + $0x4] sm:$0xf]
      %v2380 = vld [vmem:[%s2377 + $0x8] sm:$0xf]
      %v2381 = vld [vmem:[%s2377 + $0xc] sm:$0xf]
      %v2382 = vld [vmem:[%s2377 + $0x10] sm:$0xf]
      %v2383 = vld [vmem:[%s2377 + $0x14] sm:$0xf]
      %v2384 = vld [vmem:[%s2377 + $0x18] sm:$0xf]
      %v2385 = vld [vmem:[%s2377 + $0x1c] sm:$0xf]
      %v2386 = vld [vmem:[%s2377 + $0x20] sm:$0xf]
      %v2387 = vld [vmem:[%s2377 + $0x24] sm:$0xf]
      %v2388 = vld [vmem:[%s2377 + $0x28] sm:$0xf]
      %v2389 = vld [vmem:[%s2377 + $0x2c] sm:$0xf]
      %v2390 = vld [vmem:[%s2377 + $0x30] sm:$0xf]
      %v2391 = vld [vmem:[%s2377 + $0x34] sm:$0xf]
      %v2392 = vld [vmem:[%s2377 + $0x38] sm:$0xf]
      %v2393 = vld [vmem:[%s2377 + $0x3c] sm:$0xf]
      %s2394 = scalar_lea.vmem %s3, 5
      %v2395 = vld [vmem:[%s2394] sm:$0x1]
      %v2397 = vlaneseq
      %v2398 = vshrl.u32 %v2397, 7
      %v2399 = vsub.s32 0, %v2398
      %v2400 = vrot.slane %v2395, %v2399
      %v2418 = vunpack.c.l.b16 %v2378
      %v2419 = vunpack.c.l.b16 %v2379
      %v2420 = vunpack.c.l.b16 %v2380
      %v2421 = vunpack.c.l.b16 %v2381
      %v2422 = vunpack.c.l.b16 %v2382
      %v2423 = vunpack.c.l.b16 %v2383
      %v2424 = vunpack.c.l.b16 %v2384
      %v2425 = vunpack.c.l.b16 %v2385
      %v2426 = vunpack.c.l.b16 %v2386
      %v2427 = vunpack.c.l.b16 %v2387
      %v2428 = vunpack.c.l.b16 %v2388
      %v2429 = vunpack.c.l.b16 %v2389
      %v2430 = vunpack.c.l.b16 %v2390
      %v2431 = vunpack.c.l.b16 %v2391
      %v2432 = vunpack.c.l.b16 %v2392
      %v2433 = vunpack.c.l.b16 %v2393
      %v2434 = vpack.c.b16 %v2419, %v2418
      %v2435 = vpack.c.b16 %v2421, %v2420
      %v2436 = vpack.c.b16 %v2423, %v2422
      %v2437 = vpack.c.b16 %v2425, %v2424
      %v2438 = vpack.c.b16 %v2427, %v2426
      %v2439 = vpack.c.b16 %v2429, %v2428
      %v2440 = vpack.c.b16 %v2431, %v2430
      %v2441 = vpack.c.b16 %v2433, %v2432
      %2450 = vmatprep.subr.bf16.mxu0 0
      %2451 = vmatpush1.bf16.msra.mxu0 %v2434
      %2452 = vmatprep.subr.bf16.mxu0 0
      %2453 = vmatpush1.bf16.msra.mxu0 %v2435
      %2454 = vmatprep.subr.bf16.mxu0 0
      %2455 = vmatpush1.bf16.msra.mxu0 %v2436
      %2456 = vmatprep.subr.bf16.mxu0 0
      %2457 = vmatpush1.bf16.msra.mxu0 %v2437
      %2458 = vmatprep.subr.bf16.mxu0 0
      %2459 = vmatpush1.bf16.msra.mxu0 %v2438
      %2460 = vmatprep.subr.bf16.mxu0 0
      %2461 = vmatpush1.bf16.msra.mxu0 %v2439
      %2462 = vmatprep.subr.bf16.mxu0 0
      %2463 = vmatpush1.bf16.msra.mxu0 %v2440
      %2464 = vmatprep.subr.bf16.mxu0 0
      %2465 = vmatpush1.bf16.msra.mxu0 %v2441
      %2466 = vmatprep.subr.bf16.mxu0 0
      %2467 = vmatpush1.bf16.msra.mxu0 0
      %2468 = vmatprep.subr.bf16.mxu0 0
      %2469 = vmatpush1.bf16.msra.mxu0 0
      %2470 = vmatprep.subr.bf16.mxu0 0
      %2471 = vmatpush1.bf16.msra.mxu0 0
      %2472 = vmatprep.subr.bf16.mxu0 0
      %2473 = vmatpush1.bf16.msra.mxu0 0
      %2474 = vmatprep.subr.bf16.mxu0 0
      %2475 = vmatpush1.bf16.msra.mxu0 0
      %2476 = vmatprep.subr.bf16.mxu0 0
      %2477 = vmatpush1.bf16.msra.mxu0 0
      %2478 = vmatprep.subr.bf16.mxu0 0
      %2479 = vmatpush1.bf16.msra.mxu0 0
      %2480 = vmatprep.subr.bf16.mxu0 0
      %2481 = vmatpush1.bf16.msra.mxu0 0
      %2482 = vmatprep.mubr.bf16.mxu0 0
      %2483 = vmatmul.mubr.bf16.gmra.mrb[0].mxu0 %v2376
      %v2484 = vpop.f32.mrb[0].mxu0
      %v2485 = vadd.f32 %v2400, %v2484
      %v2486 = vpop.f32.mrb[0].mxu0
      %v2487 = vpop.f32.mrb[0].mxu0
      %v2488 = vadd.f32 %v2400, %v2487
      %v2489 = vpop.f32.mrb[0].mxu0
      %2490 = vdwg.mxu0
      %v2491 = vxor.u32 %v2485, 2147483648
      %v2492 = vxor.u32 %v2488, 2147483648
      %v2493 = vmul.f32 %v2491, 1.442695
      %v2494 = vpow.pop %v2493
      %v2495 = vmul.f32 %v2492, 1.442695
      %v2496 = vpow.pop %v2495
      %v2497 = vadd.f32 %v2494, 1.0
      %v2498 = vadd.f32 %v2496, 1.0
      %v2499 = vrcp.pop %v2497
      %v2500 = vmul.f32 1.0, %v2499
      %v2501 = vrcp.pop %v2498
      %v2502 = vmul.f32 1.0, %v2501
      %v2503 = vmul.f32 %v2485, %v2500
      %v2504 = vmul.f32 %v2488, %v2502
      %v2505 = vadd.f32 %v2245, %v2503
      %v2506 = vadd.f32 %v2246, %v2504
      %v2507 = vpack.c.bf16 %v2506, %v2505
      %s2508 = scalar_lea.vmem %s2, 384
      %v2509 = vld [vmem:[%s2508] sm:$0xf]
      %v2510 = vld [vmem:[%s2508 + $0x4] sm:$0xf]
      %v2511 = vld [vmem:[%s2508 + $0x8] sm:$0xf]
      %v2512 = vld [vmem:[%s2508 + $0xc] sm:$0xf]
      %v2513 = vld [vmem:[%s2508 + $0x10] sm:$0xf]
      %v2514 = vld [vmem:[%s2508 + $0x14] sm:$0xf]
      %v2515 = vld [vmem:[%s2508 + $0x18] sm:$0xf]
      %v2516 = vld [vmem:[%s2508 + $0x1c] sm:$0xf]
      %v2517 = vld [vmem:[%s2508 + $0x20] sm:$0xf]
      %v2518 = vld [vmem:[%s2508 + $0x24] sm:$0xf]
      %v2519 = vld [vmem:[%s2508 + $0x28] sm:$0xf]
      %v2520 = vld [vmem:[%s2508 + $0x2c] sm:$0xf]
      %v2521 = vld [vmem:[%s2508 + $0x30] sm:$0xf]
      %v2522 = vld [vmem:[%s2508 + $0x34] sm:$0xf]
      %v2523 = vld [vmem:[%s2508 + $0x38] sm:$0xf]
      %v2524 = vld [vmem:[%s2508 + $0x3c] sm:$0xf]
      %s2525 = scalar_lea.vmem %s3, 6
      %v2526 = vld [vmem:[%s2525] sm:$0x1]
      %v2528 = vlaneseq
      %v2529 = vshrl.u32 %v2528, 7
      %v2530 = vsub.s32 0, %v2529
      %v2531 = vrot.slane %v2526, %v2530
      %v2549 = vunpack.c.l.b16 %v2509
      %v2550 = vunpack.c.l.b16 %v2510
      %v2551 = vunpack.c.l.b16 %v2511
      %v2552 = vunpack.c.l.b16 %v2512
      %v2553 = vunpack.c.l.b16 %v2513
      %v2554 = vunpack.c.l.b16 %v2514
      %v2555 = vunpack.c.l.b16 %v2515
      %v2556 = vunpack.c.l.b16 %v2516
      %v2557 = vunpack.c.l.b16 %v2517
      %v2558 = vunpack.c.l.b16 %v2518
      %v2559 = vunpack.c.l.b16 %v2519
      %v2560 = vunpack.c.l.b16 %v2520
      %v2561 = vunpack.c.l.b16 %v2521
      %v2562 = vunpack.c.l.b16 %v2522
      %v2563 = vunpack.c.l.b16 %v2523
      %v2564 = vunpack.c.l.b16 %v2524
      %v2565 = vpack.c.b16 %v2550, %v2549
      %v2566 = vpack.c.b16 %v2552, %v2551
      %v2567 = vpack.c.b16 %v2554, %v2553
      %v2568 = vpack.c.b16 %v2556, %v2555
      %v2569 = vpack.c.b16 %v2558, %v2557
      %v2570 = vpack.c.b16 %v2560, %v2559
      %v2571 = vpack.c.b16 %v2562, %v2561
      %v2572 = vpack.c.b16 %v2564, %v2563
      %2581 = vmatprep.subr.bf16.mxu0 0
      %2582 = vmatpush1.bf16.msra.mxu0 %v2565
      %2583 = vmatprep.subr.bf16.mxu0 0
      %2584 = vmatpush1.bf16.msra.mxu0 %v2566
      %2585 = vmatprep.subr.bf16.mxu0 0
      %2586 = vmatpush1.bf16.msra.mxu0 %v2567
      %2587 = vmatprep.subr.bf16.mxu0 0
      %2588 = vmatpush1.bf16.msra.mxu0 %v2568
      %2589 = vmatprep.subr.bf16.mxu0 0
      %2590 = vmatpush1.bf16.msra.mxu0 %v2569
      %2591 = vmatprep.subr.bf16.mxu0 0
      %2592 = vmatpush1.bf16.msra.mxu0 %v2570
      %2593 = vmatprep.subr.bf16.mxu0 0
      %2594 = vmatpush1.bf16.msra.mxu0 %v2571
      %2595 = vmatprep.subr.bf16.mxu0 0
      %2596 = vmatpush1.bf16.msra.mxu0 %v2572
      %2597 = vmatprep.subr.bf16.mxu0 0
      %2598 = vmatpush1.bf16.msra.mxu0 0
      %2599 = vmatprep.subr.bf16.mxu0 0
      %2600 = vmatpush1.bf16.msra.mxu0 0
      %2601 = vmatprep.subr.bf16.mxu0 0
      %2602 = vmatpush1.bf16.msra.mxu0 0
      %2603 = vmatprep.subr.bf16.mxu0 0
      %2604 = vmatpush1.bf16.msra.mxu0 0
      %2605 = vmatprep.subr.bf16.mxu0 0
      %2606 = vmatpush1.bf16.msra.mxu0 0
      %2607 = vmatprep.subr.bf16.mxu0 0
      %2608 = vmatpush1.bf16.msra.mxu0 0
      %2609 = vmatprep.subr.bf16.mxu0 0
      %2610 = vmatpush1.bf16.msra.mxu0 0
      %2611 = vmatprep.subr.bf16.mxu0 0
      %2612 = vmatpush1.bf16.msra.mxu0 0
      %2613 = vmatprep.mubr.bf16.mxu0 0
      %2614 = vmatmul.mubr.bf16.gmra.mrb[0].mxu0 %v2507
      %v2615 = vpop.f32.mrb[0].mxu0
      %v2616 = vadd.f32 %v2531, %v2615
      %v2617 = vpop.f32.mrb[0].mxu0
      %v2618 = vpop.f32.mrb[0].mxu0
      %v2619 = vadd.f32 %v2531, %v2618
      %v2620 = vpop.f32.mrb[0].mxu0
      %2621 = vdwg.mxu0
      %v2622 = vxor.u32 %v2616, 2147483648
      %v2623 = vxor.u32 %v2619, 2147483648
      %v2624 = vmul.f32 %v2622, 1.442695
      %v2625 = vpow.pop %v2624
      %v2626 = vmul.f32 %v2623, 1.442695
      %v2627 = vpow.pop %v2626
      %v2628 = vadd.f32 %v2625, 1.0
      %v2629 = vadd.f32 %v2627, 1.0
      %v2630 = vrcp.pop %v2628
      %v2631 = vmul.f32 1.0, %v2630
      %v2632 = vrcp.pop %v2629
      %v2633 = vmul.f32 1.0, %v2632
      %v2634 = vmul.f32 %v2616, %v2631
      %v2635 = vmul.f32 %v2619, %v2633
      %v2636 = vpack.c.bf16 %v2635, %v2634
      %s2637 = scalar_lea.vmem %s2, 448
      %v2638 = vld [vmem:[%s2637] sm:$0xf]
      %v2639 = vld [vmem:[%s2637 + $0x4] sm:$0xf]
      %v2640 = vld [vmem:[%s2637 + $0x8] sm:$0xf]
      %v2641 = vld [vmem:[%s2637 + $0xc] sm:$0xf]
      %v2642 = vld [vmem:[%s2637 + $0x10] sm:$0xf]
      %v2643 = vld [vmem:[%s2637 + $0x14] sm:$0xf]
      %v2644 = vld [vmem:[%s2637 + $0x18] sm:$0xf]
      %v2645 = vld [vmem:[%s2637 + $0x1c] sm:$0xf]
      %v2646 = vld [vmem:[%s2637 + $0x20] sm:$0xf]
      %v2647 = vld [vmem:[%s2637 + $0x24] sm:$0xf]
      %v2648 = vld [vmem:[%s2637 + $0x28] sm:$0xf]
      %v2649 = vld [vmem:[%s2637 + $0x2c] sm:$0xf]
      %v2650 = vld [vmem:[%s2637 + $0x30] sm:$0xf]
      %v2651 = vld [vmem:[%s2637 + $0x34] sm:$0xf]
      %v2652 = vld [vmem:[%s2637 + $0x38] sm:$0xf]
      %v2653 = vld [vmem:[%s2637 + $0x3c] sm:$0xf]
      %s2654 = scalar_lea.vmem %s3, 7
      %v2655 = vld [vmem:[%s2654] sm:$0x1]
      %v2657 = vlaneseq
      %v2658 = vshrl.u32 %v2657, 7
      %v2659 = vsub.s32 0, %v2658
      %v2660 = vrot.slane %v2655, %v2659
      %v2678 = vunpack.c.l.b16 %v2638
      %v2679 = vunpack.c.l.b16 %v2639
      %v2680 = vunpack.c.l.b16 %v2640
      %v2681 = vunpack.c.l.b16 %v2641
      %v2682 = vunpack.c.l.b16 %v2642
      %v2683 = vunpack.c.l.b16 %v2643
      %v2684 = vunpack.c.l.b16 %v2644
      %v2685 = vunpack.c.l.b16 %v2645
      %v2686 = vunpack.c.l.b16 %v2646
      %v2687 = vunpack.c.l.b16 %v2647
      %v2688 = vunpack.c.l.b16 %v2648
      %v2689 = vunpack.c.l.b16 %v2649
      %v2690 = vunpack.c.l.b16 %v2650
      %v2691 = vunpack.c.l.b16 %v2651
      %v2692 = vunpack.c.l.b16 %v2652
      %v2693 = vunpack.c.l.b16 %v2653
      %v2694 = vpack.c.b16 %v2679, %v2678
      %v2695 = vpack.c.b16 %v2681, %v2680
      %v2696 = vpack.c.b16 %v2683, %v2682
      %v2697 = vpack.c.b16 %v2685, %v2684
      %v2698 = vpack.c.b16 %v2687, %v2686
      %v2699 = vpack.c.b16 %v2689, %v2688
      %v2700 = vpack.c.b16 %v2691, %v2690
      %v2701 = vpack.c.b16 %v2693, %v2692
      %2710 = vmatprep.subr.bf16.mxu0 0
      %2711 = vmatpush1.bf16.msra.mxu0 %v2694
      %2712 = vmatprep.subr.bf16.mxu0 0
      %2713 = vmatpush1.bf16.msra.mxu0 %v2695
      %2714 = vmatprep.subr.bf16.mxu0 0
      %2715 = vmatpush1.bf16.msra.mxu0 %v2696
      %2716 = vmatprep.subr.bf16.mxu0 0
      %2717 = vmatpush1.bf16.msra.mxu0 %v2697
      %2718 = vmatprep.subr.bf16.mxu0 0
      %2719 = vmatpush1.bf16.msra.mxu0 %v2698
      %2720 = vmatprep.subr.bf16.mxu0 0
      %2721 = vmatpush1.bf16.msra.mxu0 %v2699
      %2722 = vmatprep.subr.bf16.mxu0 0
      %2723 = vmatpush1.bf16.msra.mxu0 %v2700
      %2724 = vmatprep.subr.bf16.mxu0 0
      %2725 = vmatpush1.bf16.msra.mxu0 %v2701
      %2726 = vmatprep.subr.bf16.mxu0 0
      %2727 = vmatpush1.bf16.msra.mxu0 0
      %2728 = vmatprep.subr.bf16.mxu0 0
      %2729 = vmatpush1.bf16.msra.mxu0 0
      %2730 = vmatprep.subr.bf16.mxu0 0
      %2731 = vmatpush1.bf16.msra.mxu0 0
      %2732 = vmatprep.subr.bf16.mxu0 0
      %2733 = vmatpush1.bf16.msra.mxu0 0
      %2734 = vmatprep.subr.bf16.mxu0 0
      %2735 = vmatpush1.bf16.msra.mxu0 0
      %2736 = vmatprep.subr.bf16.mxu0 0
      %2737 = vmatpush1.bf16.msra.mxu0 0
      %2738 = vmatprep.subr.bf16.mxu0 0
      %2739 = vmatpush1.bf16.msra.mxu0 0
      %2740 = vmatprep.subr.bf16.mxu0 0
      %2741 = vmatpush1.bf16.msra.mxu0 0
      %2742 = vmatprep.mubr.bf16.mxu0 0
      %2743 = vmatmul.mubr.bf16.gmra.mrb[0].mxu0 %v2636
      %v2744 = vpop.f32.mrb[0].mxu0
      %v2745 = vadd.f32 %v2660, %v2744
      %v2746 = vpop.f32.mrb[0].mxu0
      %v2747 = vpop.f32.mrb[0].mxu0
      %v2748 = vadd.f32 %v2660, %v2747
      %v2749 = vpop.f32.mrb[0].mxu0
      %2750 = vdwg.mxu0
      %v2751 = vxor.u32 %v2745, 2147483648
      %v2752 = vxor.u32 %v2748, 2147483648
      %v2753 = vmul.f32 %v2751, 1.442695
      %v2754 = vpow.pop %v2753
      %v2755 = vmul.f32 %v2752, 1.442695
      %v2756 = vpow.pop %v2755
      %v2757 = vadd.f32 %v2754, 1.0
      %v2758 = vadd.f32 %v2756, 1.0
      %v2759 = vrcp.pop %v2757
      %v2760 = vmul.f32 1.0, %v2759
      %v2761 = vrcp.pop %v2758
      %v2762 = vmul.f32 1.0, %v2761
      %v2763 = vmul.f32 %v2745, %v2760
      %v2764 = vmul.f32 %v2748, %v2762
      %v2765 = vadd.f32 %v2505, %v2763
      %v2766 = vadd.f32 %v2506, %v2764
      %v2767 = vmul.f32 %v588, %v2765
      %v2768 = vmul.f32 %v589, %v2766
      %v2769 = vpack.c.bf16 %v2768, %v2767
      %s2770 = scalar_lea.vmem %s2, 512
      %v2771 = vld [vmem:[%s2770] sm:$0xf]
      %v2772 = vld [vmem:[%s2770 + $0x4] sm:$0xf]
      %v2773 = vld [vmem:[%s2770 + $0x8] sm:$0xf]
      %v2774 = vld [vmem:[%s2770 + $0xc] sm:$0xf]
      %v2775 = vld [vmem:[%s2770 + $0x10] sm:$0xf]
      %v2776 = vld [vmem:[%s2770 + $0x14] sm:$0xf]
      %v2777 = vld [vmem:[%s2770 + $0x18] sm:$0xf]
      %v2778 = vld [vmem:[%s2770 + $0x1c] sm:$0xf]
      %v2779 = vld [vmem:[%s2770 + $0x20] sm:$0xf]
      %v2780 = vld [vmem:[%s2770 + $0x24] sm:$0xf]
      %v2781 = vld [vmem:[%s2770 + $0x28] sm:$0xf]
      %v2782 = vld [vmem:[%s2770 + $0x2c] sm:$0xf]
      %v2783 = vld [vmem:[%s2770 + $0x30] sm:$0xf]
      %v2784 = vld [vmem:[%s2770 + $0x34] sm:$0xf]
      %v2785 = vld [vmem:[%s2770 + $0x38] sm:$0xf]
      %v2786 = vld [vmem:[%s2770 + $0x3c] sm:$0xf]
      %s2787 = scalar_lea.vmem %s3, 8
      %v2788 = vld [vmem:[%s2787] sm:$0x1]
      %v2790 = vlaneseq
      %v2791 = vshrl.u32 %v2790, 7
      %v2792 = vsub.s32 0, %v2791
      %v2793 = vrot.slane %v2788, %v2792
      %v2811 = vunpack.c.l.b16 %v2771
      %v2812 = vunpack.c.l.b16 %v2772
      %v2813 = vunpack.c.l.b16 %v2773
      %v2814 = vunpack.c.l.b16 %v2774
      %v2815 = vunpack.c.l.b16 %v2775
      %v2816 = vunpack.c.l.b16 %v2776
      %v2817 = vunpack.c.l.b16 %v2777
      %v2818 = vunpack.c.l.b16 %v2778
      %v2819 = vunpack.c.l.b16 %v2779
      %v2820 = vunpack.c.l.b16 %v2780
      %v2821 = vunpack.c.l.b16 %v2781
      %v2822 = vunpack.c.l.b16 %v2782
      %v2823 = vunpack.c.l.b16 %v2783
      %v2824 = vunpack.c.l.b16 %v2784
      %v2825 = vunpack.c.l.b16 %v2785
      %v2826 = vunpack.c.l.b16 %v2786
      %v2827 = vpack.c.b16 %v2812, %v2811
      %v2828 = vpack.c.b16 %v2814, %v2813
      %v2829 = vpack.c.b16 %v2816, %v2815
      %v2830 = vpack.c.b16 %v2818, %v2817
      %v2831 = vpack.c.b16 %v2820, %v2819
      %v2832 = vpack.c.b16 %v2822, %v2821
      %v2833 = vpack.c.b16 %v2824, %v2823
      %v2834 = vpack.c.b16 %v2826, %v2825
      %2843 = vmatprep.subr.bf16.mxu0 0
      %2844 = vmatpush1.bf16.msra.mxu0 %v2827
      %2845 = vmatprep.subr.bf16.mxu0 0
      %2846 = vmatpush1.bf16.msra.mxu0 %v2828
      %2847 = vmatprep.subr.bf16.mxu0 0
      %2848 = vmatpush1.bf16.msra.mxu0 %v2829
      %2849 = vmatprep.subr.bf16.mxu0 0
      %2850 = vmatpush1.bf16.msra.mxu0 %v2830
      %2851 = vmatprep.subr.bf16.mxu0 0
      %2852 = vmatpush1.bf16.msra.mxu0 %v2831
      %2853 = vmatprep.subr.bf16.mxu0 0
      %2854 = vmatpush1.bf16.msra.mxu0 %v2832
      %2855 = vmatprep.subr.bf16.mxu0 0
      %2856 = vmatpush1.bf16.msra.mxu0 %v2833
      %2857 = vmatprep.subr.bf16.mxu0 0
      %2858 = vmatpush1.bf16.msra.mxu0 %v2834
      %2859 = vmatprep.subr.bf16.mxu0 0
      %2860 = vmatpush1.bf16.msra.mxu0 0
      %2861 = vmatprep.subr.bf16.mxu0 0
      %2862 = vmatpush1.bf16.msra.mxu0 0
      %2863 = vmatprep.subr.bf16.mxu0 0
      %2864 = vmatpush1.bf16.msra.mxu0 0
      %2865 = vmatprep.subr.bf16.mxu0 0
      %2866 = vmatpush1.bf16.msra.mxu0 0
      %2867 = vmatprep.subr.bf16.mxu0 0
      %2868 = vmatpush1.bf16.msra.mxu0 0
      %2869 = vmatprep.subr.bf16.mxu0 0
      %2870 = vmatpush1.bf16.msra.mxu0 0
      %2871 = vmatprep.subr.bf16.mxu0 0
      %2872 = vmatpush1.bf16.msra.mxu0 0
      %2873 = vmatprep.subr.bf16.mxu0 0
      %2874 = vmatpush1.bf16.msra.mxu0 0
      %2875 = vmatprep.mubr.bf16.mxu0 0
      %2876 = vmatmul.mubr.bf16.gmra.mrb[0].mxu0 %v2769
      %v2877 = vpop.f32.mrb[0].mxu0
      %v2878 = vadd.f32 %v2793, %v2877
      %v2879 = vpop.f32.mrb[0].mxu0
      %v2880 = vpop.f32.mrb[0].mxu0
      %v2881 = vadd.f32 %v2793, %v2880
      %v2882 = vpop.f32.mrb[0].mxu0
      %2883 = vdwg.mxu0
      %v2884 = vxor.u32 %v2878, 2147483648
      %v2885 = vxor.u32 %v2881, 2147483648
      %v2886 = vmul.f32 %v2884, 1.442695
      %v2887 = vpow.pop %v2886
      %v2888 = vmul.f32 %v2885, 1.442695
      %v2889 = vpow.pop %v2888
      %v2890 = vadd.f32 %v2887, 1.0
      %v2891 = vadd.f32 %v2889, 1.0
      %v2892 = vrcp.pop %v2890
      %v2893 = vmul.f32 1.0, %v2892
      %v2894 = vrcp.pop %v2891
      %v2895 = vmul.f32 1.0, %v2894
      %v2896 = vmul.f32 %v2878, %v2893
      %v2897 = vmul.f32 %v2881, %v2895
      %v2898 = vpack.c.bf16 %v2897, %v2896
      %s2899 = scalar_lea.vmem %s2, 576
      %v2900 = vld [vmem:[%s2899] sm:$0xf]
      %v2901 = vld [vmem:[%s2899 + $0x4] sm:$0xf]
      %v2902 = vld [vmem:[%s2899 + $0x8] sm:$0xf]
      %v2903 = vld [vmem:[%s2899 + $0xc] sm:$0xf]
      %v2904 = vld [vmem:[%s2899 + $0x10] sm:$0xf]
      %v2905 = vld [vmem:[%s2899 + $0x14] sm:$0xf]
      %v2906 = vld [vmem:[%s2899 + $0x18] sm:$0xf]
      %v2907 = vld [vmem:[%s2899 + $0x1c] sm:$0xf]
      %v2908 = vld [vmem:[%s2899 + $0x20] sm:$0xf]
      %v2909 = vld [vmem:[%s2899 + $0x24] sm:$0xf]
      %v2910 = vld [vmem:[%s2899 + $0x28] sm:$0xf]
      %v2911 = vld [vmem:[%s2899 + $0x2c] sm:$0xf]
      %v2912 = vld [vmem:[%s2899 + $0x30] sm:$0xf]
      %v2913 = vld [vmem:[%s2899 + $0x34] sm:$0xf]
      %v2914 = vld [vmem:[%s2899 + $0x38] sm:$0xf]
      %v2915 = vld [vmem:[%s2899 + $0x3c] sm:$0xf]
      %s2916 = scalar_lea.vmem %s3, 9
      %v2917 = vld [vmem:[%s2916] sm:$0x1]
      %v2919 = vlaneseq
      %v2920 = vshrl.u32 %v2919, 7
      %v2921 = vsub.s32 0, %v2920
      %v2922 = vrot.slane %v2917, %v2921
      %v2940 = vunpack.c.l.b16 %v2900
      %v2941 = vunpack.c.l.b16 %v2901
      %v2942 = vunpack.c.l.b16 %v2902
      %v2943 = vunpack.c.l.b16 %v2903
      %v2944 = vunpack.c.l.b16 %v2904
      %v2945 = vunpack.c.l.b16 %v2905
      %v2946 = vunpack.c.l.b16 %v2906
      %v2947 = vunpack.c.l.b16 %v2907
      %v2948 = vunpack.c.l.b16 %v2908
      %v2949 = vunpack.c.l.b16 %v2909
      %v2950 = vunpack.c.l.b16 %v2910
      %v2951 = vunpack.c.l.b16 %v2911
      %v2952 = vunpack.c.l.b16 %v2912
      %v2953 = vunpack.c.l.b16 %v2913
      %v2954 = vunpack.c.l.b16 %v2914
      %v2955 = vunpack.c.l.b16 %v2915
      %v2956 = vpack.c.b16 %v2941, %v2940
      %v2957 = vpack.c.b16 %v2943, %v2942
      %v2958 = vpack.c.b16 %v2945, %v2944
      %v2959 = vpack.c.b16 %v2947, %v2946
      %v2960 = vpack.c.b16 %v2949, %v2948
      %v2961 = vpack.c.b16 %v2951, %v2950
      %v2962 = vpack.c.b16 %v2953, %v2952
      %v2963 = vpack.c.b16 %v2955, %v2954
      %2972 = vmatprep.subr.bf16.mxu0 0
      %2973 = vmatpush1.bf16.msra.mxu0 %v2956
      %2974 = vmatprep.subr.bf16.mxu0 0
      %2975 = vmatpush1.bf16.msra.mxu0 %v2957
      %2976 = vmatprep.subr.bf16.mxu0 0
      %2977 = vmatpush1.bf16.msra.mxu0 %v2958
      %2978 = vmatprep.subr.bf16.mxu0 0
      %2979 = vmatpush1.bf16.msra.mxu0 %v2959
      %2980 = vmatprep.subr.bf16.mxu0 0
      %2981 = vmatpush1.bf16.msra.mxu0 %v2960
      %2982 = vmatprep.subr.bf16.mxu0 0
      %2983 = vmatpush1.bf16.msra.mxu0 %v2961
      %2984 = vmatprep.subr.bf16.mxu0 0
      %2985 = vmatpush1.bf16.msra.mxu0 %v2962
      %2986 = vmatprep.subr.bf16.mxu0 0
      %2987 = vmatpush1.bf16.msra.mxu0 %v2963
      %2988 = vmatprep.subr.bf16.mxu0 0
      %2989 = vmatpush1.bf16.msra.mxu0 0
      %2990 = vmatprep.subr.bf16.mxu0 0
      %2991 = vmatpush1.bf16.msra.mxu0 0
      %2992 = vmatprep.subr.bf16.mxu0 0
      %2993 = vmatpush1.bf16.msra.mxu0 0
      %2994 = vmatprep.subr.bf16.mxu0 0
      %2995 = vmatpush1.bf16.msra.mxu0 0
      %2996 = vmatprep.subr.bf16.mxu0 0
      %2997 = vmatpush1.bf16.msra.mxu0 0
      %2998 = vmatprep.subr.bf16.mxu0 0
      %2999 = vmatpush1.bf16.msra.mxu0 0
      %3000 = vmatprep.subr.bf16.mxu0 0
      %3001 = vmatpush1.bf16.msra.mxu0 0
      %3002 = vmatprep.subr.bf16.mxu0 0
      %3003 = vmatpush1.bf16.msra.mxu0 0
      %3004 = vmatprep.mubr.bf16.mxu0 0
      %3005 = vmatmul.mubr.bf16.gmra.mrb[0].mxu0 %v2898
      %v3006 = vpop.f32.mrb[0].mxu0
      %v3007 = vadd.f32 %v2922, %v3006
      %v3008 = vpop.f32.mrb[0].mxu0
      %v3009 = vpop.f32.mrb[0].mxu0
      %v3010 = vadd.f32 %v2922, %v3009
      %v3011 = vpop.f32.mrb[0].mxu0
      %3012 = vdwg.mxu0
      %v3013 = vxor.u32 %v3007, 2147483648
      %v3014 = vxor.u32 %v3010, 2147483648
      %v3015 = vmul.f32 %v3013, 1.442695
      %v3016 = vpow.pop %v3015
      %v3017 = vmul.f32 %v3014, 1.442695
      %v3018 = vpow.pop %v3017
      %v3019 = vadd.f32 %v3016, 1.0
      %v3020 = vadd.f32 %v3018, 1.0
      %v3021 = vrcp.pop %v3019
      %v3022 = vmul.f32 1.0, %v3021
      %v3023 = vrcp.pop %v3020
      %v3024 = vmul.f32 1.0, %v3023
      %v3025 = vmul.f32 %v3007, %v3022
      %v3026 = vmul.f32 %v3010, %v3024
      %v3027 = vadd.f32 %v2767, %v3025
      %v3028 = vadd.f32 %v2768, %v3026
      %3029 = vst [vmem:[%s325] sm:$0xff] %v3027
      %3030 = vst [vmem:[%s325 + $0x8] sm:$0xff] %v3028
      %p3031 = scmp.lt.s32.totalorder %s19, 1
      %s3032 = scalar_select %p3031, %s19, 1
      %s3033 = smul.addr %s3032, 2
      %s3034 = smul.addr %s3033, 8
      %s3035 = scalar_lea.vmem %s8, %s3034
      // Predicated region
      $region53: #{two_fdis_forward.1} parent=51 // pred_check
        %p3036 = pneg %p215
      $region54: #{two_fdis_forward.1} parent=51 // pred_check_branch
        %3038 = sbr.rel (%p3036) target = $region56
      $region55: #{two_fdis_forward.1} parent=51 // pred_region
        _
      $region56: #{two_fdis_forward.1} parent=51 // pred_fallthru
        _
    $region52: #{two_fdis_forward.1} parent=5 // pred_fallthru
      _
    %p3039 = scmp.le.s32.totalorder 2, %s14
    // Predicated region
    $region57: #{two_fdis_forward.1} parent=5 // pred_check
      %p3040 = pneg %p3039
    $region58: #{two_fdis_forward.1} parent=5 // pred_check_branch
      %3042 = sbr.rel (%p3040) target = $region60
    $region59: #{two_fdis_forward.1} parent=5 // pred_region
      %s3043 = ssub.s32 %s14, 2
      // Predicated region
      $region61: #{two_fdis_forward.1} parent=59 // pred_check
        %p3044 = pneg %p221
      $region62: #{two_fdis_forward.1} parent=59 // pred_check_branch
        %3046 = sbr.rel (%p3044) target = $region64
      $region63: #{two_fdis_forward.1} parent=59 // pred_region
        %p3047 = scmp.lt.s32.totalorder %s20, 1
        %s3048 = scalar_select %p3047, %s20, 1
        %s3049 = smul.addr %s3048, 2
        %s3050 = smul.addr %s3049, 8
        %s3051 = scalar_lea.vmem %s8, %s3050
      $region64: #{two_fdis_forward.1} parent=59 // pred_fallthru
        _
    $region60: #{two_fdis_forward.1} parent=5 // pred_fallthru
      _
  $region6: #{two_fdis_forward.1} parent=0 // loop_footer
    %s18 = sadd.s32 1, %s14
  $region7: #{two_fdis_forward.1} parent=0 // loop_footer_branch
    %13 = sbr.rel target = $region3
  $region8: #{two_fdis_forward.1} parent=0 // loop_exit
    _

</llo_original>
